<compile_context>
chip_gen: v5e
topology: v5e:2x2
jax: 0.10.0
libtpu: 0.0.40
codegen_flags: <defaults>
</compile_context>

<pallas_src>
import math
from functools import partial

import jax
import jax.numpy as jnp
from jax.experimental import pallas as pl
from jax.experimental.pallas import tpu as pltpu

EPS = 1e-5                       # torch.nn.LayerNorm default eps
VMEM_LIMIT = 64 * 1024 * 1024    # raised scoped VMEM limit (fits all gens)


def _fit(dim, target):
    """Largest divisor of `dim` that is <= target (never whole-axis blowup)."""
    if dim <= target:
        return dim
    for cand in range(min(target, dim), 0, -1):
        if dim % cand == 0:
            return cand
    return dim
    # TODO(synk): prime-ish dims degrade to tiny tiles; pad the operand instead
    #             for odd production shapes.


def _cparams(*sem):
    return pltpu.CompilerParams(dimension_semantics=sem,
                                vmem_limit_bytes=VMEM_LIMIT)


# --------------------------- LayerNorm math (1-pass) ---------------------------

def _ln_rows(y, g, b):
    """Row-wise LayerNorm of f32 (R, D) with single-pass sum / sum-of-squares."""
    d = y.shape[-1]
    inv_d = 1.0 / d
    mu = jnp.sum(y, axis=-1, keepdims=True) * inv_d
    ms = jnp.sum(y * y, axis=-1, keepdims=True) * inv_d
    var = jnp.maximum(ms - mu * mu, 0.0)
    return (y - mu) * jax.lax.rsqrt(var + EPS) * g + b


# ----------------------------- tiled matmul (linear) ---------------------------

def _matmul_kernel(x_ref, w_ref, b_ref, o_ref, acc_ref):
    @pl.when(pl.program_id(2) == 0)
    def _():
        acc_ref[...] = jnp.zeros_like(acc_ref)

    acc_ref[...] += jnp.dot(x_ref[...].astype(jnp.bfloat16), w_ref[...],
                            preferred_element_type=jnp.float32)

    @pl.when(pl.program_id(2) == pl.num_programs(2) - 1)
    def _():
        o_ref[...] = (acc_ref[...] + b_ref[...].astype(jnp.float32)
                      ).astype(o_ref.dtype)


def linear(x2d, w, b, *, tm=512, tn=512, tk=512):
    """x2d: (M, K) f32, w: (K, N) bf16, b: (1, N) f32 -> (M, N) f32."""
    M, K = x2d.shape
    _, N = w.shape
    tm, tn, tk = _fit(M, tm), _fit(N, tn), _fit(K, tk)
    return pl.pallas_call(
        _matmul_kernel,
        out_shape=jax.ShapeDtypeStruct((M, N), x2d.dtype),
        grid=(M // tm, N // tn, K // tk),
        in_specs=[pl.BlockSpec((tm, tk), lambda i, j, k: (i, k)),
                  pl.BlockSpec((tk, tn), lambda i, j, k: (k, j)),
                  pl.BlockSpec((1, tn), lambda i, j, k: (0, j))],
        out_specs=pl.BlockSpec((tm, tn), lambda i, j, k: (i, j)),
        scratch_shapes=[pltpu.VMEM((tm, tn), jnp.float32)],
        compiler_params=_cparams("parallel", "parallel", "arbitrary"),
    )(x2d, w, b)


# ------------------------ fused FFN + residual + LayerNorm ---------------------

def _ffn_addln_kernel(x_ref, w1_ref, b1_ref, w2_ref, b2_ref, g_ref, bln_ref,
                      o_ref, acc_ref):
    @pl.when(pl.program_id(1) == 0)
    def _():
        acc_ref[...] = jnp.zeros_like(acc_ref)

    h = jnp.dot(x_ref[...].astype(jnp.bfloat16), w1_ref[...],
                preferred_element_type=jnp.float32)
    h = jnp.maximum(h + b1_ref[...].astype(jnp.float32), 0.0)
    acc_ref[...] += jnp.dot(h.astype(jnp.bfloat16), w2_ref[...],
                            preferred_element_type=jnp.float32)

    @pl.when(pl.program_id(1) == pl.num_programs(1) - 1)
    def _():
        # residual is the FFN input itself (post-LN block), then LayerNorm.
        y = (acc_ref[...] + b2_ref[...].astype(jnp.float32)
             + x_ref[...].astype(jnp.float32))
        o_ref[...] = _ln_rows(y, g_ref[...].astype(jnp.float32),
                              bln_ref[...].astype(jnp.float32)
                              ).astype(o_ref.dtype)


def ffn_add_ln(x, w1, b1, w2, b2, gamma, beta, *, tm=256, tf=512):
    """LayerNorm(x + relu(x@w1 + b1) @ w2 + b2), hidden kept on-chip."""
    B, S, D = x.shape
    M, F = B * S, w1.shape[1]
    tm, tf = _fit(M, tm), _fit(F, tf)
    out = pl.pallas_call(
        _ffn_addln_kernel,
        out_shape=jax.ShapeDtypeStruct((M, D), x.dtype),
        grid=(M // tm, F // tf),
        in_specs=[pl.BlockSpec((tm, D), lambda i, f: (i, 0)),
                  pl.BlockSpec((D, tf), lambda i, f: (0, f)),
                  pl.BlockSpec((1, tf), lambda i, f: (0, f)),
                  pl.BlockSpec((tf, D), lambda i, f: (f, 0)),
                  pl.BlockSpec((1, D), lambda i, f: (0, 0)),
                  pl.BlockSpec((1, D), lambda i, f: (0, 0)),
                  pl.BlockSpec((1, D), lambda i, f: (0, 0))],
        out_specs=pl.BlockSpec((tm, D), lambda i, f: (i, 0)),
        scratch_shapes=[pltpu.VMEM((tm, D), jnp.float32)],
        compiler_params=_cparams("parallel", "arbitrary"),
    )(x.reshape(M, D), w1, b1, w2, b2, gamma, beta)
    return out.reshape(B, S, D)


# ------------------------------ final LayerNorm --------------------------------

def _ln_kernel(x_ref, g_ref, b_ref, o_ref):
    o_ref[...] = _ln_rows(x_ref[...].astype(jnp.float32),
                          g_ref[...].astype(jnp.float32),
                          b_ref[...].astype(jnp.float32)).astype(o_ref.dtype)


def layernorm(x, gamma, beta, *, tr=512):
    B, S, D = x.shape
    R = B * S
    tr = _fit(R, tr)
    out = pl.pallas_call(
        _ln_kernel,
        out_shape=jax.ShapeDtypeStruct((R, D), x.dtype),
        grid=(R // tr,),
        in_specs=[pl.BlockSpec((tr, D), lambda i: (i, 0)),
                  pl.BlockSpec((1, D), lambda i: (0, 0)),
                  pl.BlockSpec((1, D), lambda i: (0, 0))],
        out_specs=pl.BlockSpec((tr, D), lambda i: (i, 0)),
        compiler_params=_cparams("parallel"),
    )(x.reshape(R, D), gamma, beta)
    return out.reshape(B, S, D)


# ------------- attention (fused Wo + residual + LayerNorm, packed heads) -------

def _mha_addln_kernel(q_ref, k_ref, v_ref, wo_ref, bo_ref, res_ref, g_ref, b_ref,
                      o_ref, heads_ref, *, n_heads, scale, causal):
    Sq, D = q_ref.shape[1], q_ref.shape[2]
    Sk = k_ref.shape[1]
    Dh = D // n_heads

    if causal:
        row = jax.lax.broadcasted_iota(jnp.int32, (Sq, Sk), 0)
        col = jax.lax.broadcasted_iota(jnp.int32, (Sq, Sk), 1)
        bias = jnp.where(row >= col, 0.0, -1e30).astype(jnp.float32)

    # TODO(synk): static head unroll with Dh-wide lane slices; for large
    #             n_heads / Sq (esp. v7x) move heads onto a grid axis, pad Dh
    #             to 128, and tile Sq/Sk with online softmax (flash-style).
    for h in range(n_heads):
        lo = h * Dh
        qh = q_ref[0, :, lo:lo + Dh].astype(jnp.bfloat16)
        kh = k_ref[0, :, lo:lo + Dh].astype(jnp.bfloat16)
        vh = v_ref[0, :, lo:lo + Dh].astype(jnp.bfloat16)
        # q @ k^T via dot_general contracting the last dims (no explicit .T)
        s = jax.lax.dot_general(qh, kh, (((1,), (1,)), ((), ())),
                                preferred_element_type=jnp.float32) * scale
        if causal:
            s = s + bias
        s = s - jnp.max(s, axis=-1, keepdims=True)
        p = jnp.exp(s)
        p = p * pl.reciprocal(jnp.sum(p, axis=-1, keepdims=True), approx=True)
        oh = jax.lax.dot_general(p.astype(jnp.bfloat16), vh,
                                 (((1,), (0,)), ((), ())),
                                 preferred_element_type=jnp.float32)
        heads_ref[:, lo:lo + Dh] = oh.astype(jnp.bfloat16)   # dies here

    # One full-width (Sq, D) @ (D, D) output projection — full MXU utilization.
    proj = jnp.dot(heads_ref[...], wo_ref[...],
                   preferred_element_type=jnp.float32)
    y = proj + bo_ref[...].astype(jnp.float32) + res_ref[0].astype(jnp.float32)
    o_ref[0] = _ln_rows(y, g_ref[...].astype(jnp.float32),
                        b_ref[...].astype(jnp.float32)).astype(o_ref.dtype)


def _off_map(off):
    return lambda b: (b, 0, off)


def attention_add_ln(q_src, k_src, v_src, q_off, k_off, v_off,
                     wo, bo, residual, gamma, beta, n_heads, *, causal):
    """LayerNorm(residual + MHA(q, k, v) @ Wo + bo).

    q/k/v are taken from (possibly fused) projection tensors via block-offset
    index maps — no XLA slices of the fused qkv / kv tensors are materialized.
    """
    B, Sq, D = residual.shape
    Sk = k_src.shape[1]
    scale = 1.0 / math.sqrt(D // n_heads)
    return pl.pallas_call(
        partial(_mha_addln_kernel, n_heads=n_heads, scale=scale, causal=causal),
        out_shape=jax.ShapeDtypeStruct((B, Sq, D), residual.dtype),
        grid=(B,),
        in_specs=[pl.BlockSpec((1, Sq, D), _off_map(q_off)),
                  pl.BlockSpec((1, Sk, D), _off_map(k_off)),
                  pl.BlockSpec((1, Sk, D), _off_map(v_off)),
                  pl.BlockSpec((D, D), lambda b: (0, 0)),
                  pl.BlockSpec((1, D), lambda b: (0, 0)),
                  pl.BlockSpec((1, Sq, D), lambda b: (b, 0, 0)),
                  pl.BlockSpec((1, D), lambda b: (0, 0)),
                  pl.BlockSpec((1, D), lambda b: (0, 0))],
        out_specs=pl.BlockSpec((1, Sq, D), lambda b: (b, 0, 0)),
        scratch_shapes=[pltpu.VMEM((Sq, D), jnp.bfloat16)],
        compiler_params=_cparams("parallel"),
    )(q_src, k_src, v_src, wo, bo, residual, gamma, beta)


# ------------------------------ model glue ------------------------------------

def decoder_layer(x, enc, p, n_heads, *, tgt_causal, src_causal):
    B, S, D = x.shape
    _, Sk, _ = enc.shape

    # --- self-attention sublayer (fused qkv projection; add+LN fused in-kernel)
    sa = p["self_attn"]
    qkv = linear(x.reshape(B * S, D), sa["w_qkv"], sa["b_qkv"]).reshape(B, S, 3 * D)
    x = attention_add_ln(qkv, qkv, qkv, 0, 1, 2,
                         sa["wo"], sa["bo"], x, p["ln1_g"], p["ln1_b"],
                         n_heads, causal=tgt_causal)

    # --- cross-attention sublayer (fused kv projection of encoder output)
    ca = p["cross_attn"]
    q = linear(x.reshape(B * S, D), ca["w_q"], ca["b_q"]).reshape(B, S, D)
    kv = linear(enc.reshape(B * Sk, D), ca["w_kv"], ca["b_kv"]).reshape(B, Sk, 2 * D)
    x = attention_add_ln(q, kv, kv, 0, 0, 1,
                         ca["wo"], ca["bo"], x, p["ln2_g"], p["ln2_b"],
                         n_heads, causal=src_causal)

    # --- FFN sublayer (residual + LN fused in-kernel)
    x = ffn_add_ln(x, p["w1"], p["b1"], p["w2"], p["b2"],
                   p["ln3_g"], p["ln3_b"])
    return x


def decoder_forward(x, encoder_output, params, *, n_heads,
                    tgt_causal=True, src_causal=False):
    for lp in params["layers"]:
        x = decoder_layer(x, encoder_output, lp, n_heads,
                          tgt_causal=tgt_causal, src_causal=src_causal)
    # the Decoder module's own self.norm = nn.LayerNorm(d_model)
    return layernorm(x, params["norm_g"], params["norm_b"])


def init_params(key, d_model, d_ff, n_layers):
    # Weights stored bf16 (MXU-native); biases / LN params stay f32 and every
    # matmul accumulates in f32.
    def nrm(k, shape, scale=0.02):
        return (jax.random.normal(k, shape, jnp.float32) * scale
                ).astype(jnp.bfloat16)

    def zeros(n):
        return jnp.zeros((1, n), jnp.float32)

    def ones(n):
        return jnp.ones((1, n), jnp.float32)

    layers = []
    for lk in jax.random.split(key, n_layers):
        ks = jax.random.split(lk, 7)
        layers.append({
            "self_attn": {
                "w_qkv": nrm(ks[0], (d_model, 3 * d_model)),
                "b_qkv": zeros(3 * d_model),
                "wo": nrm(ks[1], (d_model, d_model)), "bo": zeros(d_model),
            },
            "cross_attn": {
                "w_q": nrm(ks[2], (d_model, d_model)), "b_q": zeros(d_model),
                "w_kv": nrm(ks[3], (d_model, 2 * d_model)),
                "b_kv": zeros(2 * d_model),
                "wo": nrm(ks[4], (d_model, d_model)), "bo": zeros(d_model),
            },
            "w1": nrm(ks[5], (d_model, d_ff)), "b1": zeros(d_ff),
            "w2": nrm(ks[6], (d_ff, d_model)), "b2": zeros(d_model),
            "ln1_g": ones(d_model), "ln1_b": zeros(d_model),
            "ln2_g": ones(d_model), "ln2_b": zeros(d_model),
            "ln3_g": ones(d_model), "ln3_b": zeros(d_model),
        })
    return {"layers": layers, "norm_g": ones(d_model), "norm_b": zeros(d_model)}


if __name__ == "__main__":
    # Small but lane-representative shapes (D a multiple of 128).
    B, S_DEC, S_ENC, D_MODEL, N_HEADS, D_FF, N_LAYERS = 2, 16, 16, 128, 4, 256, 2

    key = jax.random.PRNGKey(0)
    k_x, k_enc, k_p = jax.random.split(key, 3)

    x = jax.random.normal(k_x, (B, S_DEC, D_MODEL), jnp.float32)
    encoder_output = jax.random.normal(k_enc, (B, S_ENC, D_MODEL), jnp.float32)
    params = init_params(k_p, D_MODEL, D_FF, N_LAYERS)

    # tgt mask: causal (built in-kernel); src mask: all-ones (masking skipped).
    fwd = jax.jit(partial(decoder_forward, n_heads=N_HEADS,
                          tgt_causal=True, src_causal=False))
    out = jax.block_until_ready(fwd(x, encoder_output, params))

    assert out.shape == (B, S_DEC, D_MODEL) and out.dtype == jnp.float32
    print("KERNEL_OK")
</pallas_src>

<mosaic_0001>
module attributes {stable_mosaic.version = 11 : i64} {
  func.func @_matmul_kernel(%arg0: i32, %arg1: i32, %arg2: i32, %arg3: memref<32x128xf32, #tpu.memory_space<vmem>>, %arg4: memref<128x128xbf16, #tpu.memory_space<vmem>>, %arg5: memref<1x128xf32, #tpu.memory_space<vmem>>, %arg6: memref<32x128xf32, #tpu.memory_space<vmem>>, %arg7: memref<32x128xf32, #tpu.memory_space<vmem>>) attributes {dimension_semantics = [#tpu.dimension_semantics<parallel>, #tpu.dimension_semantics<parallel>, #tpu.dimension_semantics<arbitrary>], iteration_bounds = array<i64: 1, 1, 1>, scalar_prefetch = 0 : i64, scratch_operands = 1 : i64, tpu.core_type = #tpu.core_type<tc>, window_params = [{transform_indices = @transform_0, window_bounds = array<i64: 32, 128>}, {transform_indices = @transform_1, window_bounds = array<i64: 128, 128>}, {transform_indices = @transform_2, window_bounds = array<i64: 1, 128>}, {transform_indices = @transform_3, window_bounds = array<i64: 32, 128>}]} {
    %c0_i32 = arith.constant 0 : i32
    %0 = arith.cmpi eq, %arg2, %c0_i32 : i32
    %1 = arith.extui %0 : i1 to i32
    %c0_i32_0 = arith.constant 0 : i32
    %2 = arith.cmpi ne, %1, %c0_i32_0 : i32
    scf.if %2 {
      %cst_10 = arith.constant 0.000000e+00 : f32
      %13 = vector.broadcast %cst_10 : f32 to vector<32x128xf32>
      %c0_11 = arith.constant 0 : index
      %c0_12 = arith.constant 0 : index
      %14 = vector.load %arg7[%c0_11, %c0_12] : memref<32x128xf32, #tpu.memory_space<vmem>>, vector<32x128xf32>
      tpu.vector_store %arg7[%c0_11, %c0_12], %13 {strides = array<i32>} : memref<32x128xf32, #tpu.memory_space<vmem>>, vector<32x128xf32>,
    } else {
    }
    %c0 = arith.constant 0 : index
    %c0_1 = arith.constant 0 : index
    %3 = vector.load %arg7[%c0, %c0_1] : memref<32x128xf32, #tpu.memory_space<vmem>>, vector<32x128xf32>
    %c0_2 = arith.constant 0 : index
    %c0_3 = arith.constant 0 : index
    %4 = vector.load %arg3[%c0_2, %c0_3] : memref<32x128xf32, #tpu.memory_space<vmem>>, vector<32x128xf32>
    %5 = arith.truncf %4 : vector<32x128xf32> to vector<32x128xbf16>
    %c0_4 = arith.constant 0 : index
    %c0_5 = arith.constant 0 : index
    %6 = vector.load %arg4[%c0_4, %c0_5] : memref<128x128xbf16, #tpu.memory_space<vmem>>, vector<128x128xbf16>
    %cst = arith.constant dense<0.000000e+00> : vector<32x128xf32>
    %7 = tpu.matmul %5, %6, %cst {dimension_numbers = #tpu.dot_dimension_numbers<[1], [0], [0], [1], [0, 0, 1, 1], [], []>} : vector<32x128xbf16>, vector<128x128xbf16>, vector<32x128xf32> -> vector<32x128xf32>
    %8 = arith.addf %3, %7 : vector<32x128xf32>
    %c0_6 = arith.constant 0 : index
    %c0_7 = arith.constant 0 : index
    %9 = vector.load %arg7[%c0_6, %c0_7] : memref<32x128xf32, #tpu.memory_space<vmem>>, vector<32x128xf32>
    tpu.vector_store %arg7[%c0_6, %c0_7], %8 {strides = array<i32>} : memref<32x128xf32, #tpu.memory_space<vmem>>, vector<32x128xf32>,
    %c0_i32_8 = arith.constant 0 : i32
    %10 = arith.cmpi eq, %arg2, %c0_i32_8 : i32
    %11 = arith.extui %10 : i1 to i32
    %c0_i32_9 = arith.constant 0 : i32
    %12 = arith.cmpi ne, %11, %c0_i32_9 : i32
    scf.if %12 {
      %c0_10 = arith.constant 0 : index
      %c0_11 = arith.constant 0 : index
      %13 = vector.load %arg7[%c0_10, %c0_11] : memref<32x128xf32, #tpu.memory_space<vmem>>, vector<32x128xf32>
      %c0_12 = arith.constant 0 : index
      %c0_13 = arith.constant 0 : index
      %14 = vector.load %arg5[%c0_12, %c0_13] : memref<1x128xf32, #tpu.memory_space<vmem>>, vector<1x128xf32>
      %15 = vector.broadcast %14 : vector<1x128xf32> to vector<32x128xf32>
      %16 = arith.addf %13, %15 : vector<32x128xf32>
      %c0_14 = arith.constant 0 : index
      %c0_15 = arith.constant 0 : index
      %17 = vector.load %arg6[%c0_14, %c0_15] : memref<32x128xf32, #tpu.memory_space<vmem>>, vector<32x128xf32>
      tpu.vector_store %arg6[%c0_14, %c0_15], %16 {strides = array<i32>} : memref<32x128xf32, #tpu.memory_space<vmem>>, vector<32x128xf32>,
    } else {
    }
    return
  }
  func.func @transform_0(%arg0: i32, %arg1: i32, %arg2: i32) -> (i32, i32) {
    %c0_i32 = arith.constant 0 : i32
    return %arg0, %arg2 : i32, i32
  }
  func.func @transform_1(%arg0: i32, %arg1: i32, %arg2: i32) -> (i32, i32) {
    %c0_i32 = arith.constant 0 : i32
    return %arg2, %arg1 : i32, i32
  }
  func.func @transform_2(%arg0: i32, %arg1: i32, %arg2: i32) -> (i32, i32) {
    %c0_i32 = arith.constant 0 : i32
    %c0_i32_0 = arith.constant 0 : i32
    return %c0_i32, %arg1 : i32, i32
  }
  func.func @transform_3(%arg0: i32, %arg1: i32, %arg2: i32) -> (i32, i32) {
    %c0_i32 = arith.constant 0 : i32
    return %arg0, %arg1 : i32, i32
  }
}

module attributes {stable_mosaic.version = 11 : i64} {
  func.func @_matmul_kernel(%arg0: i32, %arg1: i32, %arg2: i32, %arg3: memref<32x128xf32, #tpu.memory_space<vmem>>, %arg4: memref<128x256xbf16, #tpu.memory_space<vmem>>, %arg5: memref<1x256xf32, #tpu.memory_space<vmem>>, %arg6: memref<32x256xf32, #tpu.memory_space<vmem>>, %arg7: memref<32x256xf32, #tpu.memory_space<vmem>>) attributes {dimension_semantics = [#tpu.dimension_semantics<parallel>, #tpu.dimension_semantics<parallel>, #tpu.dimension_semantics<arbitrary>], iteration_bounds = array<i64: 1, 1, 1>, scalar_prefetch = 0 : i64, scratch_operands = 1 : i64, tpu.core_type = #tpu.core_type<tc>, window_params = [{transform_indices = @transform_0, window_bounds = array<i64: 32, 128>}, {transform_indices = @transform_1, window_bounds = array<i64: 128, 256>}, {transform_indices = @transform_2, window_bounds = array<i64: 1, 256>}, {transform_indices = @transform_3, window_bounds = array<i64: 32, 256>}]} {
    %c0_i32 = arith.constant 0 : i32
    %0 = arith.cmpi eq, %arg2, %c0_i32 : i32
    %1 = arith.extui %0 : i1 to i32
    %c0_i32_0 = arith.constant 0 : i32
    %2 = arith.cmpi ne, %1, %c0_i32_0 : i32
    scf.if %2 {
      %cst_10 = arith.constant 0.000000e+00 : f32
      %13 = vector.broadcast %cst_10 : f32 to vector<32x256xf32>
      %c0_11 = arith.constant 0 : index
      %c0_12 = arith.constant 0 : index
      %14 = vector.load %arg7[%c0_11, %c0_12] : memref<32x256xf32, #tpu.memory_space<vmem>>, vector<32x256xf32>
      tpu.vector_store %arg7[%c0_11, %c0_12], %13 {strides = array<i32>} : memref<32x256xf32, #tpu.memory_space<vmem>>, vector<32x256xf32>,
    } else {
    }
    %c0 = arith.constant 0 : index
    %c0_1 = arith.constant 0 : index
    %3 = vector.load %arg7[%c0, %c0_1] : memref<32x256xf32, #tpu.memory_space<vmem>>, vector<32x256xf32>
    %c0_2 = arith.constant 0 : index
    %c0_3 = arith.constant 0 : index
    %4 = vector.load %arg3[%c0_2, %c0_3] : memref<32x128xf32, #tpu.memory_space<vmem>>, vector<32x128xf32>
    %5 = arith.truncf %4 : vector<32x128xf32> to vector<32x128xbf16>
    %c0_4 = arith.constant 0 : index
    %c0_5 = arith.constant 0 : index
    %6 = vector.load %arg4[%c0_4, %c0_5] : memref<128x256xbf16, #tpu.memory_space<vmem>>, vector<128x256xbf16>
    %cst = arith.constant dense<0.000000e+00> : vector<32x256xf32>
    %7 = tpu.matmul %5, %6, %cst {dimension_numbers = #tpu.dot_dimension_numbers<[1], [0], [0], [1], [0, 0, 1, 1], [], []>} : vector<32x128xbf16>, vector<128x256xbf16>, vector<32x256xf32> -> vector<32x256xf32>
    %8 = arith.addf %3, %7 : vector<32x256xf32>
    %c0_6 = arith.constant 0 : index
    %c0_7 = arith.constant 0 : index
    %9 = vector.load %arg7[%c0_6, %c0_7] : memref<32x256xf32, #tpu.memory_space<vmem>>, vector<32x256xf32>
    tpu.vector_store %arg7[%c0_6, %c0_7], %8 {strides = array<i32>} : memref<32x256xf32, #tpu.memory_space<vmem>>, vector<32x256xf32>,
    %c0_i32_8 = arith.constant 0 : i32
    %10 = arith.cmpi eq, %arg2, %c0_i32_8 : i32
    %11 = arith.extui %10 : i1 to i32
    %c0_i32_9 = arith.constant 0 : i32
    %12 = arith.cmpi ne, %11, %c0_i32_9 : i32
    scf.if %12 {
      %c0_10 = arith.constant 0 : index
      %c0_11 = arith.constant 0 : index
      %13 = vector.load %arg7[%c0_10, %c0_11] : memref<32x256xf32, #tpu.memory_space<vmem>>, vector<32x256xf32>
      %c0_12 = arith.constant 0 : index
      %c0_13 = arith.constant 0 : index
      %14 = vector.load %arg5[%c0_12, %c0_13] : memref<1x256xf32, #tpu.memory_space<vmem>>, vector<1x256xf32>
      %15 = vector.broadcast %14 : vector<1x256xf32> to vector<32x256xf32>
      %16 = arith.addf %13, %15 : vector<32x256xf32>
      %c0_14 = arith.constant 0 : index
      %c0_15 = arith.constant 0 : index
      %17 = vector.load %arg6[%c0_14, %c0_15] : memref<32x256xf32, #tpu.memory_space<vmem>>, vector<32x256xf32>
      tpu.vector_store %arg6[%c0_14, %c0_15], %16 {strides = array<i32>} : memref<32x256xf32, #tpu.memory_space<vmem>>, vector<32x256xf32>,
    } else {
    }
    return
  }
  func.func @transform_0(%arg0: i32, %arg1: i32, %arg2: i32) -> (i32, i32) {
    %c0_i32 = arith.constant 0 : i32
    return %arg0, %arg2 : i32, i32
  }
  func.func @transform_1(%arg0: i32, %arg1: i32, %arg2: i32) -> (i32, i32) {
    %c0_i32 = arith.constant 0 : i32
    return %arg2, %arg1 : i32, i32
  }
  func.func @transform_2(%arg0: i32, %arg1: i32, %arg2: i32) -> (i32, i32) {
    %c0_i32 = arith.constant 0 : i32
    %c0_i32_0 = arith.constant 0 : i32
    return %c0_i32, %arg1 : i32, i32
  }
  func.func @transform_3(%arg0: i32, %arg1: i32, %arg2: i32) -> (i32, i32) {
    %c0_i32 = arith.constant 0 : i32
    return %arg0, %arg1 : i32, i32
  }
}

module attributes {stable_mosaic.version = 11 : i64} {
  func.func @_mha_addln_kernel(%arg0: i32, %arg1: memref<1x16x128xf32, #tpu.memory_space<vmem>>, %arg2: memref<1x16x128xf32, #tpu.memory_space<vmem>>, %arg3: memref<1x16x128xf32, #tpu.memory_space<vmem>>, %arg4: memref<128x128xbf16, #tpu.memory_space<vmem>>, %arg5: memref<1x128xf32, #tpu.memory_space<vmem>>, %arg6: memref<1x16x128xf32, #tpu.memory_space<vmem>>, %arg7: memref<1x128xf32, #tpu.memory_space<vmem>>, %arg8: memref<1x128xf32, #tpu.memory_space<vmem>>, %arg9: memref<1x16x128xf32, #tpu.memory_space<vmem>>, %arg10: memref<16x128xbf16, #tpu.memory_space<vmem>>) attributes {dimension_semantics = [#tpu.dimension_semantics<parallel>], iteration_bounds = array<i64: 2>, scalar_prefetch = 0 : i64, scratch_operands = 1 : i64, tpu.core_type = #tpu.core_type<tc>, window_params = [{transform_indices = @transform_0, window_bounds = array<i64: 1, 16, 128>}, {transform_indices = @transform_1, window_bounds = array<i64: 1, 16, 128>}, {transform_indices = @transform_2, window_bounds = array<i64: 1, 16, 128>}, {pipeline_mode = #tpu.pipeline_mode<synchronous>, transform_indices = @transform_3, window_bounds = array<i64: 128, 128>}, {pipeline_mode = #tpu.pipeline_mode<synchronous>, transform_indices = @transform_4, window_bounds = array<i64: 1, 128>}, {transform_indices = @transform_5, window_bounds = array<i64: 1, 16, 128>}, {pipeline_mode = #tpu.pipeline_mode<synchronous>, transform_indices = @transform_6, window_bounds = array<i64: 1, 128>}, {pipeline_mode = #tpu.pipeline_mode<synchronous>, transform_indices = @transform_7, window_bounds = array<i64: 1, 128>}, {transform_indices = @transform_8, window_bounds = array<i64: 1, 16, 128>}]} {
    %0 = tpu.iota {dimensions = array<i32: 0>} : vector<16x16xi32>
    %1 = tpu.iota {dimensions = array<i32: 1>} : vector<16x16xi32>
    %2 = arith.cmpi sge, %0, %1 : vector<16x16xi32>
    %cst = arith.constant 0.000000e+00 : f32
    %cst_0 = arith.constant -1.000000e+30 : f32
    %3 = vector.broadcast %cst : f32 to vector<16x16xf32>
    %4 = vector.broadcast %cst_0 : f32 to vector<16x16xf32>
    %5 = arith.select %2, %3, %4 : vector<16x16xi1>, vector<16x16xf32>
    %c0 = arith.constant 0 : index
    %c0_1 = arith.constant 0 : index
    %c0_2 = arith.constant 0 : index
    %6 = vector.load %arg1[%c0, %c0_1, %c0_2] : memref<1x16x128xf32, #tpu.memory_space<vmem>>, vector<1x16x32xf32>
    %7 = vector.shape_cast %6 : vector<1x16x32xf32> to vector<16x32xf32>
    %8 = arith.truncf %7 : vector<16x32xf32> to vector<16x32xbf16>
    %c0_3 = arith.constant 0 : index
    %c0_4 = arith.constant 0 : index
    %c0_5 = arith.constant 0 : index
    %9 = vector.load %arg2[%c0_3, %c0_4, %c0_5] : memref<1x16x128xf32, #tpu.memory_space<vmem>>, vector<1x16x32xf32>
    %10 = vector.shape_cast %9 : vector<1x16x32xf32> to vector<16x32xf32>
    %11 = arith.truncf %10 : vector<16x32xf32> to vector<16x32xbf16>
    %c0_6 = arith.constant 0 : index
    %c0_7 = arith.constant 0 : index
    %c0_8 = arith.constant 0 : index
    %12 = vector.load %arg3[%c0_6, %c0_7, %c0_8] : memref<1x16x128xf32, #tpu.memory_space<vmem>>, vector<1x16x32xf32>
    %13 = vector.shape_cast %12 : vector<1x16x32xf32> to vector<16x32xf32>
    %14 = arith.truncf %13 : vector<16x32xf32> to vector<16x32xbf16>
    %cst_9 = arith.constant dense<0.000000e+00> : vector<16x16xf32>
    %15 = tpu.matmul %8, %11, %cst_9 {dimension_numbers = #tpu.dot_dimension_numbers<[1], [1], [0], [0], [0, 0, 1, 0], [], []>} : vector<16x32xbf16>, vector<16x32xbf16>, vector<16x16xf32> -> vector<16x16xf32>
    %cst_10 = arith.constant 0.176776692 : f32
    %16 = vector.broadcast %cst_10 : f32 to vector<16x16xf32>
    %17 = arith.mulf %15, %16 : vector<16x16xf32>
    %18 = arith.addf %17, %5 : vector<16x16xf32>
    %cst_11 = arith.constant dense<0xFF800000> : vector<16xf32>
    %19 = vector.multi_reduction <maximumf>, %18, %cst_11 [1] : vector<16x16xf32> to vector<16xf32>
    %20 = vector.shape_cast %19 : vector<16xf32> to vector<16x1xf32>
    %21 = vector.broadcast %20 : vector<16x1xf32> to vector<16x16xf32>
    %22 = arith.subf %18, %21 : vector<16x16xf32>
    %23 = math.exp %22 : vector<16x16xf32>
    %cst_12 = arith.constant dense<0.000000e+00> : vector<16xf32>
    %24 = vector.multi_reduction <add>, %23, %cst_12 [1] : vector<16x16xf32> to vector<16xf32>
    %25 = vector.shape_cast %24 : vector<16xf32> to vector<16x1xf32>
    %26 = tpu.reciprocal %25 {approx = true} : vector<16x1xf32> -> vector<16x1xf32>
    %27 = vector.broadcast %26 : vector<16x1xf32> to vector<16x16xf32>
    %28 = arith.mulf %23, %27 : vector<16x16xf32>
    %29 = arith.truncf %28 : vector<16x16xf32> to vector<16x16xbf16>
    %cst_13 = arith.constant dense<0.000000e+00> : vector<16x32xf32>
    %30 = tpu.matmul %29, %14, %cst_13 {dimension_numbers = #tpu.dot_dimension_numbers<[1], [0], [0], [1], [0, 0, 1, 1], [], []>} : vector<16x16xbf16>, vector<16x32xbf16>, vector<16x32xf32> -> vector<16x32xf32>
    %31 = arith.truncf %30 : vector<16x32xf32> to vector<16x32xbf16>
    %c0_14 = arith.constant 0 : index
    %c0_15 = arith.constant 0 : index
    %32 = vector.load %arg10[%c0_14, %c0_15] : memref<16x128xbf16, #tpu.memory_space<vmem>>, vector<16x32xbf16>
    tpu.vector_store %arg10[%c0_14, %c0_15], %31 {strides = array<i32>} : memref<16x128xbf16, #tpu.memory_space<vmem>>, vector<16x32xbf16>,
    %c0_16 = arith.constant 0 : index
    %c0_17 = arith.constant 0 : index
    %c32 = arith.constant 32 : index
    %33 = vector.load %arg1[%c0_16, %c0_17, %c32] : memref<1x16x128xf32, #tpu.memory_space<vmem>>, vector<1x16x32xf32>
    %34 = vector.shape_cast %33 : vector<1x16x32xf32> to vector<16x32xf32>
    %35 = arith.truncf %34 : vector<16x32xf32> to vector<16x32xbf16>
    %c0_18 = arith.constant 0 : index
    %c0_19 = arith.constant 0 : index
    %c32_20 = arith.constant 32 : index
    %36 = vector.load %arg2[%c0_18, %c0_19, %c32_20] : memref<1x16x128xf32, #tpu.memory_space<vmem>>, vector<1x16x32xf32>
    %37 = vector.shape_cast %36 : vector<1x16x32xf32> to vector<16x32xf32>
    %38 = arith.truncf %37 : vector<16x32xf32> to vector<16x32xbf16>
    %c0_21 = arith.constant 0 : index
    %c0_22 = arith.constant 0 : index
    %c32_23 = arith.constant 32 : index
    %39 = vector.load %arg3[%c0_21, %c0_22, %c32_23] : memref<1x16x128xf32, #tpu.memory_space<vmem>>, vector<1x16x32xf32>
    %40 = vector.shape_cast %39 : vector<1x16x32xf32> to vector<16x32xf32>
    %41 = arith.truncf %40 : vector<16x32xf32> to vector<16x32xbf16>
    %cst_24 = arith.constant dense<0.000000e+00> : vector<16x16xf32>
    %42 = tpu.matmul %35, %38, %cst_24 {dimension_numbers = #tpu.dot_dimension_numbers<[1], [1], [0], [0], [0, 0, 1, 0], [], []>} : vector<16x32xbf16>, vector<16x32xbf16>, vector<16x16xf32> -> vector<16x16xf32>
    %cst_25 = arith.constant 0.176776692 : f32
    %43 = vector.broadcast %cst_25 : f32 to vector<16x16xf32>
    %44 = arith.mulf %42, %43 : vector<16x16xf32>
    %45 = arith.addf %44, %5 : vector<16x16xf32>
    %cst_26 = arith.constant dense<0xFF800000> : vector<16xf32>
    %46 = vector.multi_reduction <maximumf>, %45, %cst_26 [1] : vector<16x16xf32> to vector<16xf32>
    %47 = vector.shape_cast %46 : vector<16xf32> to vector<16x1xf32>
    %48 = vector.broadcast %47 : vector<16x1xf32> to vector<16x16xf32>
    %49 = arith.subf %45, %48 : vector<16x16xf32>
    %50 = math.exp %49 : vector<16x16xf32>
    %cst_27 = arith.constant dense<0.000000e+00> : vector<16xf32>
    %51 = vector.multi_reduction <add>, %50, %cst_27 [1] : vector<16x16xf32> to vector<16xf32>
    %52 = vector.shape_cast %51 : vector<16xf32> to vector<16x1xf32>
    %53 = tpu.reciprocal %52 {approx = true} : vector<16x1xf32> -> vector<16x1xf32>
    %54 = vector.broadcast %53 : vector<16x1xf32> to vector<16x16xf32>
    %55 = arith.mulf %50, %54 : vector<16x16xf32>
    %56 = arith.truncf %55 : vector<16x16xf32> to vector<16x16xbf16>
    %cst_28 = arith.constant dense<0.000000e+00> : vector<16x32xf32>
    %57 = tpu.matmul %56, %41, %cst_28 {dimension_numbers = #tpu.dot_dimension_numbers<[1], [0], [0], [1], [0, 0, 1, 1], [], []>} : vector<16x16xbf16>, vector<16x32xbf16>, vector<16x32xf32> -> vector<16x32xf32>
    %58 = arith.truncf %57 : vector<16x32xf32> to vector<16x32xbf16>
    %c0_29 = arith.constant 0 : index
    %c32_30 = arith.constant 32 : index
    %59 = vector.load %arg10[%c0_29, %c32_30] : memref<16x128xbf16, #tpu.memory_space<vmem>>, vector<16x32xbf16>
    tpu.vector_store %arg10[%c0_29, %c32_30], %58 {strides = array<i32>} : memref<16x128xbf16, #tpu.memory_space<vmem>>, vector<16x32xbf16>,
    %c0_31 = arith.constant 0 : index
    %c0_32 = arith.constant 0 : index
    %c64 = arith.constant 64 : index
    %60 = vector.load %arg1[%c0_31, %c0_32, %c64] : memref<1x16x128xf32, #tpu.memory_space<vmem>>, vector<1x16x32xf32>
    %61 = vector.shape_cast %60 : vector<1x16x32xf32> to vector<16x32xf32>
    %62 = arith.truncf %61 : vector<16x32xf32> to vector<16x32xbf16>
    %c0_33 = arith.constant 0 : index
    %c0_34 = arith.constant 0 : index
    %c64_35 = arith.constant 64 : index
    %63 = vector.load %arg2[%c0_33, %c0_34, %c64_35] : memref<1x16x128xf32, #tpu.memory_space<vmem>>, vector<1x16x32xf32>
    %64 = vector.shape_cast %63 : vector<1x16x32xf32> to vector<16x32xf32>
    %65 = arith.truncf %64 : vector<16x32xf32> to vector<16x32xbf16>
    %c0_36 = arith.constant 0 : index
    %c0_37 = arith.constant 0 : index
    %c64_38 = arith.constant 64 : index
    %66 = vector.load %arg3[%c0_36, %c0_37, %c64_38] : memref<1x16x128xf32, #tpu.memory_space<vmem>>, vector<1x16x32xf32>
    %67 = vector.shape_cast %66 : vector<1x16x32xf32> to vector<16x32xf32>
    %68 = arith.truncf %67 : vector<16x32xf32> to vector<16x32xbf16>
    %cst_39 = arith.constant dense<0.000000e+00> : vector<16x16xf32>
    %69 = tpu.matmul %62, %65, %cst_39 {dimension_numbers = #tpu.dot_dimension_numbers<[1], [1], [0], [0], [0, 0, 1, 0], [], []>} : vector<16x32xbf16>, vector<16x32xbf16>, vector<16x16xf32> -> vector<16x16xf32>
    %cst_40 = arith.constant 0.176776692 : f32
    %70 = vector.broadcast %cst_40 : f32 to vector<16x16xf32>
    %71 = arith.mulf %69, %70 : vector<16x16xf32>
    %72 = arith.addf %71, %5 : vector<16x16xf32>
    %cst_41 = arith.constant dense<0xFF800000> : vector<16xf32>
    %73 = vector.multi_reduction <maximumf>, %72, %cst_41 [1] : vector<16x16xf32> to vector<16xf32>
    %74 = vector.shape_cast %73 : vector<16xf32> to vector<16x1xf32>
    %75 = vector.broadcast %74 : vector<16x1xf32> to vector<16x16xf32>
    %76 = arith.subf %72, %75 : vector<16x16xf32>
    %77 = math.exp %76 : vector<16x16xf32>
    %cst_42 = arith.constant dense<0.000000e+00> : vector<16xf32>
    %78 = vector.multi_reduction <add>, %77, %cst_42 [1] : vector<16x16xf32> to vector<16xf32>
    %79 = vector.shape_cast %78 : vector<16xf32> to vector<16x1xf32>
    %80 = tpu.reciprocal %79 {approx = true} : vector<16x1xf32> -> vector<16x1xf32>
    %81 = vector.broadcast %80 : vector<16x1xf32> to vector<16x16xf32>
    %82 = arith.mulf %77, %81 : vector<16x16xf32>
    %83 = arith.truncf %82 : vector<16x16xf32> to vector<16x16xbf16>
    %cst_43 = arith.constant dense<0.000000e+00> : vector<16x32xf32>
    %84 = tpu.matmul %83, %68, %cst_43 {dimension_numbers = #tpu.dot_dimension_numbers<[1], [0], [0], [1], [0, 0, 1, 1], [], []>} : vector<16x16xbf16>, vector<16x32xbf16>, vector<16x32xf32> -> vector<16x32xf32>
    %85 = arith.truncf %84 : vector<16x32xf32> to vector<16x32xbf16>
    %c0_44 = arith.constant 0 : index
    %c64_45 = arith.constant 64 : index
    %86 = vector.load %arg10[%c0_44, %c64_45] : memref<16x128xbf16, #tpu.memory_space<vmem>>, vector<16x32xbf16>
    tpu.vector_store %arg10[%c0_44, %c64_45], %85 {strides = array<i32>} : memref<16x128xbf16, #tpu.memory_space<vmem>>, vector<16x32xbf16>,
    %c0_46 = arith.constant 0 : index
    %c0_47 = arith.constant 0 : index
    %c96 = arith.constant 96 : index
    %87 = vector.load %arg1[%c0_46, %c0_47, %c96] : memref<1x16x128xf32, #tpu.memory_space<vmem>>, vector<1x16x32xf32>
    %88 = vector.shape_cast %87 : vector<1x16x32xf32> to vector<16x32xf32>
    %89 = arith.truncf %88 : vector<16x32xf32> to vector<16x32xbf16>
    %c0_48 = arith.constant 0 : index
    %c0_49 = arith.constant 0 : index
    %c96_50 = arith.constant 96 : index
    %90 = vector.load %arg2[%c0_48, %c0_49, %c96_50] : memref<1x16x128xf32, #tpu.memory_space<vmem>>, vector<1x16x32xf32>
    %91 = vector.shape_cast %90 : vector<1x16x32xf32> to vector<16x32xf32>
    %92 = arith.truncf %91 : vector<16x32xf32> to vector<16x32xbf16>
    %c0_51 = arith.constant 0 : index
    %c0_52 = arith.constant 0 : index
    %c96_53 = arith.constant 96 : index
    %93 = vector.load %arg3[%c0_51, %c0_52, %c96_53] : memref<1x16x128xf32, #tpu.memory_space<vmem>>, vector<1x16x32xf32>
    %94 = vector.shape_cast %93 : vector<1x16x32xf32> to vector<16x32xf32>
    %95 = arith.truncf %94 : vector<16x32xf32> to vector<16x32xbf16>
    %cst_54 = arith.constant dense<0.000000e+00> : vector<16x16xf32>
    %96 = tpu.matmul %89, %92, %cst_54 {dimension_numbers = #tpu.dot_dimension_numbers<[1], [1], [0], [0], [0, 0, 1, 0], [], []>} : vector<16x32xbf16>, vector<16x32xbf16>, vector<16x16xf32> -> vector<16x16xf32>
    %cst_55 = arith.constant 0.176776692 : f32
    %97 = vector.broadcast %cst_55 : f32 to vector<16x16xf32>
    %98 = arith.mulf %96, %97 : vector<16x16xf32>
    %99 = arith.addf %98, %5 : vector<16x16xf32>
    %cst_56 = arith.constant dense<0xFF800000> : vector<16xf32>
    %100 = vector.multi_reduction <maximumf>, %99, %cst_56 [1] : vector<16x16xf32> to vector<16xf32>
    %101 = vector.shape_cast %100 : vector<16xf32> to vector<16x1xf32>
    %102 = vector.broadcast %101 : vector<16x1xf32> to vector<16x16xf32>
    %103 = arith.subf %99, %102 : vector<16x16xf32>
    %104 = math.exp %103 : vector<16x16xf32>
    %cst_57 = arith.constant dense<0.000000e+00> : vector<16xf32>
    %105 = vector.multi_reduction <add>, %104, %cst_57 [1] : vector<16x16xf32> to vector<16xf32>
    %106 = vector.shape_cast %105 : vector<16xf32> to vector<16x1xf32>
    %107 = tpu.reciprocal %106 {approx = true} : vector<16x1xf32> -> vector<16x1xf32>
    %108 = vector.broadcast %107 : vector<16x1xf32> to vector<16x16xf32>
    %109 = arith.mulf %104, %108 : vector<16x16xf32>
    %110 = arith.truncf %109 : vector<16x16xf32> to vector<16x16xbf16>
    %cst_58 = arith.constant dense<0.000000e+00> : vector<16x32xf32>
    %111 = tpu.matmul %110, %95, %cst_58 {dimension_numbers = #tpu.dot_dimension_numbers<[1], [0], [0], [1], [0, 0, 1, 1], [], []>} : vector<16x16xbf16>, vector<16x32xbf16>, vector<16x32xf32> -> vector<16x32xf32>
    %112 = arith.truncf %111 : vector<16x32xf32> to vector<16x32xbf16>
    %c0_59 = arith.constant 0 : index
    %c96_60 = arith.constant 96 : index
    %113 = vector.load %arg10[%c0_59, %c96_60] : memref<16x128xbf16, #tpu.memory_space<vmem>>, vector<16x32xbf16>
    tpu.vector_store %arg10[%c0_59, %c96_60], %112 {strides = array<i32>} : memref<16x128xbf16, #tpu.memory_space<vmem>>, vector<16x32xbf16>,
    %c0_61 = arith.constant 0 : index
    %c0_62 = arith.constant 0 : index
    %114 = vector.load %arg10[%c0_61, %c0_62] : memref<16x128xbf16, #tpu.memory_space<vmem>>, vector<16x128xbf16>
    %c0_63 = arith.constant 0 : index
    %c0_64 = arith.constant 0 : index
    %115 = vector.load %arg4[%c0_63, %c0_64] : memref<128x128xbf16, #tpu.memory_space<vmem>>, vector<128x128xbf16>
    %cst_65 = arith.constant dense<0.000000e+00> : vector<16x128xf32>
    %116 = tpu.matmul %114, %115, %cst_65 {dimension_numbers = #tpu.dot_dimension_numbers<[1], [0], [0], [1], [0, 0, 1, 1], [], []>} : vector<16x128xbf16>, vector<128x128xbf16>, vector<16x128xf32> -> vector<16x128xf32>
    %c0_66 = arith.constant 0 : index
    %c0_67 = arith.constant 0 : index
    %117 = vector.load %arg5[%c0_66, %c0_67] : memref<1x128xf32, #tpu.memory_space<vmem>>, vector<1x128xf32>
    %118 = vector.broadcast %117 : vector<1x128xf32> to vector<16x128xf32>
    %119 = arith.addf %116, %118 : vector<16x128xf32>
    %c0_68 = arith.constant 0 : index
    %c0_69 = arith.constant 0 : index
    %c0_70 = arith.constant 0 : index
    %120 = vector.load %arg6[%c0_68, %c0_69, %c0_70] : memref<1x16x128xf32, #tpu.memory_space<vmem>>, vector<1x16x128xf32>
    %121 = vector.shape_cast %120 : vector<1x16x128xf32> to vector<16x128xf32>
    %122 = arith.addf %119, %121 : vector<16x128xf32>
    %c0_71 = arith.constant 0 : index
    %c0_72 = arith.constant 0 : index
    %123 = vector.load %arg7[%c0_71, %c0_72] : memref<1x128xf32, #tpu.memory_space<vmem>>, vector<1x128xf32>
    %c0_73 = arith.constant 0 : index
    %c0_74 = arith.constant 0 : index
    %124 = vector.load %arg8[%c0_73, %c0_74] : memref<1x128xf32, #tpu.memory_space<vmem>>, vector<1x128xf32>
    %cst_75 = arith.constant dense<0.000000e+00> : vector<16xf32>
    %125 = vector.multi_reduction <add>, %122, %cst_75 [1] : vector<16x128xf32> to vector<16xf32>
    %126 = vector.shape_cast %125 : vector<16xf32> to vector<16x1xf32>
    %cst_76 = arith.constant 7.812500e-03 : f32
    %127 = vector.broadcast %cst_76 : f32 to vector<16x1xf32>
    %128 = arith.mulf %126, %127 : vector<16x1xf32>
    %129 = arith.mulf %122, %122 : vector<16x128xf32>
    %cst_77 = arith.constant dense<0.000000e+00> : vector<16xf32>
    %130 = vector.multi_reduction <add>, %129, %cst_77 [1] : vector<16x128xf32> to vector<16xf32>
    %131 = vector.shape_cast %130 : vector<16xf32> to vector<16x1xf32>
    %cst_78 = arith.constant 7.812500e-03 : f32
    %132 = vector.broadcast %cst_78 : f32 to vector<16x1xf32>
    %133 = arith.mulf %131, %132 : vector<16x1xf32>
    %134 = arith.mulf %128, %128 : vector<16x1xf32>
    %135 = arith.subf %133, %134 : vector<16x1xf32>
    %cst_79 = arith.constant 0.000000e+00 : f32
    %136 = vector.broadcast %cst_79 : f32 to vector<16x1xf32>
    %137 = arith.maximumf %135, %136 : vector<16x1xf32>
    %138 = vector.broadcast %128 : vector<16x1xf32> to vector<16x128xf32>
    %139 = arith.subf %122, %138 : vector<16x128xf32>
    %cst_80 = arith.constant 9.99999974E-6 : f32
    %140 = vector.broadcast %cst_80 : f32 to vector<16x1xf32>
    %141 = arith.addf %137, %140 : vector<16x1xf32>
    %142 = math.rsqrt %141 : vector<16x1xf32>
    %143 = vector.broadcast %142 : vector<16x1xf32> to vector<16x128xf32>
    %144 = arith.mulf %139, %143 : vector<16x128xf32>
    %145 = vector.broadcast %123 : vector<1x128xf32> to vector<16x128xf32>
    %146 = arith.mulf %144, %145 : vector<16x128xf32>
    %147 = vector.broadcast %124 : vector<1x128xf32> to vector<16x128xf32>
    %148 = arith.addf %146, %147 : vector<16x128xf32>
    %c0_81 = arith.constant 0 : index
    %c0_82 = arith.constant 0 : index
    %c0_83 = arith.constant 0 : index
    %149 = vector.load %arg9[%c0_81, %c0_82, %c0_83] : memref<1x16x128xf32, #tpu.memory_space<vmem>>, vector<1x16x128xf32>
    %150 = vector.shape_cast %149 : vector<1x16x128xf32> to vector<16x128xf32>
    %151 = vector.shape_cast %148 : vector<16x128xf32> to vector<1x16x128xf32>
    tpu.vector_store %arg9[%c0_81, %c0_82, %c0_83], %151 {strides = array<i32>} : memref<1x16x128xf32, #tpu.memory_space<vmem>>, vector<1x16x128xf32>,
    return
  }
  func.func @transform_0(%arg0: i32) -> (i32, i32, i32) {
    %c0_i32 = arith.constant 0 : i32
    %c0_i32_0 = arith.constant 0 : i32
    %c0_i32_1 = arith.constant 0 : i32
    return %arg0, %c0_i32, %c0_i32_0 : i32, i32, i32
  }
  func.func @transform_1(%arg0: i32) -> (i32, i32, i32) {
    %c0_i32 = arith.constant 0 : i32
    %c1_i32 = arith.constant 1 : i32
    %c0_i32_0 = arith.constant 0 : i32
    return %arg0, %c0_i32, %c1_i32 : i32, i32, i32
  }
  func.func @transform_2(%arg0: i32) -> (i32, i32, i32) {
    %c0_i32 = arith.constant 0 : i32
    %c2_i32 = arith.constant 2 : i32
    %c0_i32_0 = arith.constant 0 : i32
    return %arg0, %c0_i32, %c2_i32 : i32, i32, i32
  }
  func.func @transform_3(%arg0: i32) -> (i32, i32) {
    %c0_i32 = arith.constant 0 : i32
    %c0_i32_0 = arith.constant 0 : i32
    %c0_i32_1 = arith.constant 0 : i32
    return %c0_i32, %c0_i32_0 : i32, i32
  }
  func.func @transform_4(%arg0: i32) -> (i32, i32) {
    %c0_i32 = arith.constant 0 : i32
    %c0_i32_0 = arith.constant 0 : i32
    %c0_i32_1 = arith.constant 0 : i32
    return %c0_i32, %c0_i32_0 : i32, i32
  }
  func.func @transform_5(%arg0: i32) -> (i32, i32, i32) {
    %c0_i32 = arith.constant 0 : i32
    %c0_i32_0 = arith.constant 0 : i32
    %c0_i32_1 = arith.constant 0 : i32
    return %arg0, %c0_i32, %c0_i32_0 : i32, i32, i32
  }
  func.func @transform_6(%arg0: i32) -> (i32, i32) {
    %c0_i32 = arith.constant 0 : i32
    %c0_i32_0 = arith.constant 0 : i32
    %c0_i32_1 = arith.constant 0 : i32
    return %c0_i32, %c0_i32_0 : i32, i32
  }
  func.func @transform_7(%arg0: i32) -> (i32, i32) {
    %c0_i32 = arith.constant 0 : i32
    %c0_i32_0 = arith.constant 0 : i32
    %c0_i32_1 = arith.constant 0 : i32
    return %c0_i32, %c0_i32_0 : i32, i32
  }
  func.func @transform_8(%arg0: i32) -> (i32, i32, i32) {
    %c0_i32 = arith.constant 0 : i32
    %c0_i32_0 = arith.constant 0 : i32
    %c0_i32_1 = arith.constant 0 : i32
    return %arg0, %c0_i32, %c0_i32_0 : i32, i32, i32
  }
}

module attributes {stable_mosaic.version = 11 : i64} {
  func.func @_matmul_kernel(%arg0: i32, %arg1: i32, %arg2: i32, %arg3: memref<32x128xf32, #tpu.memory_space<vmem>>, %arg4: memref<128x384xbf16, #tpu.memory_space<vmem>>, %arg5: memref<1x384xf32, #tpu.memory_space<vmem>>, %arg6: memref<32x384xf32, #tpu.memory_space<vmem>>, %arg7: memref<32x384xf32, #tpu.memory_space<vmem>>) attributes {dimension_semantics = [#tpu.dimension_semantics<parallel>, #tpu.dimension_semantics<parallel>, #tpu.dimension_semantics<arbitrary>], iteration_bounds = array<i64: 1, 1, 1>, scalar_prefetch = 0 : i64, scratch_operands = 1 : i64, tpu.core_type = #tpu.core_type<tc>, window_params = [{transform_indices = @transform_0, window_bounds = array<i64: 32, 128>}, {transform_indices = @transform_1, window_bounds = array<i64: 128, 384>}, {transform_indices = @transform_2, window_bounds = array<i64: 1, 384>}, {transform_indices = @transform_3, window_bounds = array<i64: 32, 384>}]} {
    %c0_i32 = arith.constant 0 : i32
    %0 = arith.cmpi eq, %arg2, %c0_i32 : i32
    %1 = arith.extui %0 : i1 to i32
    %c0_i32_0 = arith.constant 0 : i32
    %2 = arith.cmpi ne, %1, %c0_i32_0 : i32
    scf.if %2 {
      %cst_10 = arith.constant 0.000000e+00 : f32
      %13 = vector.broadcast %cst_10 : f32 to vector<32x384xf32>
      %c0_11 = arith.constant 0 : index
      %c0_12 = arith.constant 0 : index
      %14 = vector.load %arg7[%c0_11, %c0_12] : memref<32x384xf32, #tpu.memory_space<vmem>>, vector<32x384xf32>
      tpu.vector_store %arg7[%c0_11, %c0_12], %13 {strides = array<i32>} : memref<32x384xf32, #tpu.memory_space<vmem>>, vector<32x384xf32>,
    } else {
    }
    %c0 = arith.constant 0 : index
    %c0_1 = arith.constant 0 : index
    %3 = vector.load %arg7[%c0, %c0_1] : memref<32x384xf32, #tpu.memory_space<vmem>>, vector<32x384xf32>
    %c0_2 = arith.constant 0 : index
    %c0_3 = arith.constant 0 : index
    %4 = vector.load %arg3[%c0_2, %c0_3] : memref<32x128xf32, #tpu.memory_space<vmem>>, vector<32x128xf32>
    %5 = arith.truncf %4 : vector<32x128xf32> to vector<32x128xbf16>
    %c0_4 = arith.constant 0 : index
    %c0_5 = arith.constant 0 : index
    %6 = vector.load %arg4[%c0_4, %c0_5] : memref<128x384xbf16, #tpu.memory_space<vmem>>, vector<128x384xbf16>
    %cst = arith.constant dense<0.000000e+00> : vector<32x384xf32>
    %7 = tpu.matmul %5, %6, %cst {dimension_numbers = #tpu.dot_dimension_numbers<[1], [0], [0], [1], [0, 0, 1, 1], [], []>} : vector<32x128xbf16>, vector<128x384xbf16>, vector<32x384xf32> -> vector<32x384xf32>
    %8 = arith.addf %3, %7 : vector<32x384xf32>
    %c0_6 = arith.constant 0 : index
    %c0_7 = arith.constant 0 : index
    %9 = vector.load %arg7[%c0_6, %c0_7] : memref<32x384xf32, #tpu.memory_space<vmem>>, vector<32x384xf32>
    tpu.vector_store %arg7[%c0_6, %c0_7], %8 {strides = array<i32>} : memref<32x384xf32, #tpu.memory_space<vmem>>, vector<32x384xf32>,
    %c0_i32_8 = arith.constant 0 : i32
    %10 = arith.cmpi eq, %arg2, %c0_i32_8 : i32
    %11 = arith.extui %10 : i1 to i32
    %c0_i32_9 = arith.constant 0 : i32
    %12 = arith.cmpi ne, %11, %c0_i32_9 : i32
    scf.if %12 {
      %c0_10 = arith.constant 0 : index
      %c0_11 = arith.constant 0 : index
      %13 = vector.load %arg7[%c0_10, %c0_11] : memref<32x384xf32, #tpu.memory_space<vmem>>, vector<32x384xf32>
      %c0_12 = arith.constant 0 : index
      %c0_13 = arith.constant 0 : index
      %14 = vector.load %arg5[%c0_12, %c0_13] : memref<1x384xf32, #tpu.memory_space<vmem>>, vector<1x384xf32>
      %15 = vector.broadcast %14 : vector<1x384xf32> to vector<32x384xf32>
      %16 = arith.addf %13, %15 : vector<32x384xf32>
      %c0_14 = arith.constant 0 : index
      %c0_15 = arith.constant 0 : index
      %17 = vector.load %arg6[%c0_14, %c0_15] : memref<32x384xf32, #tpu.memory_space<vmem>>, vector<32x384xf32>
      tpu.vector_store %arg6[%c0_14, %c0_15], %16 {strides = array<i32>} : memref<32x384xf32, #tpu.memory_space<vmem>>, vector<32x384xf32>,
    } else {
    }
    return
  }
  func.func @transform_0(%arg0: i32, %arg1: i32, %arg2: i32) -> (i32, i32) {
    %c0_i32 = arith.constant 0 : i32
    return %arg0, %arg2 : i32, i32
  }
  func.func @transform_1(%arg0: i32, %arg1: i32, %arg2: i32) -> (i32, i32) {
    %c0_i32 = arith.constant 0 : i32
    return %arg2, %arg1 : i32, i32
  }
  func.func @transform_2(%arg0: i32, %arg1: i32, %arg2: i32) -> (i32, i32) {
    %c0_i32 = arith.constant 0 : i32
    %c0_i32_0 = arith.constant 0 : i32
    return %c0_i32, %arg1 : i32, i32
  }
  func.func @transform_3(%arg0: i32, %arg1: i32, %arg2: i32) -> (i32, i32) {
    %c0_i32 = arith.constant 0 : i32
    return %arg0, %arg1 : i32, i32
  }
}

module attributes {stable_mosaic.version = 11 : i64} {
  func.func @_ffn_addln_kernel(%arg0: i32, %arg1: i32, %arg2: memref<32x128xf32, #tpu.memory_space<vmem>>, %arg3: memref<128x256xbf16, #tpu.memory_space<vmem>>, %arg4: memref<1x256xf32, #tpu.memory_space<vmem>>, %arg5: memref<256x128xbf16, #tpu.memory_space<vmem>>, %arg6: memref<1x128xf32, #tpu.memory_space<vmem>>, %arg7: memref<1x128xf32, #tpu.memory_space<vmem>>, %arg8: memref<1x128xf32, #tpu.memory_space<vmem>>, %arg9: memref<32x128xf32, #tpu.memory_space<vmem>>, %arg10: memref<32x128xf32, #tpu.memory_space<vmem>>) attributes {dimension_semantics = [#tpu.dimension_semantics<parallel>, #tpu.dimension_semantics<arbitrary>], iteration_bounds = array<i64: 1, 1>, scalar_prefetch = 0 : i64, scratch_operands = 1 : i64, tpu.core_type = #tpu.core_type<tc>, window_params = [{transform_indices = @transform_0, window_bounds = array<i64: 32, 128>}, {transform_indices = @transform_1, window_bounds = array<i64: 128, 256>}, {transform_indices = @transform_2, window_bounds = array<i64: 1, 256>}, {transform_indices = @transform_3, window_bounds = array<i64: 256, 128>}, {pipeline_mode = #tpu.pipeline_mode<synchronous>, transform_indices = @transform_4, window_bounds = array<i64: 1, 128>}, {pipeline_mode = #tpu.pipeline_mode<synchronous>, transform_indices = @transform_5, window_bounds = array<i64: 1, 128>}, {pipeline_mode = #tpu.pipeline_mode<synchronous>, transform_indices = @transform_6, window_bounds = array<i64: 1, 128>}, {transform_indices = @transform_7, window_bounds = array<i64: 32, 128>}]} {
    %c0_i32 = arith.constant 0 : i32
    %0 = arith.cmpi eq, %arg1, %c0_i32 : i32
    %1 = arith.extui %0 : i1 to i32
    %c0_i32_0 = arith.constant 0 : i32
    %2 = arith.cmpi ne, %1, %c0_i32_0 : i32
    scf.if %2 {
      %cst_16 = arith.constant 0.000000e+00 : f32
      %21 = vector.broadcast %cst_16 : f32 to vector<32x128xf32>
      %c0_17 = arith.constant 0 : index
      %c0_18 = arith.constant 0 : index
      %22 = vector.load %arg10[%c0_17, %c0_18] : memref<32x128xf32, #tpu.memory_space<vmem>>, vector<32x128xf32>
      tpu.vector_store %arg10[%c0_17, %c0_18], %21 {strides = array<i32>} : memref<32x128xf32, #tpu.memory_space<vmem>>, vector<32x128xf32>,
    } else {
    }
    %c0 = arith.constant 0 : index
    %c0_1 = arith.constant 0 : index
    %3 = vector.load %arg2[%c0, %c0_1] : memref<32x128xf32, #tpu.memory_space<vmem>>, vector<32x128xf32>
    %4 = arith.truncf %3 : vector<32x128xf32> to vector<32x128xbf16>
    %c0_2 = arith.constant 0 : index
    %c0_3 = arith.constant 0 : index
    %5 = vector.load %arg3[%c0_2, %c0_3] : memref<128x256xbf16, #tpu.memory_space<vmem>>, vector<128x256xbf16>
    %cst = arith.constant dense<0.000000e+00> : vector<32x256xf32>
    %6 = tpu.matmul %4, %5, %cst {dimension_numbers = #tpu.dot_dimension_numbers<[1], [0], [0], [1], [0, 0, 1, 1], [], []>} : vector<32x128xbf16>, vector<128x256xbf16>, vector<32x256xf32> -> vector<32x256xf32>
    %c0_4 = arith.constant 0 : index
    %c0_5 = arith.constant 0 : index
    %7 = vector.load %arg4[%c0_4, %c0_5] : memref<1x256xf32, #tpu.memory_space<vmem>>, vector<1x256xf32>
    %8 = vector.broadcast %7 : vector<1x256xf32> to vector<32x256xf32>
    %9 = arith.addf %6, %8 : vector<32x256xf32>
    %cst_6 = arith.constant 0.000000e+00 : f32
    %10 = vector.broadcast %cst_6 : f32 to vector<32x256xf32>
    %11 = arith.maximumf %9, %10 : vector<32x256xf32>
    %c0_7 = arith.constant 0 : index
    %c0_8 = arith.constant 0 : index
    %12 = vector.load %arg10[%c0_7, %c0_8] : memref<32x128xf32, #tpu.memory_space<vmem>>, vector<32x128xf32>
    %13 = arith.truncf %11 : vector<32x256xf32> to vector<32x256xbf16>
    %c0_9 = arith.constant 0 : index
    %c0_10 = arith.constant 0 : index
    %14 = vector.load %arg5[%c0_9, %c0_10] : memref<256x128xbf16, #tpu.memory_space<vmem>>, vector<256x128xbf16>
    %cst_11 = arith.constant dense<0.000000e+00> : vector<32x128xf32>
    %15 = tpu.matmul %13, %14, %cst_11 {dimension_numbers = #tpu.dot_dimension_numbers<[1], [0], [0], [1], [0, 0, 1, 1], [], []>} : vector<32x256xbf16>, vector<256x128xbf16>, vector<32x128xf32> -> vector<32x128xf32>
    %16 = arith.addf %12, %15 : vector<32x128xf32>
    %c0_12 = arith.constant 0 : index
    %c0_13 = arith.constant 0 : index
    %17 = vector.load %arg10[%c0_12, %c0_13] : memref<32x128xf32, #tpu.memory_space<vmem>>, vector<32x128xf32>
    tpu.vector_store %arg10[%c0_12, %c0_13], %16 {strides = array<i32>} : memref<32x128xf32, #tpu.memory_space<vmem>>, vector<32x128xf32>,
    %c0_i32_14 = arith.constant 0 : i32
    %18 = arith.cmpi eq, %arg1, %c0_i32_14 : i32
    %19 = arith.extui %18 : i1 to i32
    %c0_i32_15 = arith.constant 0 : i32
    %20 = arith.cmpi ne, %19, %c0_i32_15 : i32
    scf.if %20 {
      %c0_16 = arith.constant 0 : index
      %c0_17 = arith.constant 0 : index
      %21 = vector.load %arg10[%c0_16, %c0_17] : memref<32x128xf32, #tpu.memory_space<vmem>>, vector<32x128xf32>
      %c0_18 = arith.constant 0 : index
      %c0_19 = arith.constant 0 : index
      %22 = vector.load %arg6[%c0_18, %c0_19] : memref<1x128xf32, #tpu.memory_space<vmem>>, vector<1x128xf32>
      %23 = vector.broadcast %22 : vector<1x128xf32> to vector<32x128xf32>
      %24 = arith.addf %21, %23 : vector<32x128xf32>
      %c0_20 = arith.constant 0 : index
      %c0_21 = arith.constant 0 : index
      %25 = vector.load %arg2[%c0_20, %c0_21] : memref<32x128xf32, #tpu.memory_space<vmem>>, vector<32x128xf32>
      %26 = arith.addf %24, %25 : vector<32x128xf32>
      %c0_22 = arith.constant 0 : index
      %c0_23 = arith.constant 0 : index
      %27 = vector.load %arg7[%c0_22, %c0_23] : memref<1x128xf32, #tpu.memory_space<vmem>>, vector<1x128xf32>
      %c0_24 = arith.constant 0 : index
      %c0_25 = arith.constant 0 : index
      %28 = vector.load %arg8[%c0_24, %c0_25] : memref<1x128xf32, #tpu.memory_space<vmem>>, vector<1x128xf32>
      %cst_26 = arith.constant dense<0.000000e+00> : vector<32xf32>
      %29 = vector.multi_reduction <add>, %26, %cst_26 [1] : vector<32x128xf32> to vector<32xf32>
      %30 = vector.shape_cast %29 : vector<32xf32> to vector<32x1xf32>
      %cst_27 = arith.constant 7.812500e-03 : f32
      %31 = vector.broadcast %cst_27 : f32 to vector<32x1xf32>
      %32 = arith.mulf %30, %31 : vector<32x1xf32>
      %33 = arith.mulf %26, %26 : vector<32x128xf32>
      %cst_28 = arith.constant dense<0.000000e+00> : vector<32xf32>
      %34 = vector.multi_reduction <add>, %33, %cst_28 [1] : vector<32x128xf32> to vector<32xf32>
      %35 = vector.shape_cast %34 : vector<32xf32> to vector<32x1xf32>
      %cst_29 = arith.constant 7.812500e-03 : f32
      %36 = vector.broadcast %cst_29 : f32 to vector<32x1xf32>
      %37 = arith.mulf %35, %36 : vector<32x1xf32>
      %38 = arith.mulf %32, %32 : vector<32x1xf32>
      %39 = arith.subf %37, %38 : vector<32x1xf32>
      %cst_30 = arith.constant 0.000000e+00 : f32
      %40 = vector.broadcast %cst_30 : f32 to vector<32x1xf32>
      %41 = arith.maximumf %39, %40 : vector<32x1xf32>
      %42 = vector.broadcast %32 : vector<32x1xf32> to vector<32x128xf32>
      %43 = arith.subf %26, %42 : vector<32x128xf32>
      %cst_31 = arith.constant 9.99999974E-6 : f32
      %44 = vector.broadcast %cst_31 : f32 to vector<32x1xf32>
      %45 = arith.addf %41, %44 : vector<32x1xf32>
      %46 = math.rsqrt %45 : vector<32x1xf32>
      %47 = vector.broadcast %46 : vector<32x1xf32> to vector<32x128xf32>
      %48 = arith.mulf %43, %47 : vector<32x128xf32>
      %49 = vector.broadcast %27 : vector<1x128xf32> to vector<32x128xf32>
      %50 = arith.mulf %48, %49 : vector<32x128xf32>
      %51 = vector.broadcast %28 : vector<1x128xf32> to vector<32x128xf32>
      %52 = arith.addf %50, %51 : vector<32x128xf32>
      %c0_32 = arith.constant 0 : index
      %c0_33 = arith.constant 0 : index
      %53 = vector.load %arg9[%c0_32, %c0_33] : memref<32x128xf32, #tpu.memory_space<vmem>>, vector<32x128xf32>
      tpu.vector_store %arg9[%c0_32, %c0_33], %52 {strides = array<i32>} : memref<32x128xf32, #tpu.memory_space<vmem>>, vector<32x128xf32>,
    } else {
    }
    return
  }
  func.func @transform_0(%arg0: i32, %arg1: i32) -> (i32, i32) {
    %c0_i32 = arith.constant 0 : i32
    %c0_i32_0 = arith.constant 0 : i32
    return %arg0, %c0_i32 : i32, i32
  }
  func.func @transform_1(%arg0: i32, %arg1: i32) -> (i32, i32) {
    %c0_i32 = arith.constant 0 : i32
    %c0_i32_0 = arith.constant 0 : i32
    return %c0_i32, %arg1 : i32, i32
  }
  func.func @transform_2(%arg0: i32, %arg1: i32) -> (i32, i32) {
    %c0_i32 = arith.constant 0 : i32
    %c0_i32_0 = arith.constant 0 : i32
    return %c0_i32, %arg1 : i32, i32
  }
  func.func @transform_3(%arg0: i32, %arg1: i32) -> (i32, i32) {
    %c0_i32 = arith.constant 0 : i32
    %c0_i32_0 = arith.constant 0 : i32
    return %arg1, %c0_i32 : i32, i32
  }
  func.func @transform_4(%arg0: i32, %arg1: i32) -> (i32, i32) {
    %c0_i32 = arith.constant 0 : i32
    %c0_i32_0 = arith.constant 0 : i32
    %c0_i32_1 = arith.constant 0 : i32
    return %c0_i32, %c0_i32_0 : i32, i32
  }
  func.func @transform_5(%arg0: i32, %arg1: i32) -> (i32, i32) {
    %c0_i32 = arith.constant 0 : i32
    %c0_i32_0 = arith.constant 0 : i32
    %c0_i32_1 = arith.constant 0 : i32
    return %c0_i32, %c0_i32_0 : i32, i32
  }
  func.func @transform_6(%arg0: i32, %arg1: i32) -> (i32, i32) {
    %c0_i32 = arith.constant 0 : i32
    %c0_i32_0 = arith.constant 0 : i32
    %c0_i32_1 = arith.constant 0 : i32
    return %c0_i32, %c0_i32_0 : i32, i32
  }
  func.func @transform_7(%arg0: i32, %arg1: i32) -> (i32, i32) {
    %c0_i32 = arith.constant 0 : i32
    %c0_i32_0 = arith.constant 0 : i32
    return %arg0, %c0_i32 : i32, i32
  }
}

module attributes {stable_mosaic.version = 11 : i64} {
  func.func @_mha_addln_kernel(%arg0: i32, %arg1: memref<1x16x128xf32, #tpu.memory_space<vmem>>, %arg2: memref<1x16x128xf32, #tpu.memory_space<vmem>>, %arg3: memref<1x16x128xf32, #tpu.memory_space<vmem>>, %arg4: memref<128x128xbf16, #tpu.memory_space<vmem>>, %arg5: memref<1x128xf32, #tpu.memory_space<vmem>>, %arg6: memref<1x16x128xf32, #tpu.memory_space<vmem>>, %arg7: memref<1x128xf32, #tpu.memory_space<vmem>>, %arg8: memref<1x128xf32, #tpu.memory_space<vmem>>, %arg9: memref<1x16x128xf32, #tpu.memory_space<vmem>>, %arg10: memref<16x128xbf16, #tpu.memory_space<vmem>>) attributes {dimension_semantics = [#tpu.dimension_semantics<parallel>], iteration_bounds = array<i64: 2>, scalar_prefetch = 0 : i64, scratch_operands = 1 : i64, tpu.core_type = #tpu.core_type<tc>, window_params = [{transform_indices = @transform_0, window_bounds = array<i64: 1, 16, 128>}, {transform_indices = @transform_1, window_bounds = array<i64: 1, 16, 128>}, {transform_indices = @transform_2, window_bounds = array<i64: 1, 16, 128>}, {pipeline_mode = #tpu.pipeline_mode<synchronous>, transform_indices = @transform_3, window_bounds = array<i64: 128, 128>}, {pipeline_mode = #tpu.pipeline_mode<synchronous>, transform_indices = @transform_4, window_bounds = array<i64: 1, 128>}, {transform_indices = @transform_5, window_bounds = array<i64: 1, 16, 128>}, {pipeline_mode = #tpu.pipeline_mode<synchronous>, transform_indices = @transform_6, window_bounds = array<i64: 1, 128>}, {pipeline_mode = #tpu.pipeline_mode<synchronous>, transform_indices = @transform_7, window_bounds = array<i64: 1, 128>}, {transform_indices = @transform_8, window_bounds = array<i64: 1, 16, 128>}]} {
    %c0 = arith.constant 0 : index
    %c0_0 = arith.constant 0 : index
    %c0_1 = arith.constant 0 : index
    %0 = vector.load %arg1[%c0, %c0_0, %c0_1] : memref<1x16x128xf32, #tpu.memory_space<vmem>>, vector<1x16x32xf32>
    %1 = vector.shape_cast %0 : vector<1x16x32xf32> to vector<16x32xf32>
    %2 = arith.truncf %1 : vector<16x32xf32> to vector<16x32xbf16>
    %c0_2 = arith.constant 0 : index
    %c0_3 = arith.constant 0 : index
    %c0_4 = arith.constant 0 : index
    %3 = vector.load %arg2[%c0_2, %c0_3, %c0_4] : memref<1x16x128xf32, #tpu.memory_space<vmem>>, vector<1x16x32xf32>
    %4 = vector.shape_cast %3 : vector<1x16x32xf32> to vector<16x32xf32>
    %5 = arith.truncf %4 : vector<16x32xf32> to vector<16x32xbf16>
    %c0_5 = arith.constant 0 : index
    %c0_6 = arith.constant 0 : index
    %c0_7 = arith.constant 0 : index
    %6 = vector.load %arg3[%c0_5, %c0_6, %c0_7] : memref<1x16x128xf32, #tpu.memory_space<vmem>>, vector<1x16x32xf32>
    %7 = vector.shape_cast %6 : vector<1x16x32xf32> to vector<16x32xf32>
    %8 = arith.truncf %7 : vector<16x32xf32> to vector<16x32xbf16>
    %cst = arith.constant dense<0.000000e+00> : vector<16x16xf32>
    %9 = tpu.matmul %2, %5, %cst {dimension_numbers = #tpu.dot_dimension_numbers<[1], [1], [0], [0], [0, 0, 1, 0], [], []>} : vector<16x32xbf16>, vector<16x32xbf16>, vector<16x16xf32> -> vector<16x16xf32>
    %cst_8 = arith.constant 0.176776692 : f32
    %10 = vector.broadcast %cst_8 : f32 to vector<16x16xf32>
    %11 = arith.mulf %9, %10 : vector<16x16xf32>
    %cst_9 = arith.constant dense<0xFF800000> : vector<16xf32>
    %12 = vector.multi_reduction <maximumf>, %11, %cst_9 [1] : vector<16x16xf32> to vector<16xf32>
    %13 = vector.shape_cast %12 : vector<16xf32> to vector<16x1xf32>
    %14 = vector.broadcast %13 : vector<16x1xf32> to vector<16x16xf32>
    %15 = arith.subf %11, %14 : vector<16x16xf32>
    %16 = math.exp %15 : vector<16x16xf32>
    %cst_10 = arith.constant dense<0.000000e+00> : vector<16xf32>
    %17 = vector.multi_reduction <add>, %16, %cst_10 [1] : vector<16x16xf32> to vector<16xf32>
    %18 = vector.shape_cast %17 : vector<16xf32> to vector<16x1xf32>
    %19 = tpu.reciprocal %18 {approx = true} : vector<16x1xf32> -> vector<16x1xf32>
    %20 = vector.broadcast %19 : vector<16x1xf32> to vector<16x16xf32>
    %21 = arith.mulf %16, %20 : vector<16x16xf32>
    %22 = arith.truncf %21 : vector<16x16xf32> to vector<16x16xbf16>
    %cst_11 = arith.constant dense<0.000000e+00> : vector<16x32xf32>
    %23 = tpu.matmul %22, %8, %cst_11 {dimension_numbers = #tpu.dot_dimension_numbers<[1], [0], [0], [1], [0, 0, 1, 1], [], []>} : vector<16x16xbf16>, vector<16x32xbf16>, vector<16x32xf32> -> vector<16x32xf32>
    %24 = arith.truncf %23 : vector<16x32xf32> to vector<16x32xbf16>
    %c0_12 = arith.constant 0 : index
    %c0_13 = arith.constant 0 : index
    %25 = vector.load %arg10[%c0_12, %c0_13] : memref<16x128xbf16, #tpu.memory_space<vmem>>, vector<16x32xbf16>
    tpu.vector_store %arg10[%c0_12, %c0_13], %24 {strides = array<i32>} : memref<16x128xbf16, #tpu.memory_space<vmem>>, vector<16x32xbf16>,
    %c0_14 = arith.constant 0 : index
    %c0_15 = arith.constant 0 : index
    %c32 = arith.constant 32 : index
    %26 = vector.load %arg1[%c0_14, %c0_15, %c32] : memref<1x16x128xf32, #tpu.memory_space<vmem>>, vector<1x16x32xf32>
    %27 = vector.shape_cast %26 : vector<1x16x32xf32> to vector<16x32xf32>
    %28 = arith.truncf %27 : vector<16x32xf32> to vector<16x32xbf16>
    %c0_16 = arith.constant 0 : index
    %c0_17 = arith.constant 0 : index
    %c32_18 = arith.constant 32 : index
    %29 = vector.load %arg2[%c0_16, %c0_17, %c32_18] : memref<1x16x128xf32, #tpu.memory_space<vmem>>, vector<1x16x32xf32>
    %30 = vector.shape_cast %29 : vector<1x16x32xf32> to vector<16x32xf32>
    %31 = arith.truncf %30 : vector<16x32xf32> to vector<16x32xbf16>
    %c0_19 = arith.constant 0 : index
    %c0_20 = arith.constant 0 : index
    %c32_21 = arith.constant 32 : index
    %32 = vector.load %arg3[%c0_19, %c0_20, %c32_21] : memref<1x16x128xf32, #tpu.memory_space<vmem>>, vector<1x16x32xf32>
    %33 = vector.shape_cast %32 : vector<1x16x32xf32> to vector<16x32xf32>
    %34 = arith.truncf %33 : vector<16x32xf32> to vector<16x32xbf16>
    %cst_22 = arith.constant dense<0.000000e+00> : vector<16x16xf32>
    %35 = tpu.matmul %28, %31, %cst_22 {dimension_numbers = #tpu.dot_dimension_numbers<[1], [1], [0], [0], [0, 0, 1, 0], [], []>} : vector<16x32xbf16>, vector<16x32xbf16>, vector<16x16xf32> -> vector<16x16xf32>
    %cst_23 = arith.constant 0.176776692 : f32
    %36 = vector.broadcast %cst_23 : f32 to vector<16x16xf32>
    %37 = arith.mulf %35, %36 : vector<16x16xf32>
    %cst_24 = arith.constant dense<0xFF800000> : vector<16xf32>
    %38 = vector.multi_reduction <maximumf>, %37, %cst_24 [1] : vector<16x16xf32> to vector<16xf32>
    %39 = vector.shape_cast %38 : vector<16xf32> to vector<16x1xf32>
    %40 = vector.broadcast %39 : vector<16x1xf32> to vector<16x16xf32>
    %41 = arith.subf %37, %40 : vector<16x16xf32>
    %42 = math.exp %41 : vector<16x16xf32>
    %cst_25 = arith.constant dense<0.000000e+00> : vector<16xf32>
    %43 = vector.multi_reduction <add>, %42, %cst_25 [1] : vector<16x16xf32> to vector<16xf32>
    %44 = vector.shape_cast %43 : vector<16xf32> to vector<16x1xf32>
    %45 = tpu.reciprocal %44 {approx = true} : vector<16x1xf32> -> vector<16x1xf32>
    %46 = vector.broadcast %45 : vector<16x1xf32> to vector<16x16xf32>
    %47 = arith.mulf %42, %46 : vector<16x16xf32>
    %48 = arith.truncf %47 : vector<16x16xf32> to vector<16x16xbf16>
    %cst_26 = arith.constant dense<0.000000e+00> : vector<16x32xf32>
    %49 = tpu.matmul %48, %34, %cst_26 {dimension_numbers = #tpu.dot_dimension_numbers<[1], [0], [0], [1], [0, 0, 1, 1], [], []>} : vector<16x16xbf16>, vector<16x32xbf16>, vector<16x32xf32> -> vector<16x32xf32>
    %50 = arith.truncf %49 : vector<16x32xf32> to vector<16x32xbf16>
    %c0_27 = arith.constant 0 : index
    %c32_28 = arith.constant 32 : index
    %51 = vector.load %arg10[%c0_27, %c32_28] : memref<16x128xbf16, #tpu.memory_space<vmem>>, vector<16x32xbf16>
    tpu.vector_store %arg10[%c0_27, %c32_28], %50 {strides = array<i32>} : memref<16x128xbf16, #tpu.memory_space<vmem>>, vector<16x32xbf16>,
    %c0_29 = arith.constant 0 : index
    %c0_30 = arith.constant 0 : index
    %c64 = arith.constant 64 : index
    %52 = vector.load %arg1[%c0_29, %c0_30, %c64] : memref<1x16x128xf32, #tpu.memory_space<vmem>>, vector<1x16x32xf32>
    %53 = vector.shape_cast %52 : vector<1x16x32xf32> to vector<16x32xf32>
    %54 = arith.truncf %53 : vector<16x32xf32> to vector<16x32xbf16>
    %c0_31 = arith.constant 0 : index
    %c0_32 = arith.constant 0 : index
    %c64_33 = arith.constant 64 : index
    %55 = vector.load %arg2[%c0_31, %c0_32, %c64_33] : memref<1x16x128xf32, #tpu.memory_space<vmem>>, vector<1x16x32xf32>
    %56 = vector.shape_cast %55 : vector<1x16x32xf32> to vector<16x32xf32>
    %57 = arith.truncf %56 : vector<16x32xf32> to vector<16x32xbf16>
    %c0_34 = arith.constant 0 : index
    %c0_35 = arith.constant 0 : index
    %c64_36 = arith.constant 64 : index
    %58 = vector.load %arg3[%c0_34, %c0_35, %c64_36] : memref<1x16x128xf32, #tpu.memory_space<vmem>>, vector<1x16x32xf32>
    %59 = vector.shape_cast %58 : vector<1x16x32xf32> to vector<16x32xf32>
    %60 = arith.truncf %59 : vector<16x32xf32> to vector<16x32xbf16>
    %cst_37 = arith.constant dense<0.000000e+00> : vector<16x16xf32>
    %61 = tpu.matmul %54, %57, %cst_37 {dimension_numbers = #tpu.dot_dimension_numbers<[1], [1], [0], [0], [0, 0, 1, 0], [], []>} : vector<16x32xbf16>, vector<16x32xbf16>, vector<16x16xf32> -> vector<16x16xf32>
    %cst_38 = arith.constant 0.176776692 : f32
    %62 = vector.broadcast %cst_38 : f32 to vector<16x16xf32>
    %63 = arith.mulf %61, %62 : vector<16x16xf32>
    %cst_39 = arith.constant dense<0xFF800000> : vector<16xf32>
    %64 = vector.multi_reduction <maximumf>, %63, %cst_39 [1] : vector<16x16xf32> to vector<16xf32>
    %65 = vector.shape_cast %64 : vector<16xf32> to vector<16x1xf32>
    %66 = vector.broadcast %65 : vector<16x1xf32> to vector<16x16xf32>
    %67 = arith.subf %63, %66 : vector<16x16xf32>
    %68 = math.exp %67 : vector<16x16xf32>
    %cst_40 = arith.constant dense<0.000000e+00> : vector<16xf32>
    %69 = vector.multi_reduction <add>, %68, %cst_40 [1] : vector<16x16xf32> to vector<16xf32>
    %70 = vector.shape_cast %69 : vector<16xf32> to vector<16x1xf32>
    %71 = tpu.reciprocal %70 {approx = true} : vector<16x1xf32> -> vector<16x1xf32>
    %72 = vector.broadcast %71 : vector<16x1xf32> to vector<16x16xf32>
    %73 = arith.mulf %68, %72 : vector<16x16xf32>
    %74 = arith.truncf %73 : vector<16x16xf32> to vector<16x16xbf16>
    %cst_41 = arith.constant dense<0.000000e+00> : vector<16x32xf32>
    %75 = tpu.matmul %74, %60, %cst_41 {dimension_numbers = #tpu.dot_dimension_numbers<[1], [0], [0], [1], [0, 0, 1, 1], [], []>} : vector<16x16xbf16>, vector<16x32xbf16>, vector<16x32xf32> -> vector<16x32xf32>
    %76 = arith.truncf %75 : vector<16x32xf32> to vector<16x32xbf16>
    %c0_42 = arith.constant 0 : index
    %c64_43 = arith.constant 64 : index
    %77 = vector.load %arg10[%c0_42, %c64_43] : memref<16x128xbf16, #tpu.memory_space<vmem>>, vector<16x32xbf16>
    tpu.vector_store %arg10[%c0_42, %c64_43], %76 {strides = array<i32>} : memref<16x128xbf16, #tpu.memory_space<vmem>>, vector<16x32xbf16>,
    %c0_44 = arith.constant 0 : index
    %c0_45 = arith.constant 0 : index
    %c96 = arith.constant 96 : index
    %78 = vector.load %arg1[%c0_44, %c0_45, %c96] : memref<1x16x128xf32, #tpu.memory_space<vmem>>, vector<1x16x32xf32>
    %79 = vector.shape_cast %78 : vector<1x16x32xf32> to vector<16x32xf32>
    %80 = arith.truncf %79 : vector<16x32xf32> to vector<16x32xbf16>
    %c0_46 = arith.constant 0 : index
    %c0_47 = arith.constant 0 : index
    %c96_48 = arith.constant 96 : index
    %81 = vector.load %arg2[%c0_46, %c0_47, %c96_48] : memref<1x16x128xf32, #tpu.memory_space<vmem>>, vector<1x16x32xf32>
    %82 = vector.shape_cast %81 : vector<1x16x32xf32> to vector<16x32xf32>
    %83 = arith.truncf %82 : vector<16x32xf32> to vector<16x32xbf16>
    %c0_49 = arith.constant 0 : index
    %c0_50 = arith.constant 0 : index
    %c96_51 = arith.constant 96 : index
    %84 = vector.load %arg3[%c0_49, %c0_50, %c96_51] : memref<1x16x128xf32, #tpu.memory_space<vmem>>, vector<1x16x32xf32>
    %85 = vector.shape_cast %84 : vector<1x16x32xf32> to vector<16x32xf32>
    %86 = arith.truncf %85 : vector<16x32xf32> to vector<16x32xbf16>
    %cst_52 = arith.constant dense<0.000000e+00> : vector<16x16xf32>
    %87 = tpu.matmul %80, %83, %cst_52 {dimension_numbers = #tpu.dot_dimension_numbers<[1], [1], [0], [0], [0, 0, 1, 0], [], []>} : vector<16x32xbf16>, vector<16x32xbf16>, vector<16x16xf32> -> vector<16x16xf32>
    %cst_53 = arith.constant 0.176776692 : f32
    %88 = vector.broadcast %cst_53 : f32 to vector<16x16xf32>
    %89 = arith.mulf %87, %88 : vector<16x16xf32>
    %cst_54 = arith.constant dense<0xFF800000> : vector<16xf32>
    %90 = vector.multi_reduction <maximumf>, %89, %cst_54 [1] : vector<16x16xf32> to vector<16xf32>
    %91 = vector.shape_cast %90 : vector<16xf32> to vector<16x1xf32>
    %92 = vector.broadcast %91 : vector<16x1xf32> to vector<16x16xf32>
    %93 = arith.subf %89, %92 : vector<16x16xf32>
    %94 = math.exp %93 : vector<16x16xf32>
    %cst_55 = arith.constant dense<0.000000e+00> : vector<16xf32>
    %95 = vector.multi_reduction <add>, %94, %cst_55 [1] : vector<16x16xf32> to vector<16xf32>
    %96 = vector.shape_cast %95 : vector<16xf32> to vector<16x1xf32>
    %97 = tpu.reciprocal %96 {approx = true} : vector<16x1xf32> -> vector<16x1xf32>
    %98 = vector.broadcast %97 : vector<16x1xf32> to vector<16x16xf32>
    %99 = arith.mulf %94, %98 : vector<16x16xf32>
    %100 = arith.truncf %99 : vector<16x16xf32> to vector<16x16xbf16>
    %cst_56 = arith.constant dense<0.000000e+00> : vector<16x32xf32>
    %101 = tpu.matmul %100, %86, %cst_56 {dimension_numbers = #tpu.dot_dimension_numbers<[1], [0], [0], [1], [0, 0, 1, 1], [], []>} : vector<16x16xbf16>, vector<16x32xbf16>, vector<16x32xf32> -> vector<16x32xf32>
    %102 = arith.truncf %101 : vector<16x32xf32> to vector<16x32xbf16>
    %c0_57 = arith.constant 0 : index
    %c96_58 = arith.constant 96 : index
    %103 = vector.load %arg10[%c0_57, %c96_58] : memref<16x128xbf16, #tpu.memory_space<vmem>>, vector<16x32xbf16>
    tpu.vector_store %arg10[%c0_57, %c96_58], %102 {strides = array<i32>} : memref<16x128xbf16, #tpu.memory_space<vmem>>, vector<16x32xbf16>,
    %c0_59 = arith.constant 0 : index
    %c0_60 = arith.constant 0 : index
    %104 = vector.load %arg10[%c0_59, %c0_60] : memref<16x128xbf16, #tpu.memory_space<vmem>>, vector<16x128xbf16>
    %c0_61 = arith.constant 0 : index
    %c0_62 = arith.constant 0 : index
    %105 = vector.load %arg4[%c0_61, %c0_62] : memref<128x128xbf16, #tpu.memory_space<vmem>>, vector<128x128xbf16>
    %cst_63 = arith.constant dense<0.000000e+00> : vector<16x128xf32>
    %106 = tpu.matmul %104, %105, %cst_63 {dimension_numbers = #tpu.dot_dimension_numbers<[1], [0], [0], [1], [0, 0, 1, 1], [], []>} : vector<16x128xbf16>, vector<128x128xbf16>, vector<16x128xf32> -> vector<16x128xf32>
    %c0_64 = arith.constant 0 : index
    %c0_65 = arith.constant 0 : index
    %107 = vector.load %arg5[%c0_64, %c0_65] : memref<1x128xf32, #tpu.memory_space<vmem>>, vector<1x128xf32>
    %108 = vector.broadcast %107 : vector<1x128xf32> to vector<16x128xf32>
    %109 = arith.addf %106, %108 : vector<16x128xf32>
    %c0_66 = arith.constant 0 : index
    %c0_67 = arith.constant 0 : index
    %c0_68 = arith.constant 0 : index
    %110 = vector.load %arg6[%c0_66, %c0_67, %c0_68] : memref<1x16x128xf32, #tpu.memory_space<vmem>>, vector<1x16x128xf32>
    %111 = vector.shape_cast %110 : vector<1x16x128xf32> to vector<16x128xf32>
    %112 = arith.addf %109, %111 : vector<16x128xf32>
    %c0_69 = arith.constant 0 : index
    %c0_70 = arith.constant 0 : index
    %113 = vector.load %arg7[%c0_69, %c0_70] : memref<1x128xf32, #tpu.memory_space<vmem>>, vector<1x128xf32>
    %c0_71 = arith.constant 0 : index
    %c0_72 = arith.constant 0 : index
    %114 = vector.load %arg8[%c0_71, %c0_72] : memref<1x128xf32, #tpu.memory_space<vmem>>, vector<1x128xf32>
    %cst_73 = arith.constant dense<0.000000e+00> : vector<16xf32>
    %115 = vector.multi_reduction <add>, %112, %cst_73 [1] : vector<16x128xf32> to vector<16xf32>
    %116 = vector.shape_cast %115 : vector<16xf32> to vector<16x1xf32>
    %cst_74 = arith.constant 7.812500e-03 : f32
    %117 = vector.broadcast %cst_74 : f32 to vector<16x1xf32>
    %118 = arith.mulf %116, %117 : vector<16x1xf32>
    %119 = arith.mulf %112, %112 : vector<16x128xf32>
    %cst_75 = arith.constant dense<0.000000e+00> : vector<16xf32>
    %120 = vector.multi_reduction <add>, %119, %cst_75 [1] : vector<16x128xf32> to vector<16xf32>
    %121 = vector.shape_cast %120 : vector<16xf32> to vector<16x1xf32>
    %cst_76 = arith.constant 7.812500e-03 : f32
    %122 = vector.broadcast %cst_76 : f32 to vector<16x1xf32>
    %123 = arith.mulf %121, %122 : vector<16x1xf32>
    %124 = arith.mulf %118, %118 : vector<16x1xf32>
    %125 = arith.subf %123, %124 : vector<16x1xf32>
    %cst_77 = arith.constant 0.000000e+00 : f32
    %126 = vector.broadcast %cst_77 : f32 to vector<16x1xf32>
    %127 = arith.maximumf %125, %126 : vector<16x1xf32>
    %128 = vector.broadcast %118 : vector<16x1xf32> to vector<16x128xf32>
    %129 = arith.subf %112, %128 : vector<16x128xf32>
    %cst_78 = arith.constant 9.99999974E-6 : f32
    %130 = vector.broadcast %cst_78 : f32 to vector<16x1xf32>
    %131 = arith.addf %127, %130 : vector<16x1xf32>
    %132 = math.rsqrt %131 : vector<16x1xf32>
    %133 = vector.broadcast %132 : vector<16x1xf32> to vector<16x128xf32>
    %134 = arith.mulf %129, %133 : vector<16x128xf32>
    %135 = vector.broadcast %113 : vector<1x128xf32> to vector<16x128xf32>
    %136 = arith.mulf %134, %135 : vector<16x128xf32>
    %137 = vector.broadcast %114 : vector<1x128xf32> to vector<16x128xf32>
    %138 = arith.addf %136, %137 : vector<16x128xf32>
    %c0_79 = arith.constant 0 : index
    %c0_80 = arith.constant 0 : index
    %c0_81 = arith.constant 0 : index
    %139 = vector.load %arg9[%c0_79, %c0_80, %c0_81] : memref<1x16x128xf32, #tpu.memory_space<vmem>>, vector<1x16x128xf32>
    %140 = vector.shape_cast %139 : vector<1x16x128xf32> to vector<16x128xf32>
    %141 = vector.shape_cast %138 : vector<16x128xf32> to vector<1x16x128xf32>
    tpu.vector_store %arg9[%c0_79, %c0_80, %c0_81], %141 {strides = array<i32>} : memref<1x16x128xf32, #tpu.memory_space<vmem>>, vector<1x16x128xf32>,
    return
  }
  func.func @transform_0(%arg0: i32) -> (i32, i32, i32) {
    %c0_i32 = arith.constant 0 : i32
    %c0_i32_0 = arith.constant 0 : i32
    %c0_i32_1 = arith.constant 0 : i32
    return %arg0, %c0_i32, %c0_i32_0 : i32, i32, i32
  }
  func.func @transform_1(%arg0: i32) -> (i32, i32, i32) {
    %c0_i32 = arith.constant 0 : i32
    %c0_i32_0 = arith.constant 0 : i32
    %c0_i32_1 = arith.constant 0 : i32
    return %arg0, %c0_i32, %c0_i32_0 : i32, i32, i32
  }
  func.func @transform_2(%arg0: i32) -> (i32, i32, i32) {
    %c0_i32 = arith.constant 0 : i32
    %c1_i32 = arith.constant 1 : i32
    %c0_i32_0 = arith.constant 0 : i32
    return %arg0, %c0_i32, %c1_i32 : i32, i32, i32
  }
  func.func @transform_3(%arg0: i32) -> (i32, i32) {
    %c0_i32 = arith.constant 0 : i32
    %c0_i32_0 = arith.constant 0 : i32
    %c0_i32_1 = arith.constant 0 : i32
    return %c0_i32, %c0_i32_0 : i32, i32
  }
  func.func @transform_4(%arg0: i32) -> (i32, i32) {
    %c0_i32 = arith.constant 0 : i32
    %c0_i32_0 = arith.constant 0 : i32
    %c0_i32_1 = arith.constant 0 : i32
    return %c0_i32, %c0_i32_0 : i32, i32
  }
  func.func @transform_5(%arg0: i32) -> (i32, i32, i32) {
    %c0_i32 = arith.constant 0 : i32
    %c0_i32_0 = arith.constant 0 : i32
    %c0_i32_1 = arith.constant 0 : i32
    return %arg0, %c0_i32, %c0_i32_0 : i32, i32, i32
  }
  func.func @transform_6(%arg0: i32) -> (i32, i32) {
    %c0_i32 = arith.constant 0 : i32
    %c0_i32_0 = arith.constant 0 : i32
    %c0_i32_1 = arith.constant 0 : i32
    return %c0_i32, %c0_i32_0 : i32, i32
  }
  func.func @transform_7(%arg0: i32) -> (i32, i32) {
    %c0_i32 = arith.constant 0 : i32
    %c0_i32_0 = arith.constant 0 : i32
    %c0_i32_1 = arith.constant 0 : i32
    return %c0_i32, %c0_i32_0 : i32, i32
  }
  func.func @transform_8(%arg0: i32) -> (i32, i32, i32) {
    %c0_i32 = arith.constant 0 : i32
    %c0_i32_0 = arith.constant 0 : i32
    %c0_i32_1 = arith.constant 0 : i32
    return %arg0, %c0_i32, %c0_i32_0 : i32, i32, i32
  }
}

module attributes {stable_mosaic.version = 11 : i64} {
  func.func @_ffn_addln_kernel(%arg0: i32, %arg1: i32, %arg2: memref<32x128xf32, #tpu.memory_space<vmem>>, %arg3: memref<128x256xbf16, #tpu.memory_space<vmem>>, %arg4: memref<1x256xf32, #tpu.memory_space<vmem>>, %arg5: memref<256x128xbf16, #tpu.memory_space<vmem>>, %arg6: memref<1x128xf32, #tpu.memory_space<vmem>>, %arg7: memref<1x128xf32, #tpu.memory_space<vmem>>, %arg8: memref<1x128xf32, #tpu.memory_space<vmem>>, %arg9: memref<32x128xf32, #tpu.memory_space<vmem>>, %arg10: memref<32x128xf32, #tpu.memory_space<vmem>>) attributes {dimension_semantics = [#tpu.dimension_semantics<parallel>, #tpu.dimension_semantics<arbitrary>], iteration_bounds = array<i64: 1, 1>, scalar_prefetch = 0 : i64, scratch_operands = 1 : i64, tpu.core_type = #tpu.core_type<tc>, window_params = [{transform_indices = @transform_0, window_bounds = array<i64: 32, 128>}, {transform_indices = @transform_1, window_bounds = array<i64: 128, 256>}, {transform_indices = @transform_2, window_bounds = array<i64: 1, 256>}, {transform_indices = @transform_3, window_bounds = array<i64: 256, 128>}, {pipeline_mode = #tpu.pipeline_mode<synchronous>, transform_indices = @transform_4, window_bounds = array<i64: 1, 128>}, {pipeline_mode = #tpu.pipeline_mode<synchronous>, transform_indices = @transform_5, window_bounds = array<i64: 1, 128>}, {pipeline_mode = #tpu.pipeline_mode<synchronous>, transform_indices = @transform_6, window_bounds = array<i64: 1, 128>}, {transform_indices = @transform_7, window_bounds = array<i64: 32, 128>}]} {
    %c0_i32 = arith.constant 0 : i32
    %0 = arith.cmpi eq, %arg1, %c0_i32 : i32
    %1 = arith.extui %0 : i1 to i32
    %c0_i32_0 = arith.constant 0 : i32
    %2 = arith.cmpi ne, %1, %c0_i32_0 : i32
    scf.if %2 {
      %cst_16 = arith.constant 0.000000e+00 : f32
      %21 = vector.broadcast %cst_16 : f32 to vector<32x128xf32>
      %c0_17 = arith.constant 0 : index
      %c0_18 = arith.constant 0 : index
      %22 = vector.load %arg10[%c0_17, %c0_18] : memref<32x128xf32, #tpu.memory_space<vmem>>, vector<32x128xf32>
      tpu.vector_store %arg10[%c0_17, %c0_18], %21 {strides = array<i32>} : memref<32x128xf32, #tpu.memory_space<vmem>>, vector<32x128xf32>,
    } else {
    }
    %c0 = arith.constant 0 : index
    %c0_1 = arith.constant 0 : index
    %3 = vector.load %arg2[%c0, %c0_1] : memref<32x128xf32, #tpu.memory_space<vmem>>, vector<32x128xf32>
    %4 = arith.truncf %3 : vector<32x128xf32> to vector<32x128xbf16>
    %c0_2 = arith.constant 0 : index
    %c0_3 = arith.constant 0 : index
    %5 = vector.load %arg3[%c0_2, %c0_3] : memref<128x256xbf16, #tpu.memory_space<vmem>>, vector<128x256xbf16>
    %cst = arith.constant dense<0.000000e+00> : vector<32x256xf32>
    %6 = tpu.matmul %4, %5, %cst {dimension_numbers = #tpu.dot_dimension_numbers<[1], [0], [0], [1], [0, 0, 1, 1], [], []>} : vector<32x128xbf16>, vector<128x256xbf16>, vector<32x256xf32> -> vector<32x256xf32>
    %c0_4 = arith.constant 0 : index
    %c0_5 = arith.constant 0 : index
    %7 = vector.load %arg4[%c0_4, %c0_5] : memref<1x256xf32, #tpu.memory_space<vmem>>, vector<1x256xf32>
    %8 = vector.broadcast %7 : vector<1x256xf32> to vector<32x256xf32>
    %9 = arith.addf %6, %8 : vector<32x256xf32>
    %cst_6 = arith.constant 0.000000e+00 : f32
    %10 = vector.broadcast %cst_6 : f32 to vector<32x256xf32>
    %11 = arith.maximumf %9, %10 : vector<32x256xf32>
    %c0_7 = arith.constant 0 : index
    %c0_8 = arith.constant 0 : index
    %12 = vector.load %arg10[%c0_7, %c0_8] : memref<32x128xf32, #tpu.memory_space<vmem>>, vector<32x128xf32>
    %13 = arith.truncf %11 : vector<32x256xf32> to vector<32x256xbf16>
    %c0_9 = arith.constant 0 : index
    %c0_10 = arith.constant 0 : index
    %14 = vector.load %arg5[%c0_9, %c0_10] : memref<256x128xbf16, #tpu.memory_space<vmem>>, vector<256x128xbf16>
    %cst_11 = arith.constant dense<0.000000e+00> : vector<32x128xf32>
    %15 = tpu.matmul %13, %14, %cst_11 {dimension_numbers = #tpu.dot_dimension_numbers<[1], [0], [0], [1], [0, 0, 1, 1], [], []>} : vector<32x256xbf16>, vector<256x128xbf16>, vector<32x128xf32> -> vector<32x128xf32>
    %16 = arith.addf %12, %15 : vector<32x128xf32>
    %c0_12 = arith.constant 0 : index
    %c0_13 = arith.constant 0 : index
    %17 = vector.load %arg10[%c0_12, %c0_13] : memref<32x128xf32, #tpu.memory_space<vmem>>, vector<32x128xf32>
    tpu.vector_store %arg10[%c0_12, %c0_13], %16 {strides = array<i32>} : memref<32x128xf32, #tpu.memory_space<vmem>>, vector<32x128xf32>,
    %c0_i32_14 = arith.constant 0 : i32
    %18 = arith.cmpi eq, %arg1, %c0_i32_14 : i32
    %19 = arith.extui %18 : i1 to i32
    %c0_i32_15 = arith.constant 0 : i32
    %20 = arith.cmpi ne, %19, %c0_i32_15 : i32
    scf.if %20 {
      %c0_16 = arith.constant 0 : index
      %c0_17 = arith.constant 0 : index
      %21 = vector.load %arg10[%c0_16, %c0_17] : memref<32x128xf32, #tpu.memory_space<vmem>>, vector<32x128xf32>
      %c0_18 = arith.constant 0 : index
      %c0_19 = arith.constant 0 : index
      %22 = vector.load %arg6[%c0_18, %c0_19] : memref<1x128xf32, #tpu.memory_space<vmem>>, vector<1x128xf32>
      %23 = vector.broadcast %22 : vector<1x128xf32> to vector<32x128xf32>
      %24 = arith.addf %21, %23 : vector<32x128xf32>
      %c0_20 = arith.constant 0 : index
      %c0_21 = arith.constant 0 : index
      %25 = vector.load %arg2[%c0_20, %c0_21] : memref<32x128xf32, #tpu.memory_space<vmem>>, vector<32x128xf32>
      %26 = arith.addf %24, %25 : vector<32x128xf32>
      %c0_22 = arith.constant 0 : index
      %c0_23 = arith.constant 0 : index
      %27 = vector.load %arg7[%c0_22, %c0_23] : memref<1x128xf32, #tpu.memory_space<vmem>>, vector<1x128xf32>
      %c0_24 = arith.constant 0 : index
      %c0_25 = arith.constant 0 : index
      %28 = vector.load %arg8[%c0_24, %c0_25] : memref<1x128xf32, #tpu.memory_space<vmem>>, vector<1x128xf32>
      %cst_26 = arith.constant dense<0.000000e+00> : vector<32xf32>
      %29 = vector.multi_reduction <add>, %26, %cst_26 [1] : vector<32x128xf32> to vector<32xf32>
      %30 = vector.shape_cast %29 : vector<32xf32> to vector<32x1xf32>
      %cst_27 = arith.constant 7.812500e-03 : f32
      %31 = vector.broadcast %cst_27 : f32 to vector<32x1xf32>
      %32 = arith.mulf %30, %31 : vector<32x1xf32>
      %33 = arith.mulf %26, %26 : vector<32x128xf32>
      %cst_28 = arith.constant dense<0.000000e+00> : vector<32xf32>
      %34 = vector.multi_reduction <add>, %33, %cst_28 [1] : vector<32x128xf32> to vector<32xf32>
      %35 = vector.shape_cast %34 : vector<32xf32> to vector<32x1xf32>
      %cst_29 = arith.constant 7.812500e-03 : f32
      %36 = vector.broadcast %cst_29 : f32 to vector<32x1xf32>
      %37 = arith.mulf %35, %36 : vector<32x1xf32>
      %38 = arith.mulf %32, %32 : vector<32x1xf32>
      %39 = arith.subf %37, %38 : vector<32x1xf32>
      %cst_30 = arith.constant 0.000000e+00 : f32
      %40 = vector.broadcast %cst_30 : f32 to vector<32x1xf32>
      %41 = arith.maximumf %39, %40 : vector<32x1xf32>
      %42 = vector.broadcast %32 : vector<32x1xf32> to vector<32x128xf32>
      %43 = arith.subf %26, %42 : vector<32x128xf32>
      %cst_31 = arith.constant 9.99999974E-6 : f32
      %44 = vector.broadcast %cst_31 : f32 to vector<32x1xf32>
      %45 = arith.addf %41, %44 : vector<32x1xf32>
      %46 = math.rsqrt %45 : vector<32x1xf32>
      %47 = vector.broadcast %46 : vector<32x1xf32> to vector<32x128xf32>
      %48 = arith.mulf %43, %47 : vector<32x128xf32>
      %49 = vector.broadcast %27 : vector<1x128xf32> to vector<32x128xf32>
      %50 = arith.mulf %48, %49 : vector<32x128xf32>
      %51 = vector.broadcast %28 : vector<1x128xf32> to vector<32x128xf32>
      %52 = arith.addf %50, %51 : vector<32x128xf32>
      %c0_32 = arith.constant 0 : index
      %c0_33 = arith.constant 0 : index
      %53 = vector.load %arg9[%c0_32, %c0_33] : memref<32x128xf32, #tpu.memory_space<vmem>>, vector<32x128xf32>
      tpu.vector_store %arg9[%c0_32, %c0_33], %52 {strides = array<i32>} : memref<32x128xf32, #tpu.memory_space<vmem>>, vector<32x128xf32>,
    } else {
    }
    return
  }
  func.func @transform_0(%arg0: i32, %arg1: i32) -> (i32, i32) {
    %c0_i32 = arith.constant 0 : i32
    %c0_i32_0 = arith.constant 0 : i32
    return %arg0, %c0_i32 : i32, i32
  }
  func.func @transform_1(%arg0: i32, %arg1: i32) -> (i32, i32) {
    %c0_i32 = arith.constant 0 : i32
    %c0_i32_0 = arith.constant 0 : i32
    return %c0_i32, %arg1 : i32, i32
  }
  func.func @transform_2(%arg0: i32, %arg1: i32) -> (i32, i32) {
    %c0_i32 = arith.constant 0 : i32
    %c0_i32_0 = arith.constant 0 : i32
    return %c0_i32, %arg1 : i32, i32
  }
  func.func @transform_3(%arg0: i32, %arg1: i32) -> (i32, i32) {
    %c0_i32 = arith.constant 0 : i32
    %c0_i32_0 = arith.constant 0 : i32
    return %arg1, %c0_i32 : i32, i32
  }
  func.func @transform_4(%arg0: i32, %arg1: i32) -> (i32, i32) {
    %c0_i32 = arith.constant 0 : i32
    %c0_i32_0 = arith.constant 0 : i32
    %c0_i32_1 = arith.constant 0 : i32
    return %c0_i32, %c0_i32_0 : i32, i32
  }
  func.func @transform_5(%arg0: i32, %arg1: i32) -> (i32, i32) {
    %c0_i32 = arith.constant 0 : i32
    %c0_i32_0 = arith.constant 0 : i32
    %c0_i32_1 = arith.constant 0 : i32
    return %c0_i32, %c0_i32_0 : i32, i32
  }
  func.func @transform_6(%arg0: i32, %arg1: i32) -> (i32, i32) {
    %c0_i32 = arith.constant 0 : i32
    %c0_i32_0 = arith.constant 0 : i32
    %c0_i32_1 = arith.constant 0 : i32
    return %c0_i32, %c0_i32_0 : i32, i32
  }
  func.func @transform_7(%arg0: i32, %arg1: i32) -> (i32, i32) {
    %c0_i32 = arith.constant 0 : i32
    %c0_i32_0 = arith.constant 0 : i32
    return %arg0, %c0_i32 : i32, i32
  }
}

module attributes {stable_mosaic.version = 11 : i64} {
  func.func @_ln_kernel(%arg0: i32, %arg1: memref<32x128xf32, #tpu.memory_space<vmem>>, %arg2: memref<1x128xf32, #tpu.memory_space<vmem>>, %arg3: memref<1x128xf32, #tpu.memory_space<vmem>>, %arg4: memref<32x128xf32, #tpu.memory_space<vmem>>) attributes {dimension_semantics = [#tpu.dimension_semantics<parallel>], iteration_bounds = array<i64: 1>, scalar_prefetch = 0 : i64, scratch_operands = 0 : i64, tpu.core_type = #tpu.core_type<tc>, window_params = [{transform_indices = @transform_0, window_bounds = array<i64: 32, 128>}, {pipeline_mode = #tpu.pipeline_mode<synchronous>, transform_indices = @transform_1, window_bounds = array<i64: 1, 128>}, {pipeline_mode = #tpu.pipeline_mode<synchronous>, transform_indices = @transform_2, window_bounds = array<i64: 1, 128>}, {transform_indices = @transform_3, window_bounds = array<i64: 32, 128>}]} {
    %c0 = arith.constant 0 : index
    %c0_0 = arith.constant 0 : index
    %0 = vector.load %arg1[%c0, %c0_0] : memref<32x128xf32, #tpu.memory_space<vmem>>, vector<32x128xf32>
    %c0_1 = arith.constant 0 : index
    %c0_2 = arith.constant 0 : index
    %1 = vector.load %arg2[%c0_1, %c0_2] : memref<1x128xf32, #tpu.memory_space<vmem>>, vector<1x128xf32>
    %c0_3 = arith.constant 0 : index
    %c0_4 = arith.constant 0 : index
    %2 = vector.load %arg3[%c0_3, %c0_4] : memref<1x128xf32, #tpu.memory_space<vmem>>, vector<1x128xf32>
    %cst = arith.constant dense<0.000000e+00> : vector<32xf32>
    %3 = vector.multi_reduction <add>, %0, %cst [1] : vector<32x128xf32> to vector<32xf32>
    %4 = vector.shape_cast %3 : vector<32xf32> to vector<32x1xf32>
    %cst_5 = arith.constant 7.812500e-03 : f32
    %5 = vector.broadcast %cst_5 : f32 to vector<32x1xf32>
    %6 = arith.mulf %4, %5 : vector<32x1xf32>
    %7 = arith.mulf %0, %0 : vector<32x128xf32>
    %cst_6 = arith.constant dense<0.000000e+00> : vector<32xf32>
    %8 = vector.multi_reduction <add>, %7, %cst_6 [1] : vector<32x128xf32> to vector<32xf32>
    %9 = vector.shape_cast %8 : vector<32xf32> to vector<32x1xf32>
    %cst_7 = arith.constant 7.812500e-03 : f32
    %10 = vector.broadcast %cst_7 : f32 to vector<32x1xf32>
    %11 = arith.mulf %9, %10 : vector<32x1xf32>
    %12 = arith.mulf %6, %6 : vector<32x1xf32>
    %13 = arith.subf %11, %12 : vector<32x1xf32>
    %cst_8 = arith.constant 0.000000e+00 : f32
    %14 = vector.broadcast %cst_8 : f32 to vector<32x1xf32>
    %15 = arith.maximumf %13, %14 : vector<32x1xf32>
    %16 = vector.broadcast %6 : vector<32x1xf32> to vector<32x128xf32>
    %17 = arith.subf %0, %16 : vector<32x128xf32>
    %cst_9 = arith.constant 9.99999974E-6 : f32
    %18 = vector.broadcast %cst_9 : f32 to vector<32x1xf32>
    %19 = arith.addf %15, %18 : vector<32x1xf32>
    %20 = math.rsqrt %19 : vector<32x1xf32>
    %21 = vector.broadcast %20 : vector<32x1xf32> to vector<32x128xf32>
    %22 = arith.mulf %17, %21 : vector<32x128xf32>
    %23 = vector.broadcast %1 : vector<1x128xf32> to vector<32x128xf32>
    %24 = arith.mulf %22, %23 : vector<32x128xf32>
    %25 = vector.broadcast %2 : vector<1x128xf32> to vector<32x128xf32>
    %26 = arith.addf %24, %25 : vector<32x128xf32>
    %c0_10 = arith.constant 0 : index
    %c0_11 = arith.constant 0 : index
    %27 = vector.load %arg4[%c0_10, %c0_11] : memref<32x128xf32, #tpu.memory_space<vmem>>, vector<32x128xf32>
    tpu.vector_store %arg4[%c0_10, %c0_11], %26 {strides = array<i32>} : memref<32x128xf32, #tpu.memory_space<vmem>>, vector<32x128xf32>,
    return
  }
  func.func @transform_0(%arg0: i32) -> (i32, i32) {
    %c0_i32 = arith.constant 0 : i32
    %c0_i32_0 = arith.constant 0 : i32
    return %arg0, %c0_i32 : i32, i32
  }
  func.func @transform_1(%arg0: i32) -> (i32, i32) {
    %c0_i32 = arith.constant 0 : i32
    %c0_i32_0 = arith.constant 0 : i32
    %c0_i32_1 = arith.constant 0 : i32
    return %c0_i32, %c0_i32_0 : i32, i32
  }
  func.func @transform_2(%arg0: i32) -> (i32, i32) {
    %c0_i32 = arith.constant 0 : i32
    %c0_i32_0 = arith.constant 0 : i32
    %c0_i32_1 = arith.constant 0 : i32
    return %c0_i32, %c0_i32_0 : i32, i32
  }
  func.func @transform_3(%arg0: i32) -> (i32, i32) {
    %c0_i32 = arith.constant 0 : i32
    %c0_i32_0 = arith.constant 0 : i32
    return %arg0, %c0_i32 : i32, i32
  }
}

</mosaic_0001>

<llo_original>
// kernel: decoder_forward.15
$region0: #{decoder_forward.15}
  #allocation0 [shape = 'u32[]', space=smem, size = 0x4, offset = 0x4, fixed_abs, tag = 'smem constant byte address 0x4 - core index']
  #allocation1 [shape = 'u32[72,128]{1,0:T(1,128)}', space=vmem, size = 0x9000, scoped, tag = 'internal scratch']
  #allocation2 [shape = 'f32[32,128]{1,0:T(8,128)}', space=vmem, size = 0x4000, scoped, tag = 'scratch operand']
  %s0 = inlined_call_operand.vmem [shape: f32[32,128], index: 0, kind: input, shape index: {}]
  %s1 = inlined_call_operand.hbm [shape: bf16[128,128], index: 1, kind: input, shape index: {}]
  %s2 = inlined_call_operand.vmem [shape: f32[1,128], index: 2, kind: input, shape index: {}]
  %s3 = inlined_call_operand.vmem [shape: f32[32,128], index: 3, kind: output, shape index: {}]
  %s4 = sld [smem:[#allocation0]]
  $region34: #{decoder_forward.15} parent=0
    _
  %s6 = ssub.s32 1, %s4
  %s7 = scalar_select 0, %s6, %s4
  $region1: #{decoder_forward.15} parent=0
    #allocation3 [shape = 'u8[32768]{0}', space=vmem, size = 0x8000, scoped, tag = 'input window, operand 1, single buffered']
    #allocation4 [shape = 's32[1]{0}', space=sflag, size = 0x4, scoped, tag = 'scoped memory for decoder_forward.15']
    %8 = vsyncpa [#allocation4], 0
    // Predicated region
    $region2: #{decoder_forward.15} parent=1 // pred_check
      _
    $region3: #{decoder_forward.15} parent=1 // pred_check_branch
      %10 = sbr.rel (0) target = $region5
    $region4: #{decoder_forward.15} parent=1 // pred_region
      _
    $region5: #{decoder_forward.15} parent=1 // pred_fallthru
      _
    // Predicated region
    $region6: #{decoder_forward.15} parent=1 // pred_check
      _
    $region7: #{decoder_forward.15} parent=1 // pred_check_branch
      %12 = sbr.rel (0) target = $region9
    $region8: #{decoder_forward.15} parent=1 // pred_region
      %14 = vsyncadd [#allocation4], 0
      %s15 = sshll.u32 %s1, 4
      %s16 = int_to_ptr.hbm [resolvable:$true] %s15
      %s17 = sshll.u32 [#allocation3], 4
      %s18 = int_to_ptr.vmem [resolvable:$true] %s17
      %23 = dma.hbm_to_vmem [thread:$0]  %s16, 1024, %s18, [#allocation4], 64, 64, 4
    $region9: #{decoder_forward.15} parent=1 // pred_fallthru
      _
    // Predicated region
    $region10: #{decoder_forward.15} parent=1 // pred_check
      _
    $region11: #{decoder_forward.15} parent=1 // pred_check_branch
      %25 = sbr.rel (0) target = $region13
    $region12: #{decoder_forward.15} parent=1 // pred_region
      _
    $region13: #{decoder_forward.15} parent=1 // pred_fallthru
      _
    // Predicated region
    $region14: #{decoder_forward.15} parent=1 // pred_check
      _
    $region15: #{decoder_forward.15} parent=1 // pred_check_branch
      %27 = sbr.rel (0) target = $region17
    $region16: #{decoder_forward.15} parent=1 // pred_region
      %29 = dma.done [#allocation4], 1024
    $region17: #{decoder_forward.15} parent=1 // pred_fallthru
      _
    %p30 = scmp.eq.s32.totalorder 0, 0
    // Predicated region
    $region18: #{decoder_forward.15} parent=1 // pred_check
      %p31 = pneg %p30
    $region19: #{decoder_forward.15} parent=1 // pred_check_branch
      %33 = sbr.rel (%p31) target = $region21
    $region20: #{decoder_forward.15} parent=1 // pred_region
      %34 = vst [vmem:[#allocation2] sm:$0xff] 0.0
      %35 = vst [vmem:[#allocation2 + $0x8] sm:$0xff] 0.0
      %36 = vst [vmem:[#allocation2 + $0x10] sm:$0xff] 0.0
      %37 = vst [vmem:[#allocation2 + $0x18] sm:$0xff] 0.0
    $region21: #{decoder_forward.15} parent=1 // pred_fallthru
      _
    %v38 = vld [vmem:[#allocation2] sm:$0xff]
    %v39 = vld [vmem:[#allocation2 + $0x8] sm:$0xff]
    %v40 = vld [vmem:[#allocation2 + $0x10] sm:$0xff]
    %v41 = vld [vmem:[#allocation2 + $0x18] sm:$0xff]
    %v42 = vld [vmem:[%s0] sm:$0xff]
    %v43 = vld [vmem:[%s0 + $0x8] sm:$0xff]
    %v44 = vld [vmem:[%s0 + $0x10] sm:$0xff]
    %v45 = vld [vmem:[%s0 + $0x18] sm:$0xff]
    %v46 = vpack.c.bf16 %v43, %v42
    %v47 = vpack.c.bf16 %v45, %v44
    %v48 = vld [vmem:[#allocation3] sm:$0xf]
    %v49 = vld [vmem:[#allocation3 + $0x4] sm:$0xf]
    %v50 = vld [vmem:[#allocation3 + $0x8] sm:$0xf]
    %v51 = vld [vmem:[#allocation3 + $0xc] sm:$0xf]
    %v52 = vld [vmem:[#allocation3 + $0x10] sm:$0xf]
    %v53 = vld [vmem:[#allocation3 + $0x14] sm:$0xf]
    %v54 = vld [vmem:[#allocation3 + $0x18] sm:$0xf]
    %v55 = vld [vmem:[#allocation3 + $0x1c] sm:$0xf]
    %v56 = vld [vmem:[#allocation3 + $0x20] sm:$0xf]
    %v57 = vld [vmem:[#allocation3 + $0x24] sm:$0xf]
    %v58 = vld [vmem:[#allocation3 + $0x28] sm:$0xf]
    %v59 = vld [vmem:[#allocation3 + $0x2c] sm:$0xf]
    %v60 = vld [vmem:[#allocation3 + $0x30] sm:$0xf]
    %v61 = vld [vmem:[#allocation3 + $0x34] sm:$0xf]
    %v62 = vld [vmem:[#allocation3 + $0x38] sm:$0xf]
    %v63 = vld [vmem:[#allocation3 + $0x3c] sm:$0xf]
    %v80 = vunpack.c.l.b16 %v48
    %v81 = vunpack.c.l.b16 %v49
    %v82 = vunpack.c.l.b16 %v50
    %v83 = vunpack.c.l.b16 %v51
    %v84 = vunpack.c.l.b16 %v52
    %v85 = vunpack.c.l.b16 %v53
    %v86 = vunpack.c.l.b16 %v54
    %v87 = vunpack.c.l.b16 %v55
    %v88 = vunpack.c.l.b16 %v56
    %v89 = vunpack.c.l.b16 %v57
    %v90 = vunpack.c.l.b16 %v58
    %v91 = vunpack.c.l.b16 %v59
    %v92 = vunpack.c.l.b16 %v60
    %v93 = vunpack.c.l.b16 %v61
    %v94 = vunpack.c.l.b16 %v62
    %v95 = vunpack.c.l.b16 %v63
    %v96 = vpack.c.b16 %v81, %v80
    %v97 = vpack.c.b16 %v83, %v82
    %v98 = vpack.c.b16 %v85, %v84
    %v99 = vpack.c.b16 %v87, %v86
    %v100 = vpack.c.b16 %v89, %v88
    %v101 = vpack.c.b16 %v91, %v90
    %v102 = vpack.c.b16 %v93, %v92
    %v103 = vpack.c.b16 %v95, %v94
    %112 = vmatpush.bf16.msra.mxu0 %v103
    %113 = vmatpush.bf16.msra.mxu0 %v102
    %114 = vmatpush.bf16.msra.mxu0 %v101
    %115 = vmatpush.bf16.msra.mxu0 %v100
    %116 = vmatpush.bf16.msra.mxu0 %v99
    %117 = vmatpush.bf16.msra.mxu0 %v98
    %118 = vmatpush.bf16.msra.mxu0 %v97
    %119 = vmatpush.bf16.msra.mxu0 %v96
    %120 = vmatmul.bf16.gmra.mxu0 %v46
    %v121 = vpop.f32.mrf.mxu0
    %v122 = vadd.f32 0.0, %v121
    %v123 = vpop.f32.mrf.mxu0
    %v124 = vadd.f32 0.0, %v123
    %125 = vmatmul.bf16.gmra.mxu0 %v47
    %v126 = vpop.f32.mrf.mxu0
    %v127 = vadd.f32 0.0, %v126
    %v128 = vpop.f32.mrf.mxu0
    %v129 = vadd.f32 0.0, %v128
    %130 = vdwg.mxu0
    %v131 = vadd.f32 %v38, %v122
    %v132 = vadd.f32 %v39, %v124
    %v133 = vadd.f32 %v40, %v127
    %v134 = vadd.f32 %v41, %v129
    %135 = vst [vmem:[#allocation2] sm:$0xff] %v131
    %136 = vst [vmem:[#allocation2 + $0x8] sm:$0xff] %v132
    %137 = vst [vmem:[#allocation2 + $0x10] sm:$0xff] %v133
    %138 = vst [vmem:[#allocation2 + $0x18] sm:$0xff] %v134
    // Predicated region
    $region22: #{decoder_forward.15} parent=1 // pred_check
      %p139 = pneg %p30
    $region23: #{decoder_forward.15} parent=1 // pred_check_branch
      %141 = sbr.rel (%p139) target = $region25
    $region24: #{decoder_forward.15} parent=1 // pred_region
      %v142 = vld [vmem:[#allocation2] sm:$0xff]
      %v143 = vld [vmem:[#allocation2 + $0x8] sm:$0xff]
      %v144 = vld [vmem:[#allocation2 + $0x10] sm:$0xff]
      %v145 = vld [vmem:[#allocation2 + $0x18] sm:$0xff]
      %v146 = vld [vmem:[%s2] sm:$0x1]
      %v148 = vperm.slane %v146, 0
      %v150 = vadd.f32 %v142, %v148
      %v151 = vadd.f32 %v143, %v148
      %v152 = vadd.f32 %v144, %v148
      %v153 = vadd.f32 %v145, %v148
      %154 = vst [vmem:[%s3] sm:$0xff] %v150
      %155 = vst [vmem:[%s3 + $0x8] sm:$0xff] %v151
      %156 = vst [vmem:[%s3 + $0x10] sm:$0xff] %v152
      %157 = vst [vmem:[%s3 + $0x18] sm:$0xff] %v153
    $region25: #{decoder_forward.15} parent=1 // pred_fallthru
      _
    // Predicated region
    $region26: #{decoder_forward.15} parent=1 // pred_check
      _
    $region27: #{decoder_forward.15} parent=1 // pred_check_branch
      %159 = sbr.rel (0) target = $region29
    $region28: #{decoder_forward.15} parent=1 // pred_region
      _
    $region29: #{decoder_forward.15} parent=1 // pred_fallthru
      _
    // Predicated region
    $region30: #{decoder_forward.15} parent=1 // pred_check
      _
    $region31: #{decoder_forward.15} parent=1 // pred_check_branch
      %161 = sbr.rel (0) target = $region33
    $region32: #{decoder_forward.15} parent=1 // pred_region
      _
    $region33: #{decoder_forward.15} parent=1 // pred_fallthru
      _
    %162 = vsyncpa [#allocation4], 1

// kernel: decoder_forward.16
$region0: #{decoder_forward.16}
  #allocation0 [shape = 'u32[]', space=smem, size = 0x4, offset = 0x4, fixed_abs, tag = 'smem constant byte address 0x4 - core index']
  #allocation1 [shape = 'u32[72,128]{1,0:T(1,128)}', space=vmem, size = 0x9000, scoped, tag = 'internal scratch']
  #allocation2 [shape = 'f32[32,256]{1,0:T(8,128)}', space=vmem, size = 0x8000, scoped, tag = 'scratch operand']
  %s0 = inlined_call_operand.hbm [shape: f32[32,128], index: 0, kind: input, shape index: {}]
  %s1 = inlined_call_operand.hbm [shape: bf16[128,256], index: 1, kind: input, shape index: {}]
  %s2 = inlined_call_operand.vmem [shape: f32[1,256], index: 2, kind: input, shape index: {}]
  %s3 = inlined_call_operand.vmem [shape: f32[32,256], index: 3, kind: output, shape index: {}]
  %s4 = sld [smem:[#allocation0]]
  $region38: #{decoder_forward.16} parent=0
    _
  %s6 = ssub.s32 1, %s4
  %s7 = scalar_select 0, %s6, %s4
  $region1: #{decoder_forward.16} parent=0
    #allocation3 [shape = 'u8[16384]{0}', space=vmem, size = 0x4000, scoped, tag = 'input window, operand 0, single buffered']
    #allocation4 [shape = 's32[1]{0}', space=sflag, size = 0x4, scoped, tag = 'scoped memory for decoder_forward.16']
    #allocation5 [shape = 'u8[65536]{0}', space=vmem, size = 0x10000, scoped, tag = 'input window, operand 1, single buffered']
    #allocation6 [shape = 's32[1]{0}', space=sflag, size = 0x4, scoped, tag = 'scoped memory for decoder_forward.16']
    %8 = vsyncpa [#allocation4], 0
    %9 = vsyncpa [#allocation6], 0
    // Predicated region
    $region2: #{decoder_forward.16} parent=1 // pred_check
      _
    $region3: #{decoder_forward.16} parent=1 // pred_check_branch
      %11 = sbr.rel (0) target = $region5
    $region4: #{decoder_forward.16} parent=1 // pred_region
      %13 = vsyncadd [#allocation4], 0
      %s14 = sshll.u32 %s0, 4
      %s15 = int_to_ptr.hbm [resolvable:$true] %s14
      %s16 = sshll.u32 [#allocation3], 4
      %s17 = int_to_ptr.vmem [resolvable:$true] %s16
      %22 = dma.hbm_to_vmem [thread:$0]  %s15, 512, %s17, [#allocation4], 128, 128, 8
    $region5: #{decoder_forward.16} parent=1 // pred_fallthru
      _
    // Predicated region
    $region6: #{decoder_forward.16} parent=1 // pred_check
      _
    $region7: #{decoder_forward.16} parent=1 // pred_check_branch
      %24 = sbr.rel (0) target = $region9
    $region8: #{decoder_forward.16} parent=1 // pred_region
      %26 = vsyncadd [#allocation6], 0
      %s27 = sshll.u32 %s1, 4
      %s28 = int_to_ptr.hbm [resolvable:$true] %s27
      %s29 = sshll.u32 [#allocation5], 4
      %s30 = int_to_ptr.vmem [resolvable:$true] %s29
      %35 = dma.hbm_to_vmem [thread:$0]  %s28, 2048, %s30, [#allocation6], 128, 128, 8
    $region9: #{decoder_forward.16} parent=1 // pred_fallthru
      _
    // Predicated region
    $region10: #{decoder_forward.16} parent=1 // pred_check
      _
    $region11: #{decoder_forward.16} parent=1 // pred_check_branch
      %37 = sbr.rel (0) target = $region13
    $region12: #{decoder_forward.16} parent=1 // pred_region
      _
    $region13: #{decoder_forward.16} parent=1 // pred_fallthru
      _
    // Predicated region
    $region14: #{decoder_forward.16} parent=1 // pred_check
      _
    $region15: #{decoder_forward.16} parent=1 // pred_check_branch
      %39 = sbr.rel (0) target = $region17
    $region16: #{decoder_forward.16} parent=1 // pred_region
      %41 = dma.done [#allocation4], 512
    $region17: #{decoder_forward.16} parent=1 // pred_fallthru
      _
    // Predicated region
    $region18: #{decoder_forward.16} parent=1 // pred_check
      _
    $region19: #{decoder_forward.16} parent=1 // pred_check_branch
      %43 = sbr.rel (0) target = $region21
    $region20: #{decoder_forward.16} parent=1 // pred_region
      %45 = dma.done [#allocation6], 2048
    $region21: #{decoder_forward.16} parent=1 // pred_fallthru
      _
    %p46 = scmp.eq.s32.totalorder 0, 0
    // Predicated region
    $region22: #{decoder_forward.16} parent=1 // pred_check
      %p47 = pneg %p46
    $region23: #{decoder_forward.16} parent=1 // pred_check_branch
      %49 = sbr.rel (%p47) target = $region25
    $region24: #{decoder_forward.16} parent=1 // pred_region
      %50 = vst [vmem:[#allocation2] sm:$0xff] 0.0
      %51 = vst [vmem:[#allocation2 + $0x8] sm:$0xff] 0.0
      %52 = vst [vmem:[#allocation2 + $0x10] sm:$0xff] 0.0
      %53 = vst [vmem:[#allocation2 + $0x18] sm:$0xff] 0.0
      %54 = vst [vmem:[#allocation2 + $0x20] sm:$0xff] 0.0
      %55 = vst [vmem:[#allocation2 + $0x28] sm:$0xff] 0.0
      %56 = vst [vmem:[#allocation2 + $0x30] sm:$0xff] 0.0
      %57 = vst [vmem:[#allocation2 + $0x38] sm:$0xff] 0.0
    $region25: #{decoder_forward.16} parent=1 // pred_fallthru
      _
    %v58 = vld [vmem:[#allocation2] sm:$0xff]
    %v59 = vld [vmem:[#allocation2 + $0x8] sm:$0xff]
    %v60 = vld [vmem:[#allocation2 + $0x10] sm:$0xff]
    %v61 = vld [vmem:[#allocation2 + $0x18] sm:$0xff]
    %v62 = vld [vmem:[#allocation2 + $0x20] sm:$0xff]
    %v63 = vld [vmem:[#allocation2 + $0x28] sm:$0xff]
    %v64 = vld [vmem:[#allocation2 + $0x30] sm:$0xff]
    %v65 = vld [vmem:[#allocation2 + $0x38] sm:$0xff]
    %v66 = vld [vmem:[#allocation3] sm:$0xff]
    %v67 = vld [vmem:[#allocation3 + $0x8] sm:$0xff]
    %v68 = vld [vmem:[#allocation3 + $0x10] sm:$0xff]
    %v69 = vld [vmem:[#allocation3 + $0x18] sm:$0xff]
    %v70 = vpack.c.bf16 %v67, %v66
    %v71 = vpack.c.bf16 %v69, %v68
    %v72 = vld [vmem:[#allocation5] sm:$0xff]
    %v73 = vld [vmem:[#allocation5 + $0x8] sm:$0xff]
    %v74 = vld [vmem:[#allocation5 + $0x10] sm:$0xff]
    %v75 = vld [vmem:[#allocation5 + $0x18] sm:$0xff]
    %v76 = vld [vmem:[#allocation5 + $0x20] sm:$0xff]
    %v77 = vld [vmem:[#allocation5 + $0x28] sm:$0xff]
    %v78 = vld [vmem:[#allocation5 + $0x30] sm:$0xff]
    %v79 = vld [vmem:[#allocation5 + $0x38] sm:$0xff]
    %v80 = vld [vmem:[#allocation5 + $0x40] sm:$0xff]
    %v81 = vld [vmem:[#allocation5 + $0x48] sm:$0xff]
    %v82 = vld [vmem:[#allocation5 + $0x50] sm:$0xff]
    %v83 = vld [vmem:[#allocation5 + $0x58] sm:$0xff]
    %v84 = vld [vmem:[#allocation5 + $0x60] sm:$0xff]
    %v85 = vld [vmem:[#allocation5 + $0x68] sm:$0xff]
    %v86 = vld [vmem:[#allocation5 + $0x70] sm:$0xff]
    %v87 = vld [vmem:[#allocation5 + $0x78] sm:$0xff]
    %v104 = vunpack.c.l.b16 %v72
    %v105 = vunpack.c.h.b16 %v72
    %v106 = vunpack.c.l.b16 %v73
    %v107 = vunpack.c.h.b16 %v73
    %v108 = vunpack.c.l.b16 %v74
    %v109 = vunpack.c.h.b16 %v74
    %v110 = vunpack.c.l.b16 %v75
    %v111 = vunpack.c.h.b16 %v75
    %v112 = vunpack.c.l.b16 %v76
    %v113 = vunpack.c.h.b16 %v76
    %v114 = vunpack.c.l.b16 %v77
    %v115 = vunpack.c.h.b16 %v77
    %v116 = vunpack.c.l.b16 %v78
    %v117 = vunpack.c.h.b16 %v78
    %v118 = vunpack.c.l.b16 %v79
    %v119 = vunpack.c.h.b16 %v79
    %v120 = vunpack.c.l.b16 %v80
    %v121 = vunpack.c.h.b16 %v80
    %v122 = vunpack.c.l.b16 %v81
    %v123 = vunpack.c.h.b16 %v81
    %v124 = vunpack.c.l.b16 %v82
    %v125 = vunpack.c.h.b16 %v82
    %v126 = vunpack.c.l.b16 %v83
    %v127 = vunpack.c.h.b16 %v83
    %v128 = vunpack.c.l.b16 %v84
    %v129 = vunpack.c.h.b16 %v84
    %v130 = vunpack.c.l.b16 %v85
    %v131 = vunpack.c.h.b16 %v85
    %v132 = vunpack.c.l.b16 %v86
    %v133 = vunpack.c.h.b16 %v86
    %v134 = vunpack.c.l.b16 %v87
    %v135 = vunpack.c.h.b16 %v87
    %v136 = vpack.c.b16 %v106, %v104
    %v137 = vpack.c.b16 %v107, %v105
    %v138 = vpack.c.b16 %v110, %v108
    %v139 = vpack.c.b16 %v111, %v109
    %v140 = vpack.c.b16 %v114, %v112
    %v141 = vpack.c.b16 %v115, %v113
    %v142 = vpack.c.b16 %v118, %v116
    %v143 = vpack.c.b16 %v119, %v117
    %v144 = vpack.c.b16 %v122, %v120
    %v145 = vpack.c.b16 %v123, %v121
    %v146 = vpack.c.b16 %v126, %v124
    %v147 = vpack.c.b16 %v127, %v125
    %v148 = vpack.c.b16 %v130, %v128
    %v149 = vpack.c.b16 %v131, %v129
    %v150 = vpack.c.b16 %v134, %v132
    %v151 = vpack.c.b16 %v135, %v133
    %168 = vmatpush.bf16.msra.mxu0 %v150
    %169 = vmatpush.bf16.msra.mxu0 %v148
    %170 = vmatpush.bf16.msra.mxu0 %v146
    %171 = vmatpush.bf16.msra.mxu0 %v144
    %172 = vmatpush.bf16.msra.mxu0 %v142
    %173 = vmatpush.bf16.msra.mxu0 %v140
    %174 = vmatpush.bf16.msra.mxu0 %v138
    %175 = vmatpush.bf16.msra.mxu0 %v136
    %176 = vmatmul.bf16.gmra.mxu0 %v70
    %v177 = vpop.f32.mrf.mxu0
    %v178 = vadd.f32 0.0, %v177
    %v179 = vpop.f32.mrf.mxu0
    %v180 = vadd.f32 0.0, %v179
    %181 = vmatmul.bf16.gmra.mxu0 %v71
    %v182 = vpop.f32.mrf.mxu0
    %v183 = vadd.f32 0.0, %v182
    %v184 = vpop.f32.mrf.mxu0
    %v185 = vadd.f32 0.0, %v184
    %186 = vdwg.mxu0
    %187 = vmatpush.bf16.msra.mxu0 %v151
    %188 = vmatpush.bf16.msra.mxu0 %v149
    %189 = vmatpush.bf16.msra.mxu0 %v147
    %190 = vmatpush.bf16.msra.mxu0 %v145
    %191 = vmatpush.bf16.msra.mxu0 %v143
    %192 = vmatpush.bf16.msra.mxu0 %v141
    %193 = vmatpush.bf16.msra.mxu0 %v139
    %194 = vmatpush.bf16.msra.mxu0 %v137
    %195 = vmatmul.bf16.gmra.mxu0 %v70
    %v196 = vpop.f32.mrf.mxu0
    %v197 = vadd.f32 0.0, %v196
    %v198 = vpop.f32.mrf.mxu0
    %v199 = vadd.f32 0.0, %v198
    %200 = vmatmul.bf16.gmra.mxu0 %v71
    %v201 = vpop.f32.mrf.mxu0
    %v202 = vadd.f32 0.0, %v201
    %v203 = vpop.f32.mrf.mxu0
    %v204 = vadd.f32 0.0, %v203
    %205 = vdwg.mxu0
    %v206 = vadd.f32 %v58, %v178
    %v207 = vadd.f32 %v59, %v197
    %v208 = vadd.f32 %v60, %v180
    %v209 = vadd.f32 %v61, %v199
    %v210 = vadd.f32 %v62, %v183
    %v211 = vadd.f32 %v63, %v202
    %v212 = vadd.f32 %v64, %v185
    %v213 = vadd.f32 %v65, %v204
    %214 = vst [vmem:[#allocation2] sm:$0xff] %v206
    %215 = vst [vmem:[#allocation2 + $0x8] sm:$0xff] %v207
    %216 = vst [vmem:[#allocation2 + $0x10] sm:$0xff] %v208
    %217 = vst [vmem:[#allocation2 + $0x18] sm:$0xff] %v209
    %218 = vst [vmem:[#allocation2 + $0x20] sm:$0xff] %v210
    %219 = vst [vmem:[#allocation2 + $0x28] sm:$0xff] %v211
    %220 = vst [vmem:[#allocation2 + $0x30] sm:$0xff] %v212
    %221 = vst [vmem:[#allocation2 + $0x38] sm:$0xff] %v213
    // Predicated region
    $region26: #{decoder_forward.16} parent=1 // pred_check
      %p222 = pneg %p46
    $region27: #{decoder_forward.16} parent=1 // pred_check_branch
      %224 = sbr.rel (%p222) target = $region29
    $region28: #{decoder_forward.16} parent=1 // pred_region
      %v225 = vld [vmem:[#allocation2] sm:$0xff]
      %v226 = vld [vmem:[#allocation2 + $0x8] sm:$0xff]
      %v227 = vld [vmem:[#allocation2 + $0x10] sm:$0xff]
      %v228 = vld [vmem:[#allocation2 + $0x18] sm:$0xff]
      %v229 = vld [vmem:[#allocation2 + $0x20] sm:$0xff]
      %v230 = vld [vmem:[#allocation2 + $0x28] sm:$0xff]
      %v231 = vld [vmem:[#allocation2 + $0x30] sm:$0xff]
      %v232 = vld [vmem:[#allocation2 + $0x38] sm:$0xff]
      %v233 = vld [vmem:[%s2] sm:$0x3]
      %v235 = vperm.slane %v233, 0
      %v236 = vperm.slane %v233, 1
      %v239 = vadd.f32 %v225, %v235
      %v240 = vadd.f32 %v226, %v236
      %v241 = vadd.f32 %v227, %v235
      %v242 = vadd.f32 %v228, %v236
      %v243 = vadd.f32 %v229, %v235
      %v244 = vadd.f32 %v230, %v236
      %v245 = vadd.f32 %v231, %v235
      %v246 = vadd.f32 %v232, %v236
      %247 = vst [vmem:[%s3] sm:$0xff] %v239
      %248 = vst [vmem:[%s3 + $0x8] sm:$0xff] %v240
      %249 = vst [vmem:[%s3 + $0x10] sm:$0xff] %v241
      %250 = vst [vmem:[%s3 + $0x18] sm:$0xff] %v242
      %251 = vst [vmem:[%s3 + $0x20] sm:$0xff] %v243
      %252 = vst [vmem:[%s3 + $0x28] sm:$0xff] %v244
      %253 = vst [vmem:[%s3 + $0x30] sm:$0xff] %v245
      %254 = vst [vmem:[%s3 + $0x38] sm:$0xff] %v246
    $region29: #{decoder_forward.16} parent=1 // pred_fallthru
      _
    // Predicated region
    $region30: #{decoder_forward.16} parent=1 // pred_check
      _
    $region31: #{decoder_forward.16} parent=1 // pred_check_branch
      %256 = sbr.rel (0) target = $region33
    $region32: #{decoder_forward.16} parent=1 // pred_region
      _
    $region33: #{decoder_forward.16} parent=1 // pred_fallthru
      _
    // Predicated region
    $region34: #{decoder_forward.16} parent=1 // pred_check
      _
    $region35: #{decoder_forward.16} parent=1 // pred_check_branch
      %258 = sbr.rel (0) target = $region37
    $region36: #{decoder_forward.16} parent=1 // pred_region
      _
    $region37: #{decoder_forward.16} parent=1 // pred_fallthru
      _
    %259 = vsyncpa [#allocation4], 1
    %260 = vsyncpa [#allocation6], 1

// kernel: decoder_forward.13
$region0: #{decoder_forward.13}
  #allocation0 [shape = 'u32[]', space=smem, size = 0x4, offset = 0x4, fixed_abs, tag = 'smem constant byte address 0x4 - core index']
  #allocation1 [shape = 'u32[72,128]{1,0:T(1,128)}', space=vmem, size = 0x9000, scoped, tag = 'internal scratch']
  #allocation2 [shape = 'f32[32,384]{1,0:T(8,128)}', space=vmem, size = 0xc000, scoped, tag = 'scratch operand']
  %s0 = inlined_call_operand.vmem [shape: f32[32,128], index: 0, kind: input, shape index: {}]
  %s1 = inlined_call_operand.hbm [shape: bf16[128,384], index: 1, kind: input, shape index: {}]
  %s2 = inlined_call_operand.vmem [shape: f32[1,384], index: 2, kind: input, shape index: {}]
  %s3 = inlined_call_operand.vmem [shape: f32[32,384], index: 3, kind: output, shape index: {}]
  %s4 = sld [smem:[#allocation0]]
  $region34: #{decoder_forward.13} parent=0
    _
  %s6 = ssub.s32 1, %s4
  %s7 = scalar_select 0, %s6, %s4
  $region1: #{decoder_forward.13} parent=0
    #allocation3 [shape = 'u8[98304]{0}', space=vmem, size = 0x18000, scoped, tag = 'input window, operand 1, single buffered']
    #allocation4 [shape = 's32[1]{0}', space=sflag, size = 0x4, scoped, tag = 'scoped memory for decoder_forward.13']
    %8 = vsyncpa [#allocation4], 0
    // Predicated region
    $region2: #{decoder_forward.13} parent=1 // pred_check
      _
    $region3: #{decoder_forward.13} parent=1 // pred_check_branch
      %10 = sbr.rel (0) target = $region5
    $region4: #{decoder_forward.13} parent=1 // pred_region
      _
    $region5: #{decoder_forward.13} parent=1 // pred_fallthru
      _
    // Predicated region
    $region6: #{decoder_forward.13} parent=1 // pred_check
      _
    $region7: #{decoder_forward.13} parent=1 // pred_check_branch
      %12 = sbr.rel (0) target = $region9
    $region8: #{decoder_forward.13} parent=1 // pred_region
      %14 = vsyncadd [#allocation4], 0
      %s15 = sshll.u32 %s1, 4
      %s16 = int_to_ptr.hbm [resolvable:$true] %s15
      %s17 = sshll.u32 [#allocation3], 4
      %s18 = int_to_ptr.vmem [resolvable:$true] %s17
      %23 = dma.hbm_to_vmem [thread:$0]  %s16, 3072, %s18, [#allocation4], 192, 192, 12
    $region9: #{decoder_forward.13} parent=1 // pred_fallthru
      _
    // Predicated region
    $region10: #{decoder_forward.13} parent=1 // pred_check
      _
    $region11: #{decoder_forward.13} parent=1 // pred_check_branch
      %25 = sbr.rel (0) target = $region13
    $region12: #{decoder_forward.13} parent=1 // pred_region
      _
    $region13: #{decoder_forward.13} parent=1 // pred_fallthru
      _
    // Predicated region
    $region14: #{decoder_forward.13} parent=1 // pred_check
      _
    $region15: #{decoder_forward.13} parent=1 // pred_check_branch
      %27 = sbr.rel (0) target = $region17
    $region16: #{decoder_forward.13} parent=1 // pred_region
      %29 = dma.done [#allocation4], 3072
    $region17: #{decoder_forward.13} parent=1 // pred_fallthru
      _
    %p30 = scmp.eq.s32.totalorder 0, 0
    // Predicated region
    $region18: #{decoder_forward.13} parent=1 // pred_check
      %p31 = pneg %p30
    $region19: #{decoder_forward.13} parent=1 // pred_check_branch
      %33 = sbr.rel (%p31) target = $region21
    $region20: #{decoder_forward.13} parent=1 // pred_region
      %34 = vst [vmem:[#allocation2] sm:$0xff] 0.0
      %35 = vst [vmem:[#allocation2 + $0x8] sm:$0xff] 0.0
      %36 = vst [vmem:[#allocation2 + $0x10] sm:$0xff] 0.0
      %37 = vst [vmem:[#allocation2 + $0x18] sm:$0xff] 0.0
      %38 = vst [vmem:[#allocation2 + $0x20] sm:$0xff] 0.0
      %39 = vst [vmem:[#allocation2 + $0x28] sm:$0xff] 0.0
      %40 = vst [vmem:[#allocation2 + $0x30] sm:$0xff] 0.0
      %41 = vst [vmem:[#allocation2 + $0x38] sm:$0xff] 0.0
      %42 = vst [vmem:[#allocation2 + $0x40] sm:$0xff] 0.0
      %43 = vst [vmem:[#allocation2 + $0x48] sm:$0xff] 0.0
      %44 = vst [vmem:[#allocation2 + $0x50] sm:$0xff] 0.0
      %45 = vst [vmem:[#allocation2 + $0x58] sm:$0xff] 0.0
    $region21: #{decoder_forward.13} parent=1 // pred_fallthru
      _
    %v46 = vld [vmem:[#allocation2] sm:$0xff]
    %v47 = vld [vmem:[#allocation2 + $0x8] sm:$0xff]
    %v48 = vld [vmem:[#allocation2 + $0x10] sm:$0xff]
    %v49 = vld [vmem:[#allocation2 + $0x18] sm:$0xff]
    %v50 = vld [vmem:[#allocation2 + $0x20] sm:$0xff]
    %v51 = vld [vmem:[#allocation2 + $0x28] sm:$0xff]
    %v52 = vld [vmem:[#allocation2 + $0x30] sm:$0xff]
    %v53 = vld [vmem:[#allocation2 + $0x38] sm:$0xff]
    %v54 = vld [vmem:[#allocation2 + $0x40] sm:$0xff]
    %v55 = vld [vmem:[#allocation2 + $0x48] sm:$0xff]
    %v56 = vld [vmem:[#allocation2 + $0x50] sm:$0xff]
    %v57 = vld [vmem:[#allocation2 + $0x58] sm:$0xff]
    %v58 = vld [vmem:[%s0] sm:$0xff]
    %v59 = vld [vmem:[%s0 + $0x8] sm:$0xff]
    %v60 = vld [vmem:[%s0 + $0x10] sm:$0xff]
    %v61 = vld [vmem:[%s0 + $0x18] sm:$0xff]
    %v62 = vpack.c.bf16 %v59, %v58
    %v63 = vpack.c.bf16 %v61, %v60
    %v64 = vld [vmem:[#allocation3] sm:$0xff]
    %v65 = vld [vmem:[#allocation3 + $0x8] sm:$0xf]
    %v66 = vld [vmem:[#allocation3 + $0xc] sm:$0xff]
    %v67 = vld [vmem:[#allocation3 + $0x14] sm:$0xf]
    %v68 = vld [vmem:[#allocation3 + $0x18] sm:$0xff]
    %v69 = vld [vmem:[#allocation3 + $0x20] sm:$0xf]
    %v70 = vld [vmem:[#allocation3 + $0x24] sm:$0xff]
    %v71 = vld [vmem:[#allocation3 + $0x2c] sm:$0xf]
    %v72 = vld [vmem:[#allocation3 + $0x30] sm:$0xff]
    %v73 = vld [vmem:[#allocation3 + $0x38] sm:$0xf]
    %v74 = vld [vmem:[#allocation3 + $0x3c] sm:$0xff]
    %v75 = vld [vmem:[#allocation3 + $0x44] sm:$0xf]
    %v76 = vld [vmem:[#allocation3 + $0x48] sm:$0xff]
    %v77 = vld [vmem:[#allocation3 + $0x50] sm:$0xf]
    %v78 = vld [vmem:[#allocation3 + $0x54] sm:$0xff]
    %v79 = vld [vmem:[#allocation3 + $0x5c] sm:$0xf]
    %v80 = vld [vmem:[#allocation3 + $0x60] sm:$0xff]
    %v81 = vld [vmem:[#allocation3 + $0x68] sm:$0xf]
    %v82 = vld [vmem:[#allocation3 + $0x6c] sm:$0xff]
    %v83 = vld [vmem:[#allocation3 + $0x74] sm:$0xf]
    %v84 = vld [vmem:[#allocation3 + $0x78] sm:$0xff]
    %v85 = vld [vmem:[#allocation3 + $0x80] sm:$0xf]
    %v86 = vld [vmem:[#allocation3 + $0x84] sm:$0xff]
    %v87 = vld [vmem:[#allocation3 + $0x8c] sm:$0xf]
    %v88 = vld [vmem:[#allocation3 + $0x90] sm:$0xff]
    %v89 = vld [vmem:[#allocation3 + $0x98] sm:$0xf]
    %v90 = vld [vmem:[#allocation3 + $0x9c] sm:$0xff]
    %v91 = vld [vmem:[#allocation3 + $0xa4] sm:$0xf]
    %v92 = vld [vmem:[#allocation3 + $0xa8] sm:$0xff]
    %v93 = vld [vmem:[#allocation3 + $0xb0] sm:$0xf]
    %v94 = vld [vmem:[#allocation3 + $0xb4] sm:$0xff]
    %v95 = vld [vmem:[#allocation3 + $0xbc] sm:$0xf]
    %v128 = vunpack.c.l.b16 %v64
    %v129 = vunpack.c.h.b16 %v64
    %v130 = vunpack.c.l.b16 %v65
    %v131 = vunpack.c.l.b16 %v66
    %v132 = vunpack.c.h.b16 %v66
    %v133 = vunpack.c.l.b16 %v67
    %v134 = vunpack.c.l.b16 %v68
    %v135 = vunpack.c.h.b16 %v68
    %v136 = vunpack.c.l.b16 %v69
    %v137 = vunpack.c.l.b16 %v70
    %v138 = vunpack.c.h.b16 %v70
    %v139 = vunpack.c.l.b16 %v71
    %v140 = vunpack.c.l.b16 %v72
    %v141 = vunpack.c.h.b16 %v72
    %v142 = vunpack.c.l.b16 %v73
    %v143 = vunpack.c.l.b16 %v74
    %v144 = vunpack.c.h.b16 %v74
    %v145 = vunpack.c.l.b16 %v75
    %v146 = vunpack.c.l.b16 %v76
    %v147 = vunpack.c.h.b16 %v76
    %v148 = vunpack.c.l.b16 %v77
    %v149 = vunpack.c.l.b16 %v78
    %v150 = vunpack.c.h.b16 %v78
    %v151 = vunpack.c.l.b16 %v79
    %v152 = vunpack.c.l.b16 %v80
    %v153 = vunpack.c.h.b16 %v80
    %v154 = vunpack.c.l.b16 %v81
    %v155 = vunpack.c.l.b16 %v82
    %v156 = vunpack.c.h.b16 %v82
    %v157 = vunpack.c.l.b16 %v83
    %v158 = vunpack.c.l.b16 %v84
    %v159 = vunpack.c.h.b16 %v84
    %v160 = vunpack.c.l.b16 %v85
    %v161 = vunpack.c.l.b16 %v86
    %v162 = vunpack.c.h.b16 %v86
    %v163 = vunpack.c.l.b16 %v87
    %v164 = vunpack.c.l.b16 %v88
    %v165 = vunpack.c.h.b16 %v88
    %v166 = vunpack.c.l.b16 %v89
    %v167 = vunpack.c.l.b16 %v90
    %v168 = vunpack.c.h.b16 %v90
    %v169 = vunpack.c.l.b16 %v91
    %v170 = vunpack.c.l.b16 %v92
    %v171 = vunpack.c.h.b16 %v92
    %v172 = vunpack.c.l.b16 %v93
    %v173 = vunpack.c.l.b16 %v94
    %v174 = vunpack.c.h.b16 %v94
    %v175 = vunpack.c.l.b16 %v95
    %v176 = vpack.c.b16 %v131, %v128
    %v177 = vpack.c.b16 %v132, %v129
    %v178 = vpack.c.b16 %v133, %v130
    %v179 = vpack.c.b16 %v137, %v134
    %v180 = vpack.c.b16 %v138, %v135
    %v181 = vpack.c.b16 %v139, %v136
    %v182 = vpack.c.b16 %v143, %v140
    %v183 = vpack.c.b16 %v144, %v141
    %v184 = vpack.c.b16 %v145, %v142
    %v185 = vpack.c.b16 %v149, %v146
    %v186 = vpack.c.b16 %v150, %v147
    %v187 = vpack.c.b16 %v151, %v148
    %v188 = vpack.c.b16 %v155, %v152
    %v189 = vpack.c.b16 %v156, %v153
    %v190 = vpack.c.b16 %v157, %v154
    %v191 = vpack.c.b16 %v161, %v158
    %v192 = vpack.c.b16 %v162, %v159
    %v193 = vpack.c.b16 %v163, %v160
    %v194 = vpack.c.b16 %v167, %v164
    %v195 = vpack.c.b16 %v168, %v165
    %v196 = vpack.c.b16 %v169, %v166
    %v197 = vpack.c.b16 %v173, %v170
    %v198 = vpack.c.b16 %v174, %v171
    %v199 = vpack.c.b16 %v175, %v172
    %224 = vmatpush.bf16.msra.mxu0 %v197
    %225 = vmatpush.bf16.msra.mxu0 %v194
    %226 = vmatpush.bf16.msra.mxu0 %v191
    %227 = vmatpush.bf16.msra.mxu0 %v188
    %228 = vmatpush.bf16.msra.mxu0 %v185
    %229 = vmatpush.bf16.msra.mxu0 %v182
    %230 = vmatpush.bf16.msra.mxu0 %v179
    %231 = vmatpush.bf16.msra.mxu0 %v176
    %232 = vmatmul.bf16.gmra.mxu0 %v62
    %v233 = vpop.f32.mrf.mxu0
    %v234 = vadd.f32 0.0, %v233
    %v235 = vpop.f32.mrf.mxu0
    %v236 = vadd.f32 0.0, %v235
    %237 = vmatmul.bf16.gmra.mxu0 %v63
    %v238 = vpop.f32.mrf.mxu0
    %v239 = vadd.f32 0.0, %v238
    %v240 = vpop.f32.mrf.mxu0
    %v241 = vadd.f32 0.0, %v240
    %242 = vdwg.mxu0
    %243 = vmatpush.bf16.msra.mxu0 %v198
    %244 = vmatpush.bf16.msra.mxu0 %v195
    %245 = vmatpush.bf16.msra.mxu0 %v192
    %246 = vmatpush.bf16.msra.mxu0 %v189
    %247 = vmatpush.bf16.msra.mxu0 %v186
    %248 = vmatpush.bf16.msra.mxu0 %v183
    %249 = vmatpush.bf16.msra.mxu0 %v180
    %250 = vmatpush.bf16.msra.mxu0 %v177
    %251 = vmatmul.bf16.gmra.mxu0 %v62
    %v252 = vpop.f32.mrf.mxu0
    %v253 = vadd.f32 0.0, %v252
    %v254 = vpop.f32.mrf.mxu0
    %v255 = vadd.f32 0.0, %v254
    %256 = vmatmul.bf16.gmra.mxu0 %v63
    %v257 = vpop.f32.mrf.mxu0
    %v258 = vadd.f32 0.0, %v257
    %v259 = vpop.f32.mrf.mxu0
    %v260 = vadd.f32 0.0, %v259
    %261 = vdwg.mxu0
    %262 = vmatpush.bf16.msra.mxu0 %v199
    %263 = vmatpush.bf16.msra.mxu0 %v196
    %264 = vmatpush.bf16.msra.mxu0 %v193
    %265 = vmatpush.bf16.msra.mxu0 %v190
    %266 = vmatpush.bf16.msra.mxu0 %v187
    %267 = vmatpush.bf16.msra.mxu0 %v184
    %268 = vmatpush.bf16.msra.mxu0 %v181
    %269 = vmatpush.bf16.msra.mxu0 %v178
    %270 = vmatmul.bf16.gmra.mxu0 %v62
    %v271 = vpop.f32.mrf.mxu0
    %v272 = vadd.f32 0.0, %v271
    %v273 = vpop.f32.mrf.mxu0
    %v274 = vadd.f32 0.0, %v273
    %275 = vmatmul.bf16.gmra.mxu0 %v63
    %v276 = vpop.f32.mrf.mxu0
    %v277 = vadd.f32 0.0, %v276
    %v278 = vpop.f32.mrf.mxu0
    %v279 = vadd.f32 0.0, %v278
    %280 = vdwg.mxu0
    %v281 = vadd.f32 %v46, %v234
    %v282 = vadd.f32 %v47, %v253
    %v283 = vadd.f32 %v48, %v272
    %v284 = vadd.f32 %v49, %v236
    %v285 = vadd.f32 %v50, %v255
    %v286 = vadd.f32 %v51, %v274
    %v287 = vadd.f32 %v52, %v239
    %v288 = vadd.f32 %v53, %v258
    %v289 = vadd.f32 %v54, %v277
    %v290 = vadd.f32 %v55, %v241
    %v291 = vadd.f32 %v56, %v260
    %v292 = vadd.f32 %v57, %v279
    %293 = vst [vmem:[#allocation2] sm:$0xff] %v281
    %294 = vst [vmem:[#allocation2 + $0x8] sm:$0xff] %v282
    %295 = vst [vmem:[#allocation2 + $0x10] sm:$0xff] %v283
    %296 = vst [vmem:[#allocation2 + $0x18] sm:$0xff] %v284
    %297 = vst [vmem:[#allocation2 + $0x20] sm:$0xff] %v285
    %298 = vst [vmem:[#allocation2 + $0x28] sm:$0xff] %v286
    %299 = vst [vmem:[#allocation2 + $0x30] sm:$0xff] %v287
    %300 = vst [vmem:[#allocation2 + $0x38] sm:$0xff] %v288
    %301 = vst [vmem:[#allocation2 + $0x40] sm:$0xff] %v289
    %302 = vst [vmem:[#allocation2 + $0x48] sm:$0xff] %v290
    %303 = vst [vmem:[#allocation2 + $0x50] sm:$0xff] %v291
    %304 = vst [vmem:[#allocation2 + $0x58] sm:$0xff] %v292
    // Predicated region
    $region22: #{decoder_forward.13} parent=1 // pred_check
      %p305 = pneg %p30
    $region23: #{decoder_forward.13} parent=1 // pred_check_branch
      %307 = sbr.rel (%p305) target = $region25
    $region24: #{decoder_forward.13} parent=1 // pred_region
      %v308 = vld [vmem:[#allocation2] sm:$0xff]
      %v309 = vld [vmem:[#allocation2 + $0x8] sm:$0xff]
      %v310 = vld [vmem:[#allocation2 + $0x10] sm:$0xff]
      %v311 = vld [vmem:[#allocation2 + $0x18] sm:$0xff]
      %v312 = vld [vmem:[#allocation2 + $0x20] sm:$0xff]
      %v313 = vld [vmem:[#allocation2 + $0x28] sm:$0xff]
      %v314 = vld [vmem:[#allocation2 + $0x30] sm:$0xff]
      %v315 = vld [vmem:[#allocation2 + $0x38] sm:$0xff]
      %v316 = vld [vmem:[#allocation2 + $0x40] sm:$0xff]
      %v317 = vld [vmem:[#allocation2 + $0x48] sm:$0xff]
      %v318 = vld [vmem:[#allocation2 + $0x50] sm:$0xff]
      %v319 = vld [vmem:[#allocation2 + $0x58] sm:$0xff]
      %v320 = vld [vmem:[%s2] sm:$0x7]
      %v322 = vperm.slane %v320, 0
      %v323 = vperm.slane %v320, 1
      %v324 = vperm.slane %v320, 2
      %v328 = vadd.f32 %v308, %v322
      %v329 = vadd.f32 %v309, %v323
      %v330 = vadd.f32 %v310, %v324
      %v331 = vadd.f32 %v311, %v322
      %v332 = vadd.f32 %v312, %v323
      %v333 = vadd.f32 %v313, %v324
      %v334 = vadd.f32 %v314, %v322
      %v335 = vadd.f32 %v315, %v323
      %v336 = vadd.f32 %v316, %v324
      %v337 = vadd.f32 %v317, %v322
      %v338 = vadd.f32 %v318, %v323
      %v339 = vadd.f32 %v319, %v324
      %340 = vst [vmem:[%s3] sm:$0xff] %v328
      %341 = vst [vmem:[%s3 + $0x8] sm:$0xff] %v329
      %342 = vst [vmem:[%s3 + $0x10] sm:$0xff] %v330
      %343 = vst [vmem:[%s3 + $0x18] sm:$0xff] %v331
      %344 = vst [vmem:[%s3 + $0x20] sm:$0xff] %v332
      %345 = vst [vmem:[%s3 + $0x28] sm:$0xff] %v333
      %346 = vst [vmem:[%s3 + $0x30] sm:$0xff] %v334
      %347 = vst [vmem:[%s3 + $0x38] sm:$0xff] %v335
      %348 = vst [vmem:[%s3 + $0x40] sm:$0xff] %v336
      %349 = vst [vmem:[%s3 + $0x48] sm:$0xff] %v337
      %350 = vst [vmem:[%s3 + $0x50] sm:$0xff] %v338
      %351 = vst [vmem:[%s3 + $0x58] sm:$0xff] %v339
    $region25: #{decoder_forward.13} parent=1 // pred_fallthru
      _
    // Predicated region
    $region26: #{decoder_forward.13} parent=1 // pred_check
      _
    $region27: #{decoder_forward.13} parent=1 // pred_check_branch
      %353 = sbr.rel (0) target = $region29
    $region28: #{decoder_forward.13} parent=1 // pred_region
      _
    $region29: #{decoder_forward.13} parent=1 // pred_fallthru
      _
    // Predicated region
    $region30: #{decoder_forward.13} parent=1 // pred_check
      _
    $region31: #{decoder_forward.13} parent=1 // pred_check_branch
      %355 = sbr.rel (0) target = $region33
    $region32: #{decoder_forward.13} parent=1 // pred_region
      _
    $region33: #{decoder_forward.13} parent=1 // pred_fallthru
      _
    %356 = vsyncpa [#allocation4], 1

// kernel: decoder_forward.14
$region0: #{decoder_forward.14}
  #allocation0 [shape = 'u32[]', space=smem, size = 0x4, offset = 0x4, fixed_abs, tag = 'smem constant byte address 0x4 - core index']
  #allocation1 [shape = 'u32[72,128]{1,0:T(1,128)}', space=vmem, size = 0x9000, scoped, tag = 'internal scratch']
  #allocation2 [shape = 'bf16[16,128]{1,0:T(8,128)(2,1)}', space=vmem, size = 0x1000, scoped, tag = 'scratch operand']
  %s0 = inlined_call_operand.vmem [shape: f32[2,16,384], index: 0, kind: input, shape index: {}, may-alias: {0,1,2}]
  %s1 = inlined_call_operand.vmem [shape: f32[2,16,384], index: 1, kind: input, shape index: {}, may-alias: {0,1,2}]
  %s2 = inlined_call_operand.vmem [shape: f32[2,16,384], index: 2, kind: input, shape index: {}, may-alias: {0,1,2}]
  %s3 = inlined_call_operand.hbm [shape: bf16[128,128], index: 3, kind: input, shape index: {}]
  %s4 = inlined_call_operand.vmem [shape: f32[1,128], index: 4, kind: input, shape index: {}]
  %s5 = inlined_call_operand.vmem [shape: f32[2,16,128], index: 5, kind: input, shape index: {}]
  %s6 = inlined_call_operand.vmem [shape: f32[1,128], index: 6, kind: input, shape index: {}]
  %s7 = inlined_call_operand.vmem [shape: f32[1,128], index: 7, kind: input, shape index: {}]
  %s8 = inlined_call_operand.vmem [shape: f32[2,16,128], index: 8, kind: output, shape index: {}]
  %s9 = sld [smem:[#allocation0]]
  $region183: #{decoder_forward.14} parent=0
    _
  %s11 = ssub.s32 1, %s9
  %s12 = scalar_select 0, %s11, %s9
  $region1: #{decoder_forward.14} parent=0
    #allocation3 [shape = 'u8[16384]{0}', space=vmem, size = 0x4000, scoped, tag = 'input window, operand 0']
    #allocation4 [shape = 'u8[16384]{0}', space=vmem, size = 0x4000, scoped, tag = 'input window, operand 1']
    #allocation5 [shape = 'u8[16384]{0}', space=vmem, size = 0x4000, scoped, tag = 'input window, operand 2']
    #allocation6 [shape = 'u8[32768]{0}', space=vmem, size = 0x8000, scoped, tag = 'input window, operand 3, single buffered']
    #allocation7 [shape = 's32[2]{0}', space=sflag, size = 0x8, scoped, tag = 'scoped memory for decoder_forward.14']
    %13 = vsyncpa [#allocation7], 0
    loop: start=0, step=1, limit=4
    $region2: #{decoder_forward.14} parent=1 // loop_pre_header
      _
    $region3: #{decoder_forward.14} parent=1 // loop_header
      %s15 = sphi 0, %s19
      %p16 = scmp.ge.s32.totalorder %s15, 4
      %s25 = sphi 0, %s27
      %s28 = sphi 0, %s25
      %s29 = sphi 0, %s28
      %s45 = sphi 0, %s29
      %s51 = sphi 0, %s53
      %s54 = sphi 0, %s51
      %s55 = sphi 0, %s54
      %s71 = sphi 0, %s55
      %s77 = sphi 0, %s79
      %s80 = sphi 0, %s77
      %s81 = sphi 0, %s80
      %s97 = sphi 0, %s81
      %s101 = sphi 0, %s101
      %s103 = sphi 0, %s101
      %s104 = sphi 0, %s103
      %s118 = sphi 0, %s104
      %s122 = sphi 0, %s122
      %s124 = sphi 0, %s122
      %s125 = sphi 0, %s124
      %s139 = sphi 0, %s125
      %s145 = sphi 0, %s147
      %s148 = sphi 0, %s145
      %s149 = sphi 0, %s148
      %s165 = sphi 0, %s149
      %s169 = sphi 0, %s169
      %s171 = sphi 0, %s169
      %s172 = sphi 0, %s171
      %s186 = sphi 0, %s172
      %s190 = sphi 0, %s190
      %s192 = sphi 0, %s190
      %s193 = sphi 0, %s192
      %s207 = sphi 0, %s193
      %s213 = sphi 0, %s215
      %s216 = sphi 0, %s213
      %s217 = sphi 0, %s216
      %s233 = sphi 0, %s217
    $region4: #{decoder_forward.14} parent=1 // loop_header_branch
      %18 = sbr.rel (%p16) target = $region8
    $region5: #{decoder_forward.14} parent=1 // loop_body
      %s20 = ssub.s32 %s15, 1
      %s21 = ssub.s32 %s15, 2
      %s22 = sadd.s32 %s15, 1
      %s23 = ssub.s32 %s15, %s22
      %p24 = scmp.eq.s32.totalorder %s23, 0
      %s26 = sadd.s32 %s25, 1
      %s27 = scalar_select %p24, %s25, %s26
      %p30 = pneg %p24
      %p31 = scmp.eq.s32.totalorder %s15, 1
      %p32 = por %p30, %p31
      %p33 = scmp.ne.s32.totalorder %s25, %s28
      %p34 = scmp.eq.s32.totalorder %s15, 0
      %p35 = por %p33, %p34
      %p36 = scmp.ne.s32.totalorder %s25, %s28
      %p37 = scmp.eq.s32.totalorder %s20, 1
      %p38 = por %p36, %p37
      %p39 = scmp.ne.s32.totalorder %s28, %s29
      %p40 = scmp.eq.s32.totalorder %s20, 0
      %p41 = por %p39, %p40
      %p42 = scmp.ne.s32.totalorder %s28, %s29
      %p43 = scmp.eq.s32.totalorder %s21, 1
      %p44 = por %p42, %p43
      %p46 = scmp.ne.s32.totalorder %s29, %s45
      %p47 = scmp.eq.s32.totalorder %s21, 0
      %p48 = por %p46, %p47
      %s49 = ssub.s32 %s15, %s22
      %p50 = scmp.eq.s32.totalorder %s49, 0
      %s52 = sadd.s32 %s51, 1
      %s53 = scalar_select %p50, %s51, %s52
      %p56 = pneg %p50
      %p57 = scmp.eq.s32.totalorder %s15, 1
      %p58 = por %p56, %p57
      %p59 = scmp.ne.s32.totalorder %s51, %s54
      %p60 = scmp.eq.s32.totalorder %s15, 0
      %p61 = por %p59, %p60
      %p62 = scmp.ne.s32.totalorder %s51, %s54
      %p63 = scmp.eq.s32.totalorder %s20, 1
      %p64 = por %p62, %p63
      %p65 = scmp.ne.s32.totalorder %s54, %s55
      %p66 = scmp.eq.s32.totalorder %s20, 0
      %p67 = por %p65, %p66
      %p68 = scmp.ne.s32.totalorder %s54, %s55
      %p69 = scmp.eq.s32.totalorder %s21, 1
      %p70 = por %p68, %p69
      %p72 = scmp.ne.s32.totalorder %s55, %s71
      %p73 = scmp.eq.s32.totalorder %s21, 0
      %p74 = por %p72, %p73
      %s75 = ssub.s32 %s15, %s22
      %p76 = scmp.eq.s32.totalorder %s75, 0
      %s78 = sadd.s32 %s77, 1
      %s79 = scalar_select %p76, %s77, %s78
      %p82 = pneg %p76
      %p83 = scmp.eq.s32.totalorder %s15, 1
      %p84 = por %p82, %p83
      %p85 = scmp.ne.s32.totalorder %s77, %s80
      %p86 = scmp.eq.s32.totalorder %s15, 0
      %p87 = por %p85, %p86
      %p88 = scmp.ne.s32.totalorder %s77, %s80
      %p89 = scmp.eq.s32.totalorder %s20, 1
      %p90 = por %p88, %p89
      %p91 = scmp.ne.s32.totalorder %s80, %s81
      %p92 = scmp.eq.s32.totalorder %s20, 0
      %p93 = por %p91, %p92
      %p94 = scmp.ne.s32.totalorder %s80, %s81
      %p95 = scmp.eq.s32.totalorder %s21, 1
      %p96 = por %p94, %p95
      %p98 = scmp.ne.s32.totalorder %s81, %s97
      %p99 = scmp.eq.s32.totalorder %s21, 0
      %p100 = por %p98, %p99
      %s102 = sadd.s32 %s101, 1
      %p105 = scmp.eq.s32.totalorder %s15, 1
      %p106 = scmp.ne.s32.totalorder %s101, %s103
      %p107 = scmp.eq.s32.totalorder %s15, 0
      %p108 = por %p106, %p107
      %p109 = scmp.ne.s32.totalorder %s101, %s103
      %p110 = scmp.eq.s32.totalorder %s20, 1
      %p111 = por %p109, %p110
      %p112 = scmp.ne.s32.totalorder %s103, %s104
      %p113 = scmp.eq.s32.totalorder %s20, 0
      %p114 = por %p112, %p113
      %p115 = scmp.ne.s32.totalorder %s103, %s104
      %p116 = scmp.eq.s32.totalorder %s21, 1
      %p117 = por %p115, %p116
      %p119 = scmp.ne.s32.totalorder %s104, %s118
      %p120 = scmp.eq.s32.totalorder %s21, 0
      %p121 = por %p119, %p120
      %s123 = sadd.s32 %s122, 1
      %p126 = scmp.eq.s32.totalorder %s15, 1
      %p127 = scmp.ne.s32.totalorder %s122, %s124
      %p128 = scmp.eq.s32.totalorder %s15, 0
      %p129 = por %p127, %p128
      %p130 = scmp.ne.s32.totalorder %s122, %s124
      %p131 = scmp.eq.s32.totalorder %s20, 1
      %p132 = por %p130, %p131
      %p133 = scmp.ne.s32.totalorder %s124, %s125
      %p134 = scmp.eq.s32.totalorder %s20, 0
      %p135 = por %p133, %p134
      %p136 = scmp.ne.s32.totalorder %s124, %s125
      %p137 = scmp.eq.s32.totalorder %s21, 1
      %p138 = por %p136, %p137
      %p140 = scmp.ne.s32.totalorder %s125, %s139
      %p141 = scmp.eq.s32.totalorder %s21, 0
      %p142 = por %p140, %p141
      %s143 = ssub.s32 %s15, %s22
      %p144 = scmp.eq.s32.totalorder %s143, 0
      %s146 = sadd.s32 %s145, 1
      %s147 = scalar_select %p144, %s145, %s146
      %p150 = pneg %p144
      %p151 = scmp.eq.s32.totalorder %s15, 1
      %p152 = por %p150, %p151
      %p153 = scmp.ne.s32.totalorder %s145, %s148
      %p154 = scmp.eq.s32.totalorder %s15, 0
      %p155 = por %p153, %p154
      %p156 = scmp.ne.s32.totalorder %s145, %s148
      %p157 = scmp.eq.s32.totalorder %s20, 1
      %p158 = por %p156, %p157
      %p159 = scmp.ne.s32.totalorder %s148, %s149
      %p160 = scmp.eq.s32.totalorder %s20, 0
      %p161 = por %p159, %p160
      %p162 = scmp.ne.s32.totalorder %s148, %s149
      %p163 = scmp.eq.s32.totalorder %s21, 1
      %p164 = por %p162, %p163
      %p166 = scmp.ne.s32.totalorder %s149, %s165
      %p167 = scmp.eq.s32.totalorder %s21, 0
      %p168 = por %p166, %p167
      %s170 = sadd.s32 %s169, 1
      %p173 = scmp.eq.s32.totalorder %s15, 1
      %p174 = scmp.ne.s32.totalorder %s169, %s171
      %p175 = scmp.eq.s32.totalorder %s15, 0
      %p176 = por %p174, %p175
      %p177 = scmp.ne.s32.totalorder %s169, %s171
      %p178 = scmp.eq.s32.totalorder %s20, 1
      %p179 = por %p177, %p178
      %p180 = scmp.ne.s32.totalorder %s171, %s172
      %p181 = scmp.eq.s32.totalorder %s20, 0
      %p182 = por %p180, %p181
      %p183 = scmp.ne.s32.totalorder %s171, %s172
      %p184 = scmp.eq.s32.totalorder %s21, 1
      %p185 = por %p183, %p184
      %p187 = scmp.ne.s32.totalorder %s172, %s186
      %p188 = scmp.eq.s32.totalorder %s21, 0
      %p189 = por %p187, %p188
      %s191 = sadd.s32 %s190, 1
      %p194 = scmp.eq.s32.totalorder %s15, 1
      %p195 = scmp.ne.s32.totalorder %s190, %s192
      %p196 = scmp.eq.s32.totalorder %s15, 0
      %p197 = por %p195, %p196
      %p198 = scmp.ne.s32.totalorder %s190, %s192
      %p199 = scmp.eq.s32.totalorder %s20, 1
      %p200 = por %p198, %p199
      %p201 = scmp.ne.s32.totalorder %s192, %s193
      %p202 = scmp.eq.s32.totalorder %s20, 0
      %p203 = por %p201, %p202
      %p204 = scmp.ne.s32.totalorder %s192, %s193
      %p205 = scmp.eq.s32.totalorder %s21, 1
      %p206 = por %p204, %p205
      %p208 = scmp.ne.s32.totalorder %s193, %s207
      %p209 = scmp.eq.s32.totalorder %s21, 0
      %p210 = por %p208, %p209
      %s211 = ssub.s32 %s15, %s22
      %p212 = scmp.eq.s32.totalorder %s211, 0
      %s214 = sadd.s32 %s213, 1
      %s215 = scalar_select %p212, %s213, %s214
      %p218 = pneg %p212
      %p219 = scmp.eq.s32.totalorder %s15, 1
      %p220 = por %p218, %p219
      %p221 = scmp.ne.s32.totalorder %s213, %s216
      %p222 = scmp.eq.s32.totalorder %s15, 0
      %p223 = por %p221, %p222
      %p224 = scmp.ne.s32.totalorder %s213, %s216
      %p225 = scmp.eq.s32.totalorder %s20, 1
      %p226 = por %p224, %p225
      %p227 = scmp.ne.s32.totalorder %s216, %s217
      %p228 = scmp.eq.s32.totalorder %s20, 0
      %p229 = por %p227, %p228
      %p230 = scmp.ne.s32.totalorder %s216, %s217
      %p231 = scmp.eq.s32.totalorder %s21, 1
      %p232 = por %p230, %p231
      %p234 = scmp.ne.s32.totalorder %s217, %s233
      %p235 = scmp.eq.s32.totalorder %s21, 0
      %p236 = por %p234, %p235
      %p237 = scmp.le.s32.totalorder 1, %s15
      %p238 = scmp.lt.s32.totalorder %s15, 3
      %p239 = pnand %p237, %p238
      %p240 = pneg %p239
      // Predicated region
      $region9: #{decoder_forward.14} parent=5 // pred_check
        _
      $region10: #{decoder_forward.14} parent=5 // pred_check_branch
        %242 = sbr.rel (%p239) target = $region12
      $region11: #{decoder_forward.14} parent=5 // pred_region
        %s243 = ssub.s32 %s15, 1
        // Predicated region
        $region13: #{decoder_forward.14} parent=11 // pred_check
          %p244 = pneg %p114
        $region14: #{decoder_forward.14} parent=11 // pred_check_branch
          %246 = sbr.rel (%p244) target = $region16
        $region15: #{decoder_forward.14} parent=11 // pred_region
          %248 = vsyncadd [#allocation7], 0
          %s249 = sshll.u32 %s3, 4
          %s250 = int_to_ptr.hbm [resolvable:$true] %s249
          %s251 = sshll.u32 [#allocation6], 4
          %s252 = int_to_ptr.vmem [resolvable:$true] %s251
          %257 = dma.hbm_to_vmem [thread:$0]  %s250, 1024, %s252, [#allocation7], 64, 64, 4
        $region16: #{decoder_forward.14} parent=11 // pred_fallthru
          _
        // Predicated region
        $region17: #{decoder_forward.14} parent=11 // pred_check
          %p258 = pneg %p135
        $region18: #{decoder_forward.14} parent=11 // pred_check_branch
          %260 = sbr.rel (%p258) target = $region20
        $region19: #{decoder_forward.14} parent=11 // pred_region
          _
        $region20: #{decoder_forward.14} parent=11 // pred_fallthru
          _
        // Predicated region
        $region21: #{decoder_forward.14} parent=11 // pred_check
          %p261 = pneg %p182
        $region22: #{decoder_forward.14} parent=11 // pred_check_branch
          %263 = sbr.rel (%p261) target = $region24
        $region23: #{decoder_forward.14} parent=11 // pred_region
          _
        $region24: #{decoder_forward.14} parent=11 // pred_fallthru
          _
        // Predicated region
        $region25: #{decoder_forward.14} parent=11 // pred_check
          %p264 = pneg %p203
        $region26: #{decoder_forward.14} parent=11 // pred_check_branch
          %266 = sbr.rel (%p264) target = $region28
        $region27: #{decoder_forward.14} parent=11 // pred_region
          _
        $region28: #{decoder_forward.14} parent=11 // pred_fallthru
          _
      $region12: #{decoder_forward.14} parent=5 // pred_fallthru
        _
      %p267 = scmp.lt.s32.totalorder %s15, 2
      // Predicated region
      $region29: #{decoder_forward.14} parent=5 // pred_check
        %p268 = pneg %p267
      $region30: #{decoder_forward.14} parent=5 // pred_check_branch
        %270 = sbr.rel (%p268) target = $region32
      $region31: #{decoder_forward.14} parent=5 // pred_region
        // Predicated region
        $region33: #{decoder_forward.14} parent=31 // pred_check
          %p271 = pneg %p35
        $region34: #{decoder_forward.14} parent=31 // pred_check_branch
          %273 = sbr.rel (%p271) target = $region36
        $region35: #{decoder_forward.14} parent=31 // pred_region
          %s274 = sand.u32 %s25, 1
          %s275 = sand.u32 %s25, 1
          %s276 = smul.addr %s275, 16
          %s277 = scalar_lea.vmem [#allocation3], %s276
          %s278 = smul.addr %s15, 6
          %s279 = smul.addr %s278, 8
          %s280 = scalar_lea.vmem %s0, %s279
          // Predicated region
          $region37: #{decoder_forward.14} parent=35 // pred_check
            _
          $region38: #{decoder_forward.14} parent=35 // pred_check_branch
            %282 = sbr.rel (0) target = $region40
          $region39: #{decoder_forward.14} parent=35 // pred_region
            // Predicated region
            $region41: #{decoder_forward.14} parent=39 // pred_check
              _
            $region42: #{decoder_forward.14} parent=39 // pred_check_branch
              %284 = sbr.rel (0) target = $region44
            $region43: #{decoder_forward.14} parent=39 // pred_region
              // Predicated region
              $region56: #{decoder_forward.14} parent=43 // pred_check
                _
              $region57: #{decoder_forward.14} parent=43 // pred_check_branch
                %302 = sbr.rel (0) target = $region59
              $region58: #{decoder_forward.14} parent=43 // pred_region
                loop: start=0, step=1, limit=1
                $region60: #{decoder_forward.14} parent=58 // loop_pre_header
                  _
                $region61: #{decoder_forward.14} parent=58 // loop_header
                  %s304 = sphi 0, %s308
                  %p305 = scmp.ge.s32.totalorder %s304, 1
                  %s309 = sphi %s280, %s280
                  %s310 = sphi %s277, %s277
                $region62: #{decoder_forward.14} parent=58 // loop_header_branch
                  %307 = sbr.rel (%p305) target = $region66
                $region63: #{decoder_forward.14} parent=58 // loop_body
                  %v311 = vld [vmem:[%s309] sm:$0xff]
                  %312 = vst [vmem:[%s310] sm:$0xff] %v311
                  %v313 = vld [vmem:[%s309 + $0x18] sm:$0xff]
                  %314 = vst [vmem:[%s310 + $0x8] sm:$0xff] %v313
                $region64: #{decoder_forward.14} parent=58 // loop_footer
                  %s308 = sadd.s32 1, %s304
                $region65: #{decoder_forward.14} parent=58 // loop_footer_branch
                  %303 = sbr.rel target = $region61
                $region66: #{decoder_forward.14} parent=58 // loop_exit
                  _
              $region59: #{decoder_forward.14} parent=43 // pred_fallthru
                _
              // Predicated region
              $region67: #{decoder_forward.14} parent=43 // pred_check
                _
              $region68: #{decoder_forward.14} parent=43 // pred_check_branch
                %316 = sbr.rel target = $region70
              $region69: #{decoder_forward.14} parent=43 // pred_region
                _
              $region70: #{decoder_forward.14} parent=43 // pred_fallthru
                _
            $region44: #{decoder_forward.14} parent=39 // pred_fallthru
              _
            // Predicated region
            $region45: #{decoder_forward.14} parent=39 // pred_check
              _
            $region46: #{decoder_forward.14} parent=39 // pred_check_branch
              %286 = sbr.rel target = $region48
            $region47: #{decoder_forward.14} parent=39 // pred_region
              %s288 = ssub.s32 256, 1
              loop: start=0, step=1, limit=1
              $region49: #{decoder_forward.14} parent=47 // loop_pre_header
                _
              $region50: #{decoder_forward.14} parent=47 // loop_header
                %s290 = sphi 0, %s294
                %p291 = scmp.ge.s32.totalorder %s290, 1
                %s295 = sphi %s280, %s280
                %s296 = sphi %s277, %s277
              $region51: #{decoder_forward.14} parent=47 // loop_header_branch
                %293 = sbr.rel (%p291) target = $region55
              $region52: #{decoder_forward.14} parent=47 // loop_body
                %v297 = vld [vmem:[%s295] sm:%s288]
                %298 = vst [vmem:[%s296] sm:%s288] %v297
                %v299 = vld [vmem:[%s295 + $0x18] sm:%s288]
                %300 = vst [vmem:[%s296 + $0x8] sm:%s288] %v299
              $region53: #{decoder_forward.14} parent=47 // loop_footer
                %s294 = sadd.s32 1, %s290
              $region54: #{decoder_forward.14} parent=47 // loop_footer_branch
                %289 = sbr.rel target = $region50
              $region55: #{decoder_forward.14} parent=47 // loop_exit
                _
            $region48: #{decoder_forward.14} parent=39 // pred_fallthru
              _
          $region40: #{decoder_forward.14} parent=35 // pred_fallthru
            _
          %317 = vnop
        $region36: #{decoder_forward.14} parent=31 // pred_fallthru
          _
        // Predicated region
        $region71: #{decoder_forward.14} parent=31 // pred_check
          %p318 = pneg %p61
        $region72: #{decoder_forward.14} parent=31 // pred_check_branch
          %320 = sbr.rel (%p318) target = $region74
        $region73: #{decoder_forward.14} parent=31 // pred_region
          %s321 = sand.u32 %s51, 1
          %s322 = sand.u32 %s51, 1
          %s323 = smul.addr %s322, 16
          %s324 = scalar_lea.vmem [#allocation4], %s323
          %s325 = smul.addr %s15, 6
          %s326 = sadd.s32 1, %s325
          %s327 = smul.addr %s326, 8
          %s328 = scalar_lea.vmem %s1, %s327
          // Predicated region
          $region75: #{decoder_forward.14} parent=73 // pred_check
            _
          $region76: #{decoder_forward.14} parent=73 // pred_check_branch
            %330 = sbr.rel (0) target = $region78
          $region77: #{decoder_forward.14} parent=73 // pred_region
            // Predicated region
            $region79: #{decoder_forward.14} parent=77 // pred_check
              _
            $region80: #{decoder_forward.14} parent=77 // pred_check_branch
              %332 = sbr.rel (0) target = $region82
            $region81: #{decoder_forward.14} parent=77 // pred_region
              // Predicated region
              $region94: #{decoder_forward.14} parent=81 // pred_check
                _
              $region95: #{decoder_forward.14} parent=81 // pred_check_branch
                %350 = sbr.rel (0) target = $region97
              $region96: #{decoder_forward.14} parent=81 // pred_region
                loop: start=0, step=1, limit=1
                $region98: #{decoder_forward.14} parent=96 // loop_pre_header
                  _
                $region99: #{decoder_forward.14} parent=96 // loop_header
                  %s352 = sphi 0, %s356
                  %p353 = scmp.ge.s32.totalorder %s352, 1
                  %s357 = sphi %s328, %s328
                  %s358 = sphi %s324, %s324
                $region100: #{decoder_forward.14} parent=96 // loop_header_branch
                  %355 = sbr.rel (%p353) target = $region104
                $region101: #{decoder_forward.14} parent=96 // loop_body
                  %v359 = vld [vmem:[%s357] sm:$0xff]
                  %360 = vst [vmem:[%s358] sm:$0xff] %v359
                  %v361 = vld [vmem:[%s357 + $0x18] sm:$0xff]
                  %362 = vst [vmem:[%s358 + $0x8] sm:$0xff] %v361
                $region102: #{decoder_forward.14} parent=96 // loop_footer
                  %s356 = sadd.s32 1, %s352
                $region103: #{decoder_forward.14} parent=96 // loop_footer_branch
                  %351 = sbr.rel target = $region99
                $region104: #{decoder_forward.14} parent=96 // loop_exit
                  _
              $region97: #{decoder_forward.14} parent=81 // pred_fallthru
                _
              // Predicated region
              $region105: #{decoder_forward.14} parent=81 // pred_check
                _
              $region106: #{decoder_forward.14} parent=81 // pred_check_branch
                %364 = sbr.rel target = $region108
              $region107: #{decoder_forward.14} parent=81 // pred_region
                _
              $region108: #{decoder_forward.14} parent=81 // pred_fallthru
                _
            $region82: #{decoder_forward.14} parent=77 // pred_fallthru
              _
            // Predicated region
            $region83: #{decoder_forward.14} parent=77 // pred_check
              _
            $region84: #{decoder_forward.14} parent=77 // pred_check_branch
              %334 = sbr.rel target = $region86
            $region85: #{decoder_forward.14} parent=77 // pred_region
              %s336 = ssub.s32 256, 1
              loop: start=0, step=1, limit=1
              $region87: #{decoder_forward.14} parent=85 // loop_pre_header
                _
              $region88: #{decoder_forward.14} parent=85 // loop_header
                %s338 = sphi 0, %s342
                %p339 = scmp.ge.s32.totalorder %s338, 1
                %s343 = sphi %s328, %s328
                %s344 = sphi %s324, %s324
              $region89: #{decoder_forward.14} parent=85 // loop_header_branch
                %341 = sbr.rel (%p339) target = $region93
              $region90: #{decoder_forward.14} parent=85 // loop_body
                %v345 = vld [vmem:[%s343] sm:%s336]
                %346 = vst [vmem:[%s344] sm:%s336] %v345
                %v347 = vld [vmem:[%s343 + $0x18] sm:%s336]
                %348 = vst [vmem:[%s344 + $0x8] sm:%s336] %v347
              $region91: #{decoder_forward.14} parent=85 // loop_footer
                %s342 = sadd.s32 1, %s338
              $region92: #{decoder_forward.14} parent=85 // loop_footer_branch
                %337 = sbr.rel target = $region88
              $region93: #{decoder_forward.14} parent=85 // loop_exit
                _
            $region86: #{decoder_forward.14} parent=77 // pred_fallthru
              _
          $region78: #{decoder_forward.14} parent=73 // pred_fallthru
            _
          %365 = vnop
        $region74: #{decoder_forward.14} parent=31 // pred_fallthru
          _
        // Predicated region
        $region109: #{decoder_forward.14} parent=31 // pred_check
          %p366 = pneg %p87
        $region110: #{decoder_forward.14} parent=31 // pred_check_branch
          %368 = sbr.rel (%p366) target = $region112
        $region111: #{decoder_forward.14} parent=31 // pred_region
          %s369 = sand.u32 %s77, 1
          %s370 = sand.u32 %s77, 1
          %s371 = smul.addr %s370, 16
          %s372 = scalar_lea.vmem [#allocation5], %s371
          %s373 = smul.addr %s15, 6
          %s374 = sadd.s32 2, %s373
          %s375 = smul.addr %s374, 8
          %s376 = scalar_lea.vmem %s2, %s375
          // Predicated region
          $region113: #{decoder_forward.14} parent=111 // pred_check
            _
          $region114: #{decoder_forward.14} parent=111 // pred_check_branch
            %378 = sbr.rel (0) target = $region116
          $region115: #{decoder_forward.14} parent=111 // pred_region
            // Predicated region
            $region117: #{decoder_forward.14} parent=115 // pred_check
              _
            $region118: #{decoder_forward.14} parent=115 // pred_check_branch
              %380 = sbr.rel (0) target = $region120
            $region119: #{decoder_forward.14} parent=115 // pred_region
              // Predicated region
              $region132: #{decoder_forward.14} parent=119 // pred_check
                _
              $region133: #{decoder_forward.14} parent=119 // pred_check_branch
                %398 = sbr.rel (0) target = $region135
              $region134: #{decoder_forward.14} parent=119 // pred_region
                loop: start=0, step=1, limit=1
                $region136: #{decoder_forward.14} parent=134 // loop_pre_header
                  _
                $region137: #{decoder_forward.14} parent=134 // loop_header
                  %s400 = sphi 0, %s404
                  %p401 = scmp.ge.s32.totalorder %s400, 1
                  %s405 = sphi %s376, %s376
                  %s406 = sphi %s372, %s372
                $region138: #{decoder_forward.14} parent=134 // loop_header_branch
                  %403 = sbr.rel (%p401) target = $region142
                $region139: #{decoder_forward.14} parent=134 // loop_body
                  %v407 = vld [vmem:[%s405] sm:$0xff]
                  %408 = vst [vmem:[%s406] sm:$0xff] %v407
                  %v409 = vld [vmem:[%s405 + $0x18] sm:$0xff]
                  %410 = vst [vmem:[%s406 + $0x8] sm:$0xff] %v409
                $region140: #{decoder_forward.14} parent=134 // loop_footer
                  %s404 = sadd.s32 1, %s400
                $region141: #{decoder_forward.14} parent=134 // loop_footer_branch
                  %399 = sbr.rel target = $region137
                $region142: #{decoder_forward.14} parent=134 // loop_exit
                  _
              $region135: #{decoder_forward.14} parent=119 // pred_fallthru
                _
              // Predicated region
              $region143: #{decoder_forward.14} parent=119 // pred_check
                _
              $region144: #{decoder_forward.14} parent=119 // pred_check_branch
                %412 = sbr.rel target = $region146
              $region145: #{decoder_forward.14} parent=119 // pred_region
                _
              $region146: #{decoder_forward.14} parent=119 // pred_fallthru
                _
            $region120: #{decoder_forward.14} parent=115 // pred_fallthru
              _
            // Predicated region
            $region121: #{decoder_forward.14} parent=115 // pred_check
              _
            $region122: #{decoder_forward.14} parent=115 // pred_check_branch
              %382 = sbr.rel target = $region124
            $region123: #{decoder_forward.14} parent=115 // pred_region
              %s384 = ssub.s32 256, 1
              loop: start=0, step=1, limit=1
              $region125: #{decoder_forward.14} parent=123 // loop_pre_header
                _
              $region126: #{decoder_forward.14} parent=123 // loop_header
                %s386 = sphi 0, %s390
                %p387 = scmp.ge.s32.totalorder %s386, 1
                %s391 = sphi %s376, %s376
                %s392 = sphi %s372, %s372
              $region127: #{decoder_forward.14} parent=123 // loop_header_branch
                %389 = sbr.rel (%p387) target = $region131
              $region128: #{decoder_forward.14} parent=123 // loop_body
                %v393 = vld [vmem:[%s391] sm:%s384]
                %394 = vst [vmem:[%s392] sm:%s384] %v393
                %v395 = vld [vmem:[%s391 + $0x18] sm:%s384]
                %396 = vst [vmem:[%s392 + $0x8] sm:%s384] %v395
              $region129: #{decoder_forward.14} parent=123 // loop_footer
                %s390 = sadd.s32 1, %s386
              $region130: #{decoder_forward.14} parent=123 // loop_footer_branch
                %385 = sbr.rel target = $region126
              $region131: #{decoder_forward.14} parent=123 // loop_exit
                _
            $region124: #{decoder_forward.14} parent=115 // pred_fallthru
              _
          $region116: #{decoder_forward.14} parent=111 // pred_fallthru
            _
          %413 = vnop
        $region112: #{decoder_forward.14} parent=31 // pred_fallthru
          _
        // Predicated region
        $region147: #{decoder_forward.14} parent=31 // pred_check
          %p414 = pneg %p155
        $region148: #{decoder_forward.14} parent=31 // pred_check_branch
          %416 = sbr.rel (%p414) target = $region150
        $region149: #{decoder_forward.14} parent=31 // pred_region
          %p417 = scmp.lt.s32.totalorder %s15, 1
          %s418 = scalar_select %p417, %s15, 1
          %s419 = smul.addr %s418, 2
          %s420 = smul.addr %s419, 8
          %s421 = scalar_lea.vmem %s5, %s420
        $region150: #{decoder_forward.14} parent=31 // pred_fallthru
          _
      $region32: #{decoder_forward.14} parent=5 // pred_fallthru
        _
      %p422 = scmp.le.s32.totalorder 1, %s15
      %p423 = scmp.lt.s32.totalorder %s15, 3
      %p424 = pnand %p422, %p423
      %p425 = pneg %p424
      // Predicated region
      $region151: #{decoder_forward.14} parent=5 // pred_check
        _
      $region152: #{decoder_forward.14} parent=5 // pred_check_branch
        %427 = sbr.rel (%p424) target = $region154
      $region153: #{decoder_forward.14} parent=5 // pred_region
        %s428 = ssub.s32 %s15, 1
        %s429 = sand.u32 %s28, 1
        %s430 = sand.u32 %s28, 1
        %s431 = smul.addr %s430, 16
        %s432 = scalar_lea.vmem [#allocation3], %s431
        // Predicated region
        $region155: #{decoder_forward.14} parent=153 // pred_check
          %p433 = pneg %p41
        $region156: #{decoder_forward.14} parent=153 // pred_check_branch
          %435 = sbr.rel (%p433) target = $region158
        $region157: #{decoder_forward.14} parent=153 // pred_region
          _
        $region158: #{decoder_forward.14} parent=153 // pred_fallthru
          _
        %s436 = sand.u32 %s54, 1
        %s437 = sand.u32 %s54, 1
        %s438 = smul.addr %s437, 16
        %s439 = scalar_lea.vmem [#allocation4], %s438
        // Predicated region
        $region159: #{decoder_forward.14} parent=153 // pred_check
          %p440 = pneg %p67
        $region160: #{decoder_forward.14} parent=153 // pred_check_branch
          %442 = sbr.rel (%p440) target = $region162
        $region161: #{decoder_forward.14} parent=153 // pred_region
          _
        $region162: #{decoder_forward.14} parent=153 // pred_fallthru
          _
        %s443 = sand.u32 %s80, 1
        %s444 = sand.u32 %s80, 1
        %s445 = smul.addr %s444, 16
        %s446 = scalar_lea.vmem [#allocation5], %s445
        // Predicated region
        $region163: #{decoder_forward.14} parent=153 // pred_check
          %p447 = pneg %p93
        $region164: #{decoder_forward.14} parent=153 // pred_check_branch
          %449 = sbr.rel (%p447) target = $region166
        $region165: #{decoder_forward.14} parent=153 // pred_region
          _
        $region166: #{decoder_forward.14} parent=153 // pred_fallthru
          _
        // Predicated region
        $region167: #{decoder_forward.14} parent=153 // pred_check
          %p450 = pneg %p114
        $region168: #{decoder_forward.14} parent=153 // pred_check_branch
          %452 = sbr.rel (%p450) target = $region170
        $region169: #{decoder_forward.14} parent=153 // pred_region
          %454 = dma.done [#allocation7], 1024
        $region170: #{decoder_forward.14} parent=153 // pred_fallthru
          _
        %s455 = sand.u32 %s28, 1
        %s456 = sand.u32 %s28, 1
        %s457 = smul.addr %s456, 16
        %s458 = scalar_lea.vmem [#allocation3], %s457
        %p459 = pneg %p41
        %p460 = pneg %p38
        %s461 = sand.u32 %s54, 1
        %s462 = sand.u32 %s54, 1
        %s463 = smul.addr %s462, 16
        %s464 = scalar_lea.vmem [#allocation4], %s463
        %p465 = pneg %p67
        %p466 = pneg %p64
        %s467 = sand.u32 %s80, 1
        %s468 = sand.u32 %s80, 1
        %s469 = smul.addr %s468, 16
        %s470 = scalar_lea.vmem [#allocation5], %s469
        %p471 = pneg %p93
        %p472 = pneg %p90
        %p473 = pneg %p114
        %p474 = pneg %p111
        %p475 = pneg %p135
        %p476 = pneg %p132
        %p477 = scmp.lt.s32.totalorder %s20, 1
        %s478 = scalar_select %p477, %s20, 1
        %s479 = smul.addr %s478, 2
        %s480 = smul.addr %s479, 8
        %s481 = scalar_lea.vmem %s5, %s480
        %p482 = pneg %p161
        %p483 = pneg %p158
        %p484 = pneg %p182
        %p485 = pneg %p179
        %p486 = pneg %p203
        %p487 = pneg %p200
        %p488 = pneg %p229
        %p489 = pneg %p226
        %p490 = scmp.lt.s32.totalorder %s20, 1
        %s491 = scalar_select %p490, %s20, 1
        %s492 = smul.addr %s491, 2
        %s493 = smul.addr %s492, 8
        %s494 = scalar_lea.vmem %s8, %s493
        %p495 = scmp.lt.s32.totalorder %s20, 1
        %s496 = scalar_select %p495, %s20, 1
        %s497 = smul.addr %s496, 2
        %s498 = smul.addr %s497, 8
        %s499 = scalar_lea.vmem %s5, %s498
        %p500 = scmp.lt.s32.totalorder %s20, 1
        %s501 = scalar_select %p500, %s20, 1
        %s502 = smul.addr %s501, 2
        %s503 = smul.addr %s502, 8
        %s504 = scalar_lea.vmem %s8, %s503
        %v506 = vlaneseq
        %v507 = vshrl.u32 %v506, 7
        %v508 = vadd.s32 %v507, 8
        %v509 = vlaneseq
        %v510 = vand.u32 %v509, 127
        %vm511 = vcmp.ge.s32.totalorder %v507, %v510
        %vm512 = vcmp.ge.s32.totalorder %v508, %v510
        %v513 = vsel %vm511, 0.0, -1e+30
        %v514 = vsel %vm512, 0.0, -1e+30
        %v515 = vld [vmem:[%s432] sm:$0xff]
        %v516 = vld [vmem:[%s432 + $0x8] sm:$0xff]
        %v517 = vpack.c.bf16 %v516, %v515
        %v518 = vld [vmem:[%s439] sm:$0xff]
        %v519 = vld [vmem:[%s439 + $0x8] sm:$0xff]
        %v520 = vpack.c.bf16 %v519, %v518
        %v521 = vld [vmem:[%s446] sm:$0xff]
        %v522 = vld [vmem:[%s446 + $0x8] sm:$0xff]
        %v523 = vpack.c.bf16 %v522, %v521
        %vm524 = vcmask 261120
        %v526 = vsel %vm524, %v517, 0
        %v529 = vsel %vm524, %v520, 0
        %531 = vmatpush.bf16.xpose.msra.mxu0 0
        %532 = vmatpush.bf16.xpose.msra.mxu0 0
        %533 = vmatpush.bf16.xpose.msra.mxu0 0
        %534 = vmatpush.bf16.xpose.msra.mxu0 0
        %535 = vmatpush.bf16.xpose.msra.mxu0 0
        %536 = vmatpush.bf16.xpose.msra.mxu0 0
        %537 = vmatpush.bf16.xpose.msra.mxu0 0
        %538 = vmatpush.bf16.xpose.msra.mxu0 %v529
        %539 = vmatmul.bf16.gmra.mxu0 %v526
        %v540 = vpop.f32.mrf.mxu0
        %v541 = vadd.f32 0.0, %v540
        %v542 = vpop.f32.mrf.mxu0
        %v543 = vadd.f32 0.0, %v542
        %544 = vdwg.mxu0
        %v545 = vmul.f32 %v541, 0.17677669
        %v546 = vmul.f32 %v543, 0.17677669
        %v547 = vadd.f32 %v545, %v513
        %v548 = vadd.f32 %v546, %v514
        %vm549 = vcmask 130048
        %v550 = vsel %vm549, %v547, -inf
        %551 = vmax.xlane.f32.xlu0 %v550
        %v552 = vpop.xlane.xlu0 %551
        %v553 = vsel %vm549, %v548, -inf
        %554 = vmax.xlane.f32.xlu0 %v553
        %v555 = vpop.xlane.xlu0 %554
        %v556 = vsub.f32 %v547, %v552
        %v557 = vsub.f32 %v548, %v555
        %v558 = vmul.f32 %v556, 1.442695
        %v559 = vpow.pop %v558
        %v560 = vmul.f32 %v557, 1.442695
        %v561 = vpow.pop %v560
        %v562 = vsel %vm549, %v559, 0.0
        %563 = vadd.xlane.f32.xlu0 %v562
        %v564 = vpop.xlane.xlu0 %563
        %v565 = vsel %vm549, %v561, 0.0
        %566 = vadd.xlane.f32.xlu0 %v565
        %v567 = vpop.xlane.xlu0 %566
        %v568 = vrcp.pop %v564
        %v569 = vrcp.pop %v567
        %v570 = vmul.f32 %v559, %v568
        %v571 = vmul.f32 %v561, %v569
        %v572 = vpack.c.bf16 %v571, %v570
        %v574 = vsel %vm549, %v572, 0
        %576 = vmatpush.bf16.msra.mxu0 0
        %577 = vmatpush.bf16.msra.mxu0 0
        %578 = vmatpush.bf16.msra.mxu0 0
        %579 = vmatpush.bf16.msra.mxu0 0
        %580 = vmatpush.bf16.msra.mxu0 0
        %581 = vmatpush.bf16.msra.mxu0 0
        %582 = vmatpush.bf16.msra.mxu0 0
        %583 = vmatpush.bf16.msra.mxu0 %v523
        %584 = vmatmul.bf16.gmra.mxu0 %v574
        %v585 = vpop.f32.mrf.mxu0
        %v586 = vadd.f32 0.0, %v585
        %v587 = vpop.f32.mrf.mxu0
        %v588 = vadd.f32 0.0, %v587
        %589 = vdwg.mxu0
        %v590 = vpack.c.bf16 %v586, %v586
        %v591 = vpack.c.bf16 %v588, %v588
        %vm592 = vcmask 257024
        %593 = vst.msk [vmem:[#allocation2] sm:$0xf] %vm592, %v590
        %594 = vst.msk [vmem:[#allocation2 + $0x4] sm:$0xf] %vm592, %v591
        %v595 = vld [vmem:[%s432] sm:$0xff]
        %v596 = vld [vmem:[%s432 + $0x8] sm:$0xff]
        %v597 = vpack.c.bf16 %v596, %v595
        %v598 = vld [vmem:[%s439] sm:$0xff]
        %v599 = vld [vmem:[%s439 + $0x8] sm:$0xff]
        %v600 = vpack.c.bf16 %v599, %v598
        %v601 = vld [vmem:[%s446] sm:$0xff]
        %v602 = vld [vmem:[%s446 + $0x8] sm:$0xff]
        %v603 = vpack.c.bf16 %v602, %v601
        %605 = vrot.lane.b32.xlu0 %v597, 96
        %v606 = vpop.permute.xlu0 %605
        %608 = vrot.lane.b32.xlu0 %v600, 96
        %v609 = vpop.permute.xlu0 %608
        %v611 = vsel %vm524, %v606, 0
        %v614 = vsel %vm524, %v609, 0
        %616 = vmatpush.bf16.xpose.msra.mxu0 0
        %617 = vmatpush.bf16.xpose.msra.mxu0 0
        %618 = vmatpush.bf16.xpose.msra.mxu0 0
        %619 = vmatpush.bf16.xpose.msra.mxu0 0
        %620 = vmatpush.bf16.xpose.msra.mxu0 0
        %621 = vmatpush.bf16.xpose.msra.mxu0 0
        %622 = vmatpush.bf16.xpose.msra.mxu0 0
        %623 = vmatpush.bf16.xpose.msra.mxu0 %v614
        %624 = vmatmul.bf16.gmra.mxu0 %v611
        %v625 = vpop.f32.mrf.mxu0
        %v626 = vadd.f32 0.0, %v625
        %v627 = vpop.f32.mrf.mxu0
        %v628 = vadd.f32 0.0, %v627
        %629 = vdwg.mxu0
        %v630 = vmul.f32 %v626, 0.17677669
        %v631 = vmul.f32 %v628, 0.17677669
        %v632 = vadd.f32 %v630, %v513
        %v633 = vadd.f32 %v631, %v514
        %v634 = vsel %vm549, %v632, -inf
        %635 = vmax.xlane.f32.xlu0 %v634
        %v636 = vpop.xlane.xlu0 %635
        %v637 = vsel %vm549, %v633, -inf
        %638 = vmax.xlane.f32.xlu0 %v637
        %v639 = vpop.xlane.xlu0 %638
        %v640 = vsub.f32 %v632, %v636
        %v641 = vsub.f32 %v633, %v639
        %v642 = vmul.f32 %v640, 1.442695
        %v643 = vpow.pop %v642
        %v644 = vmul.f32 %v641, 1.442695
        %v645 = vpow.pop %v644
        %v646 = vsel %vm549, %v643, 0.0
        %647 = vadd.xlane.f32.xlu0 %v646
        %v648 = vpop.xlane.xlu0 %647
        %v649 = vsel %vm549, %v645, 0.0
        %650 = vadd.xlane.f32.xlu0 %v649
        %v651 = vpop.xlane.xlu0 %650
        %v652 = vrcp.pop %v648
        %v653 = vrcp.pop %v651
        %v654 = vmul.f32 %v643, %v652
        %v655 = vmul.f32 %v645, %v653
        %v656 = vpack.c.bf16 %v655, %v654
        %658 = vrot.lane.b32.xlu0 %v603, 96
        %v659 = vpop.permute.xlu0 %658
        %v662 = vsel %vm549, %v656, 0
        %664 = vmatpush.bf16.msra.mxu0 0
        %665 = vmatpush.bf16.msra.mxu0 0
        %666 = vmatpush.bf16.msra.mxu0 0
        %667 = vmatpush.bf16.msra.mxu0 0
        %668 = vmatpush.bf16.msra.mxu0 0
        %669 = vmatpush.bf16.msra.mxu0 0
        %670 = vmatpush.bf16.msra.mxu0 0
        %671 = vmatpush.bf16.msra.mxu0 %v659
        %672 = vmatmul.bf16.gmra.mxu0 %v662
        %v673 = vpop.f32.mrf.mxu0
        %v674 = vadd.f32 0.0, %v673
        %v675 = vpop.f32.mrf.mxu0
        %v676 = vadd.f32 0.0, %v675
        %677 = vdwg.mxu0
        %v678 = vpack.c.bf16 %v674, %v674
        %v679 = vpack.c.bf16 %v676, %v676
        %682 = vrot.lane.b32.xlu0 %v678, 32
        %v683 = vpop.permute.xlu0 %682
        %684 = vrot.lane.b32.xlu0 %v679, 32
        %v685 = vpop.permute.xlu0 %684
        %vm688 = vcmask 519424
        %689 = vst.msk [vmem:[#allocation2] sm:$0xf] %vm688, %v683
        %690 = vst.msk [vmem:[#allocation2 + $0x4] sm:$0xf] %vm688, %v685
        %v691 = vld [vmem:[%s432] sm:$0xff]
        %v692 = vld [vmem:[%s432 + $0x8] sm:$0xff]
        %v693 = vpack.c.bf16 %v692, %v691
        %v694 = vld [vmem:[%s439] sm:$0xff]
        %v695 = vld [vmem:[%s439 + $0x8] sm:$0xff]
        %v696 = vpack.c.bf16 %v695, %v694
        %v697 = vld [vmem:[%s446] sm:$0xff]
        %v698 = vld [vmem:[%s446 + $0x8] sm:$0xff]
        %v699 = vpack.c.bf16 %v698, %v697
        %701 = vrot.lane.b32.xlu0 %v693, 64
        %v702 = vpop.permute.xlu0 %701
        %704 = vrot.lane.b32.xlu0 %v696, 64
        %v705 = vpop.permute.xlu0 %704
        %v707 = vsel %vm524, %v702, 0
        %v710 = vsel %vm524, %v705, 0
        %712 = vmatpush.bf16.xpose.msra.mxu0 0
        %713 = vmatpush.bf16.xpose.msra.mxu0 0
        %714 = vmatpush.bf16.xpose.msra.mxu0 0
        %715 = vmatpush.bf16.xpose.msra.mxu0 0
        %716 = vmatpush.bf16.xpose.msra.mxu0 0
        %717 = vmatpush.bf16.xpose.msra.mxu0 0
        %718 = vmatpush.bf16.xpose.msra.mxu0 0
        %719 = vmatpush.bf16.xpose.msra.mxu0 %v710
        %720 = vmatmul.bf16.gmra.mxu0 %v707
        %v721 = vpop.f32.mrf.mxu0
        %v722 = vadd.f32 0.0, %v721
        %v723 = vpop.f32.mrf.mxu0
        %v724 = vadd.f32 0.0, %v723
        %725 = vdwg.mxu0
        %v726 = vmul.f32 %v722, 0.17677669
        %v727 = vmul.f32 %v724, 0.17677669
        %v728 = vadd.f32 %v726, %v513
        %v729 = vadd.f32 %v727, %v514
        %v730 = vsel %vm549, %v728, -inf
        %731 = vmax.xlane.f32.xlu0 %v730
        %v732 = vpop.xlane.xlu0 %731
        %v733 = vsel %vm549, %v729, -inf
        %734 = vmax.xlane.f32.xlu0 %v733
        %v735 = vpop.xlane.xlu0 %734
        %v736 = vsub.f32 %v728, %v732
        %v737 = vsub.f32 %v729, %v735
        %v738 = vmul.f32 %v736, 1.442695
        %v739 = vpow.pop %v738
        %v740 = vmul.f32 %v737, 1.442695
        %v741 = vpow.pop %v740
        %v742 = vsel %vm549, %v739, 0.0
        %743 = vadd.xlane.f32.xlu0 %v742
        %v744 = vpop.xlane.xlu0 %743
        %v745 = vsel %vm549, %v741, 0.0
        %746 = vadd.xlane.f32.xlu0 %v745
        %v747 = vpop.xlane.xlu0 %746
        %v748 = vrcp.pop %v744
        %v749 = vrcp.pop %v747
        %v750 = vmul.f32 %v739, %v748
        %v751 = vmul.f32 %v741, %v749
        %v752 = vpack.c.bf16 %v751, %v750
        %754 = vrot.lane.b32.xlu0 %v699, 64
        %v755 = vpop.permute.xlu0 %754
        %v758 = vsel %vm549, %v752, 0
        %760 = vmatpush.bf16.msra.mxu0 0
        %761 = vmatpush.bf16.msra.mxu0 0
        %762 = vmatpush.bf16.msra.mxu0 0
        %763 = vmatpush.bf16.msra.mxu0 0
        %764 = vmatpush.bf16.msra.mxu0 0
        %765 = vmatpush.bf16.msra.mxu0 0
        %766 = vmatpush.bf16.msra.mxu0 0
        %767 = vmatpush.bf16.msra.mxu0 %v755
        %768 = vmatmul.bf16.gmra.mxu0 %v758
        %v769 = vpop.f32.mrf.mxu0
        %v770 = vadd.f32 0.0, %v769
        %v771 = vpop.f32.mrf.mxu0
        %v772 = vadd.f32 0.0, %v771
        %773 = vdwg.mxu0
        %v774 = vpack.c.bf16 %v770, %v770
        %v775 = vpack.c.bf16 %v772, %v772
        %778 = vrot.lane.b32.xlu0 %v774, 64
        %v779 = vpop.permute.xlu0 %778
        %780 = vrot.lane.b32.xlu0 %v775, 64
        %v781 = vpop.permute.xlu0 %780
        %vm784 = vcmask 781824
        %785 = vst.msk [vmem:[#allocation2] sm:$0xf] %vm784, %v779
        %786 = vst.msk [vmem:[#allocation2 + $0x4] sm:$0xf] %vm784, %v781
        %v787 = vld [vmem:[%s432] sm:$0xff]
        %v788 = vld [vmem:[%s432 + $0x8] sm:$0xff]
        %v789 = vpack.c.bf16 %v788, %v787
        %v790 = vld [vmem:[%s439] sm:$0xff]
        %v791 = vld [vmem:[%s439 + $0x8] sm:$0xff]
        %v792 = vpack.c.bf16 %v791, %v790
        %v793 = vld [vmem:[%s446] sm:$0xff]
        %v794 = vld [vmem:[%s446 + $0x8] sm:$0xff]
        %v795 = vpack.c.bf16 %v794, %v793
        %797 = vrot.lane.b32.xlu0 %v789, 32
        %v798 = vpop.permute.xlu0 %797
        %800 = vrot.lane.b32.xlu0 %v792, 32
        %v801 = vpop.permute.xlu0 %800
        %v803 = vsel %vm524, %v798, 0
        %v806 = vsel %vm524, %v801, 0
        %808 = vmatpush.bf16.xpose.msra.mxu0 0
        %809 = vmatpush.bf16.xpose.msra.mxu0 0
        %810 = vmatpush.bf16.xpose.msra.mxu0 0
        %811 = vmatpush.bf16.xpose.msra.mxu0 0
        %812 = vmatpush.bf16.xpose.msra.mxu0 0
        %813 = vmatpush.bf16.xpose.msra.mxu0 0
        %814 = vmatpush.bf16.xpose.msra.mxu0 0
        %815 = vmatpush.bf16.xpose.msra.mxu0 %v806
        %816 = vmatmul.bf16.gmra.mxu0 %v803
        %v817 = vpop.f32.mrf.mxu0
        %v818 = vadd.f32 0.0, %v817
        %v819 = vpop.f32.mrf.mxu0
        %v820 = vadd.f32 0.0, %v819
        %821 = vdwg.mxu0
        %v822 = vmul.f32 %v818, 0.17677669
        %v823 = vmul.f32 %v820, 0.17677669
        %v824 = vadd.f32 %v822, %v513
        %v825 = vadd.f32 %v823, %v514
        %v826 = vsel %vm549, %v824, -inf
        %827 = vmax.xlane.f32.xlu0 %v826
        %v828 = vpop.xlane.xlu0 %827
        %v829 = vsel %vm549, %v825, -inf
        %830 = vmax.xlane.f32.xlu0 %v829
        %v831 = vpop.xlane.xlu0 %830
        %v832 = vsub.f32 %v824, %v828
        %v833 = vsub.f32 %v825, %v831
        %v834 = vmul.f32 %v832, 1.442695
        %v835 = vpow.pop %v834
        %v836 = vmul.f32 %v833, 1.442695
        %v837 = vpow.pop %v836
        %v838 = vsel %vm549, %v835, 0.0
        %839 = vadd.xlane.f32.xlu0 %v838
        %v840 = vpop.xlane.xlu0 %839
        %v841 = vsel %vm549, %v837, 0.0
        %842 = vadd.xlane.f32.xlu0 %v841
        %v843 = vpop.xlane.xlu0 %842
        %v844 = vrcp.pop %v840
        %v845 = vrcp.pop %v843
        %v846 = vmul.f32 %v835, %v844
        %v847 = vmul.f32 %v837, %v845
        %v848 = vpack.c.bf16 %v847, %v846
        %850 = vrot.lane.b32.xlu0 %v795, 32
        %v851 = vpop.permute.xlu0 %850
        %v854 = vsel %vm549, %v848, 0
        %856 = vmatpush.bf16.msra.mxu0 0
        %857 = vmatpush.bf16.msra.mxu0 0
        %858 = vmatpush.bf16.msra.mxu0 0
        %859 = vmatpush.bf16.msra.mxu0 0
        %860 = vmatpush.bf16.msra.mxu0 0
        %861 = vmatpush.bf16.msra.mxu0 0
        %862 = vmatpush.bf16.msra.mxu0 0
        %863 = vmatpush.bf16.msra.mxu0 %v851
        %864 = vmatmul.bf16.gmra.mxu0 %v854
        %v865 = vpop.f32.mrf.mxu0
        %v866 = vadd.f32 0.0, %v865
        %v867 = vpop.f32.mrf.mxu0
        %v868 = vadd.f32 0.0, %v867
        %869 = vdwg.mxu0
        %v870 = vpack.c.bf16 %v866, %v866
        %v871 = vpack.c.bf16 %v868, %v868
        %874 = vrot.lane.b32.xlu0 %v870, 96
        %v875 = vpop.permute.xlu0 %874
        %876 = vrot.lane.b32.xlu0 %v871, 96
        %v877 = vpop.permute.xlu0 %876
        %vm880 = vcmask 1044224
        %881 = vst.msk [vmem:[#allocation2] sm:$0xf] %vm880, %v875
        %882 = vst.msk [vmem:[#allocation2 + $0x4] sm:$0xf] %vm880, %v877
        %v883 = vld [vmem:[#allocation2] sm:$0xf]
        %v884 = vld [vmem:[#allocation2 + $0x4] sm:$0xf]
        %v885 = vld [vmem:[#allocation6] sm:$0xf]
        %v886 = vld [vmem:[#allocation6 + $0x4] sm:$0xf]
        %v887 = vld [vmem:[#allocation6 + $0x8] sm:$0xf]
        %v888 = vld [vmem:[#allocation6 + $0xc] sm:$0xf]
        %v889 = vld [vmem:[#allocation6 + $0x10] sm:$0xf]
        %v890 = vld [vmem:[#allocation6 + $0x14] sm:$0xf]
        %v891 = vld [vmem:[#allocation6 + $0x18] sm:$0xf]
        %v892 = vld [vmem:[#allocation6 + $0x1c] sm:$0xf]
        %v893 = vld [vmem:[#allocation6 + $0x20] sm:$0xf]
        %v894 = vld [vmem:[#allocation6 + $0x24] sm:$0xf]
        %v895 = vld [vmem:[#allocation6 + $0x28] sm:$0xf]
        %v896 = vld [vmem:[#allocation6 + $0x2c] sm:$0xf]
        %v897 = vld [vmem:[#allocation6 + $0x30] sm:$0xf]
        %v898 = vld [vmem:[#allocation6 + $0x34] sm:$0xf]
        %v899 = vld [vmem:[#allocation6 + $0x38] sm:$0xf]
        %v900 = vld [vmem:[#allocation6 + $0x3c] sm:$0xf]
        %v901 = vld [vmem:[%s4] sm:$0x1]
        %v903 = vperm.slane %v901, 0
        %v907 = vunpack.c.l.b16 %v883
        %v908 = vunpack.c.l.b16 %v884
        %v909 = vpack.c.b16 %v908, %v907
        %v927 = vunpack.c.l.b16 %v885
        %v928 = vunpack.c.l.b16 %v886
        %v929 = vunpack.c.l.b16 %v887
        %v930 = vunpack.c.l.b16 %v888
        %v931 = vunpack.c.l.b16 %v889
        %v932 = vunpack.c.l.b16 %v890
        %v933 = vunpack.c.l.b16 %v891
        %v934 = vunpack.c.l.b16 %v892
        %v935 = vunpack.c.l.b16 %v893
        %v936 = vunpack.c.l.b16 %v894
        %v937 = vunpack.c.l.b16 %v895
        %v938 = vunpack.c.l.b16 %v896
        %v939 = vunpack.c.l.b16 %v897
        %v940 = vunpack.c.l.b16 %v898
        %v941 = vunpack.c.l.b16 %v899
        %v942 = vunpack.c.l.b16 %v900
        %v943 = vpack.c.b16 %v928, %v927
        %v944 = vpack.c.b16 %v930, %v929
        %v945 = vpack.c.b16 %v932, %v931
        %v946 = vpack.c.b16 %v934, %v933
        %v947 = vpack.c.b16 %v936, %v935
        %v948 = vpack.c.b16 %v938, %v937
        %v949 = vpack.c.b16 %v940, %v939
        %v950 = vpack.c.b16 %v942, %v941
        %959 = vmatpush.bf16.msra.mxu0 %v950
        %960 = vmatpush.bf16.msra.mxu0 %v949
        %961 = vmatpush.bf16.msra.mxu0 %v948
        %962 = vmatpush.bf16.msra.mxu0 %v947
        %963 = vmatpush.bf16.msra.mxu0 %v946
        %964 = vmatpush.bf16.msra.mxu0 %v945
        %965 = vmatpush.bf16.msra.mxu0 %v944
        %966 = vmatpush.bf16.msra.mxu0 %v943
        %967 = vmatmul.bf16.gmra.mxu0 %v909
        %v968 = vpop.f32.mrf.mxu0
        %v969 = vadd.f32 %v903, %v968
        %v970 = vpop.f32.mrf.mxu0
        %v971 = vadd.f32 %v903, %v970
        %972 = vdwg.mxu0
        %v973 = vld [vmem:[%s499] sm:$0xff]
        %v974 = vld [vmem:[%s499 + $0x8] sm:$0xff]
        %v975 = vadd.f32 %v969, %v973
        %v976 = vadd.f32 %v971, %v974
        %v977 = vld [vmem:[%s6] sm:$0x1]
        %v978 = vld [vmem:[%s7] sm:$0x1]
        %979 = vadd.xlane.f32.xlu0 %v975
        %v980 = vpop.xlane.xlu0 %979
        %981 = vadd.xlane.f32.xlu0 %v976
        %v982 = vpop.xlane.xlu0 %981
        %v983 = vmul.f32 %v980, 0.0078125
        %v984 = vmul.f32 %v982, 0.0078125
        %v985 = vmul.f32 %v975, %v975
        %v986 = vmul.f32 %v976, %v976
        %987 = vadd.xlane.f32.xlu0 %v985
        %v988 = vpop.xlane.xlu0 %987
        %989 = vadd.xlane.f32.xlu0 %v986
        %v990 = vpop.xlane.xlu0 %989
        %v991 = vmul.f32 %v988, 0.0078125
        %v992 = vmul.f32 %v990, 0.0078125
        %v993 = vmul.f32 %v983, %v983
        %v994 = vmul.f32 %v984, %v984
        %v995 = vsub.f32 %v991, %v993
        %v996 = vsub.f32 %v992, %v994
        %v997 = vmax.f32 %v995, 0.0
        %v998 = vmax.f32 %v996, 0.0
        %v999 = vsub.f32 %v975, %v983
        %v1000 = vsub.f32 %v976, %v984
        %v1001 = vadd.f32 %v997, 1e-05
        %v1002 = vadd.f32 %v998, 1e-05
        %v1003 = vrsqrt.pop %v1001
        %v1004 = vmul.f32 %v1003, %v1001
        %v1005 = vmul.f32 %v1004, %v1003
        %v1006 = vmul.f32 0.5, %v1005
        %v1007 = vsub.f32 1.5, %v1006
        %v1008 = vmul.f32 %v1003, %v1007
        %vm1009 = vweird.f32 %v1001
        %vm1010 = vweird.f32 %v1003
        %vm1011 = vmor %vm1009, %vm1010
        %v1012 = vsel %vm1011, %v1003, %v1008
        %v1013 = vrsqrt.pop %v1002
        %v1014 = vmul.f32 %v1013, %v1002
        %v1015 = vmul.f32 %v1014, %v1013
        %v1016 = vmul.f32 0.5, %v1015
        %v1017 = vsub.f32 1.5, %v1016
        %v1018 = vmul.f32 %v1013, %v1017
        %vm1019 = vweird.f32 %v1002
        %vm1020 = vweird.f32 %v1013
        %vm1021 = vmor %vm1019, %vm1020
        %v1022 = vsel %vm1021, %v1013, %v1018
        %v1023 = vmul.f32 %v999, %v1012
        %v1024 = vmul.f32 %v1000, %v1022
        %v1026 = vperm.slane %v977, 0
        %v1028 = vmul.f32 %v1023, %v1026
        %v1029 = vmul.f32 %v1024, %v1026
        %v1031 = vperm.slane %v978, 0
        %v1033 = vadd.f32 %v1028, %v1031
        %v1034 = vadd.f32 %v1029, %v1031
        %1035 = vst [vmem:[%s504] sm:$0xff] %v1033
        %1036 = vst [vmem:[%s504 + $0x8] sm:$0xff] %v1034
        %p1037 = scmp.lt.s32.totalorder %s20, 1
        %s1038 = scalar_select %p1037, %s20, 1
        %s1039 = smul.addr %s1038, 2
        %s1040 = smul.addr %s1039, 8
        %s1041 = scalar_lea.vmem %s8, %s1040
        // Predicated region
        $region171: #{decoder_forward.14} parent=153 // pred_check
          %p1042 = pneg %p226
        $region172: #{decoder_forward.14} parent=153 // pred_check_branch
          %1044 = sbr.rel (%p1042) target = $region174
        $region173: #{decoder_forward.14} parent=153 // pred_region
          _
        $region174: #{decoder_forward.14} parent=153 // pred_fallthru
          _
      $region154: #{decoder_forward.14} parent=5 // pred_fallthru
        _
      %p1045 = scmp.le.s32.totalorder 2, %s15
      // Predicated region
      $region175: #{decoder_forward.14} parent=5 // pred_check
        %p1046 = pneg %p1045
      $region176: #{decoder_forward.14} parent=5 // pred_check_branch
        %1048 = sbr.rel (%p1046) target = $region178
      $region177: #{decoder_forward.14} parent=5 // pred_region
        %s1049 = ssub.s32 %s15, 2
        // Predicated region
        $region179: #{decoder_forward.14} parent=177 // pred_check
          %p1050 = pneg %p232
        $region180: #{decoder_forward.14} parent=177 // pred_check_branch
          %1052 = sbr.rel (%p1050) target = $region182
        $region181: #{decoder_forward.14} parent=177 // pred_region
          %p1053 = scmp.lt.s32.totalorder %s21, 1
          %s1054 = scalar_select %p1053, %s21, 1
          %s1055 = smul.addr %s1054, 2
          %s1056 = smul.addr %s1055, 8
          %s1057 = scalar_lea.vmem %s8, %s1056
        $region182: #{decoder_forward.14} parent=177 // pred_fallthru
          _
      $region178: #{decoder_forward.14} parent=5 // pred_fallthru
        _
    $region6: #{decoder_forward.14} parent=1 // loop_footer
      %s19 = sadd.s32 1, %s15
    $region7: #{decoder_forward.14} parent=1 // loop_footer_branch
      %14 = sbr.rel target = $region3
    $region8: #{decoder_forward.14} parent=1 // loop_exit
      _
    %1058 = vsyncpa [#allocation7], 1
    %s1059 = scalar_lea.sflag [#allocation7], 1
    %1060 = vsyncpa %s1059, 1

// kernel: decoder_forward.18
$region0: #{decoder_forward.18}
  #allocation0 [shape = 'u32[]', space=smem, size = 0x4, offset = 0x4, fixed_abs, tag = 'smem constant byte address 0x4 - core index']
  #allocation1 [shape = 'u32[72,128]{1,0:T(1,128)}', space=vmem, size = 0x9000, scoped, tag = 'internal scratch']
  #allocation2 [shape = 'f32[32,128]{1,0:T(8,128)}', space=vmem, size = 0x4000, scoped, tag = 'scratch operand']
  %s0 = inlined_call_operand.vmem [shape: f32[32,128], index: 0, kind: input, shape index: {}]
  %s1 = inlined_call_operand.hbm [shape: bf16[128,256], index: 1, kind: input, shape index: {}]
  %s2 = inlined_call_operand.vmem [shape: f32[1,256], index: 2, kind: input, shape index: {}]
  %s3 = inlined_call_operand.hbm [shape: bf16[256,128], index: 3, kind: input, shape index: {}]
  %s4 = inlined_call_operand.vmem [shape: f32[1,128], index: 4, kind: input, shape index: {}]
  %s5 = inlined_call_operand.vmem [shape: f32[1,128], index: 5, kind: input, shape index: {}]
  %s6 = inlined_call_operand.vmem [shape: f32[1,128], index: 6, kind: input, shape index: {}]
  %s7 = inlined_call_operand.vmem [shape: f32[32,128], index: 7, kind: output, shape index: {}]
  %s8 = sld [smem:[#allocation0]]
  $region54: #{decoder_forward.18} parent=0
    _
  %s10 = ssub.s32 1, %s8
  %s11 = scalar_select 0, %s10, %s8
  $region1: #{decoder_forward.18} parent=0
    #allocation3 [shape = 'u8[65536]{0}', space=vmem, size = 0x10000, scoped, tag = 'input window, operand 1, single buffered']
    #allocation4 [shape = 's32[1]{0}', space=sflag, size = 0x4, scoped, tag = 'scoped memory for decoder_forward.18']
    #allocation5 [shape = 'u8[65536]{0}', space=vmem, size = 0x10000, scoped, tag = 'input window, operand 3, single buffered']
    #allocation6 [shape = 's32[1]{0}', space=sflag, size = 0x4, scoped, tag = 'scoped memory for decoder_forward.18']
    %12 = vsyncpa [#allocation4], 0
    %13 = vsyncpa [#allocation6], 0
    // Predicated region
    $region2: #{decoder_forward.18} parent=1 // pred_check
      _
    $region3: #{decoder_forward.18} parent=1 // pred_check_branch
      %15 = sbr.rel (0) target = $region5
    $region4: #{decoder_forward.18} parent=1 // pred_region
      _
    $region5: #{decoder_forward.18} parent=1 // pred_fallthru
      _
    // Predicated region
    $region6: #{decoder_forward.18} parent=1 // pred_check
      _
    $region7: #{decoder_forward.18} parent=1 // pred_check_branch
      %17 = sbr.rel (0) target = $region9
    $region8: #{decoder_forward.18} parent=1 // pred_region
      %19 = vsyncadd [#allocation4], 0
      %s20 = sshll.u32 %s1, 4
      %s21 = int_to_ptr.hbm [resolvable:$true] %s20
      %s22 = sshll.u32 [#allocation3], 4
      %s23 = int_to_ptr.vmem [resolvable:$true] %s22
      %28 = dma.hbm_to_vmem [thread:$0]  %s21, 2048, %s23, [#allocation4], 128, 128, 8
    $region9: #{decoder_forward.18} parent=1 // pred_fallthru
      _
    // Predicated region
    $region10: #{decoder_forward.18} parent=1 // pred_check
      _
    $region11: #{decoder_forward.18} parent=1 // pred_check_branch
      %30 = sbr.rel (0) target = $region13
    $region12: #{decoder_forward.18} parent=1 // pred_region
      _
    $region13: #{decoder_forward.18} parent=1 // pred_fallthru
      _
    // Predicated region
    $region14: #{decoder_forward.18} parent=1 // pred_check
      _
    $region15: #{decoder_forward.18} parent=1 // pred_check_branch
      %32 = sbr.rel (0) target = $region17
    $region16: #{decoder_forward.18} parent=1 // pred_region
      %34 = vsyncadd [#allocation6], 0
      %s35 = sshll.u32 %s3, 4
      %s36 = int_to_ptr.hbm [resolvable:$true] %s35
      %s37 = sshll.u32 [#allocation5], 4
      %s38 = int_to_ptr.vmem [resolvable:$true] %s37
      %43 = dma.hbm_to_vmem [thread:$0]  %s36, 2048, %s38, [#allocation6], 64, 64, 4
    $region17: #{decoder_forward.18} parent=1 // pred_fallthru
      _
    // Predicated region
    $region18: #{decoder_forward.18} parent=1 // pred_check
      _
    $region19: #{decoder_forward.18} parent=1 // pred_check_branch
      %45 = sbr.rel (0) target = $region21
    $region20: #{decoder_forward.18} parent=1 // pred_region
      _
    $region21: #{decoder_forward.18} parent=1 // pred_fallthru
      _
    // Predicated region
    $region22: #{decoder_forward.18} parent=1 // pred_check
      _
    $region23: #{decoder_forward.18} parent=1 // pred_check_branch
      %47 = sbr.rel (0) target = $region25
    $region24: #{decoder_forward.18} parent=1 // pred_region
      _
    $region25: #{decoder_forward.18} parent=1 // pred_fallthru
      _
    // Predicated region
    $region26: #{decoder_forward.18} parent=1 // pred_check
      _
    $region27: #{decoder_forward.18} parent=1 // pred_check_branch
      %49 = sbr.rel (0) target = $region29
    $region28: #{decoder_forward.18} parent=1 // pred_region
      _
    $region29: #{decoder_forward.18} parent=1 // pred_fallthru
      _
    // Predicated region
    $region30: #{decoder_forward.18} parent=1 // pred_check
      _
    $region31: #{decoder_forward.18} parent=1 // pred_check_branch
      %51 = sbr.rel (0) target = $region33
    $region32: #{decoder_forward.18} parent=1 // pred_region
      %53 = dma.done [#allocation4], 2048
    $region33: #{decoder_forward.18} parent=1 // pred_fallthru
      _
    // Predicated region
    $region34: #{decoder_forward.18} parent=1 // pred_check
      _
    $region35: #{decoder_forward.18} parent=1 // pred_check_branch
      %55 = sbr.rel (0) target = $region37
    $region36: #{decoder_forward.18} parent=1 // pred_region
      %57 = dma.done [#allocation6], 2048
    $region37: #{decoder_forward.18} parent=1 // pred_fallthru
      _
    %p58 = scmp.eq.s32.totalorder 0, 0
    // Predicated region
    $region38: #{decoder_forward.18} parent=1 // pred_check
      %p59 = pneg %p58
    $region39: #{decoder_forward.18} parent=1 // pred_check_branch
      %61 = sbr.rel (%p59) target = $region41
    $region40: #{decoder_forward.18} parent=1 // pred_region
      %62 = vst [vmem:[#allocation2] sm:$0xff] 0.0
      %63 = vst [vmem:[#allocation2 + $0x8] sm:$0xff] 0.0
      %64 = vst [vmem:[#allocation2 + $0x10] sm:$0xff] 0.0
      %65 = vst [vmem:[#allocation2 + $0x18] sm:$0xff] 0.0
    $region41: #{decoder_forward.18} parent=1 // pred_fallthru
      _
    %v66 = vld [vmem:[%s0] sm:$0xff]
    %v67 = vld [vmem:[%s0 + $0x8] sm:$0xff]
    %v68 = vld [vmem:[%s0 + $0x10] sm:$0xff]
    %v69 = vld [vmem:[%s0 + $0x18] sm:$0xff]
    %v70 = vpack.c.bf16 %v67, %v66
    %v71 = vpack.c.bf16 %v69, %v68
    %v72 = vld [vmem:[#allocation3] sm:$0xff]
    %v73 = vld [vmem:[#allocation3 + $0x8] sm:$0xff]
    %v74 = vld [vmem:[#allocation3 + $0x10] sm:$0xff]
    %v75 = vld [vmem:[#allocation3 + $0x18] sm:$0xff]
    %v76 = vld [vmem:[#allocation3 + $0x20] sm:$0xff]
    %v77 = vld [vmem:[#allocation3 + $0x28] sm:$0xff]
    %v78 = vld [vmem:[#allocation3 + $0x30] sm:$0xff]
    %v79 = vld [vmem:[#allocation3 + $0x38] sm:$0xff]
    %v80 = vld [vmem:[#allocation3 + $0x40] sm:$0xff]
    %v81 = vld [vmem:[#allocation3 + $0x48] sm:$0xff]
    %v82 = vld [vmem:[#allocation3 + $0x50] sm:$0xff]
    %v83 = vld [vmem:[#allocation3 + $0x58] sm:$0xff]
    %v84 = vld [vmem:[#allocation3 + $0x60] sm:$0xff]
    %v85 = vld [vmem:[#allocation3 + $0x68] sm:$0xff]
    %v86 = vld [vmem:[#allocation3 + $0x70] sm:$0xff]
    %v87 = vld [vmem:[#allocation3 + $0x78] sm:$0xff]
    %v88 = vld [vmem:[%s2] sm:$0x3]
    %v90 = vperm.slane %v88, 0
    %v91 = vperm.slane %v88, 1
    %v110 = vunpack.c.l.b16 %v72
    %v111 = vunpack.c.h.b16 %v72
    %v112 = vunpack.c.l.b16 %v73
    %v113 = vunpack.c.h.b16 %v73
    %v114 = vunpack.c.l.b16 %v74
    %v115 = vunpack.c.h.b16 %v74
    %v116 = vunpack.c.l.b16 %v75
    %v117 = vunpack.c.h.b16 %v75
    %v118 = vunpack.c.l.b16 %v76
    %v119 = vunpack.c.h.b16 %v76
    %v120 = vunpack.c.l.b16 %v77
    %v121 = vunpack.c.h.b16 %v77
    %v122 = vunpack.c.l.b16 %v78
    %v123 = vunpack.c.h.b16 %v78
    %v124 = vunpack.c.l.b16 %v79
    %v125 = vunpack.c.h.b16 %v79
    %v126 = vunpack.c.l.b16 %v80
    %v127 = vunpack.c.h.b16 %v80
    %v128 = vunpack.c.l.b16 %v81
    %v129 = vunpack.c.h.b16 %v81
    %v130 = vunpack.c.l.b16 %v82
    %v131 = vunpack.c.h.b16 %v82
    %v132 = vunpack.c.l.b16 %v83
    %v133 = vunpack.c.h.b16 %v83
    %v134 = vunpack.c.l.b16 %v84
    %v135 = vunpack.c.h.b16 %v84
    %v136 = vunpack.c.l.b16 %v85
    %v137 = vunpack.c.h.b16 %v85
    %v138 = vunpack.c.l.b16 %v86
    %v139 = vunpack.c.h.b16 %v86
    %v140 = vunpack.c.l.b16 %v87
    %v141 = vunpack.c.h.b16 %v87
    %v142 = vpack.c.b16 %v112, %v110
    %v143 = vpack.c.b16 %v113, %v111
    %v144 = vpack.c.b16 %v116, %v114
    %v145 = vpack.c.b16 %v117, %v115
    %v146 = vpack.c.b16 %v120, %v118
    %v147 = vpack.c.b16 %v121, %v119
    %v148 = vpack.c.b16 %v124, %v122
    %v149 = vpack.c.b16 %v125, %v123
    %v150 = vpack.c.b16 %v128, %v126
    %v151 = vpack.c.b16 %v129, %v127
    %v152 = vpack.c.b16 %v132, %v130
    %v153 = vpack.c.b16 %v133, %v131
    %v154 = vpack.c.b16 %v136, %v134
    %v155 = vpack.c.b16 %v137, %v135
    %v156 = vpack.c.b16 %v140, %v138
    %v157 = vpack.c.b16 %v141, %v139
    %174 = vmatpush.bf16.msra.mxu0 %v156
    %175 = vmatpush.bf16.msra.mxu0 %v154
    %176 = vmatpush.bf16.msra.mxu0 %v152
    %177 = vmatpush.bf16.msra.mxu0 %v150
    %178 = vmatpush.bf16.msra.mxu0 %v148
    %179 = vmatpush.bf16.msra.mxu0 %v146
    %180 = vmatpush.bf16.msra.mxu0 %v144
    %181 = vmatpush.bf16.msra.mxu0 %v142
    %182 = vmatmul.bf16.gmra.mxu0 %v70
    %v183 = vpop.f32.mrf.mxu0
    %v184 = vadd.f32 %v90, %v183
    %v185 = vpop.f32.mrf.mxu0
    %v186 = vadd.f32 %v90, %v185
    %187 = vmatmul.bf16.gmra.mxu0 %v71
    %v188 = vpop.f32.mrf.mxu0
    %v189 = vadd.f32 %v90, %v188
    %v190 = vpop.f32.mrf.mxu0
    %v191 = vadd.f32 %v90, %v190
    %192 = vdwg.mxu0
    %193 = vmatpush.bf16.msra.mxu0 %v157
    %194 = vmatpush.bf16.msra.mxu0 %v155
    %195 = vmatpush.bf16.msra.mxu0 %v153
    %196 = vmatpush.bf16.msra.mxu0 %v151
    %197 = vmatpush.bf16.msra.mxu0 %v149
    %198 = vmatpush.bf16.msra.mxu0 %v147
    %199 = vmatpush.bf16.msra.mxu0 %v145
    %200 = vmatpush.bf16.msra.mxu0 %v143
    %201 = vmatmul.bf16.gmra.mxu0 %v70
    %v202 = vpop.f32.mrf.mxu0
    %v203 = vadd.f32 %v91, %v202
    %v204 = vpop.f32.mrf.mxu0
    %v205 = vadd.f32 %v91, %v204
    %206 = vmatmul.bf16.gmra.mxu0 %v71
    %v207 = vpop.f32.mrf.mxu0
    %v208 = vadd.f32 %v91, %v207
    %v209 = vpop.f32.mrf.mxu0
    %v210 = vadd.f32 %v91, %v209
    %211 = vdwg.mxu0
    %v212 = vmax.f32 %v184, 0.0
    %v213 = vmax.f32 %v203, 0.0
    %v214 = vmax.f32 %v186, 0.0
    %v215 = vmax.f32 %v205, 0.0
    %v216 = vmax.f32 %v189, 0.0
    %v217 = vmax.f32 %v208, 0.0
    %v218 = vmax.f32 %v191, 0.0
    %v219 = vmax.f32 %v210, 0.0
    %v220 = vld [vmem:[#allocation2] sm:$0xff]
    %v221 = vld [vmem:[#allocation2 + $0x8] sm:$0xff]
    %v222 = vld [vmem:[#allocation2 + $0x10] sm:$0xff]
    %v223 = vld [vmem:[#allocation2 + $0x18] sm:$0xff]
    %v224 = vpack.c.bf16 %v214, %v212
    %v225 = vpack.c.bf16 %v215, %v213
    %v226 = vpack.c.bf16 %v218, %v216
    %v227 = vpack.c.bf16 %v219, %v217
    %v228 = vld [vmem:[#allocation5] sm:$0xf]
    %v229 = vld [vmem:[#allocation5 + $0x4] sm:$0xf]
    %v230 = vld [vmem:[#allocation5 + $0x8] sm:$0xf]
    %v231 = vld [vmem:[#allocation5 + $0xc] sm:$0xf]
    %v232 = vld [vmem:[#allocation5 + $0x10] sm:$0xf]
    %v233 = vld [vmem:[#allocation5 + $0x14] sm:$0xf]
    %v234 = vld [vmem:[#allocation5 + $0x18] sm:$0xf]
    %v235 = vld [vmem:[#allocation5 + $0x1c] sm:$0xf]
    %v236 = vld [vmem:[#allocation5 + $0x20] sm:$0xf]
    %v237 = vld [vmem:[#allocation5 + $0x24] sm:$0xf]
    %v238 = vld [vmem:[#allocation5 + $0x28] sm:$0xf]
    %v239 = vld [vmem:[#allocation5 + $0x2c] sm:$0xf]
    %v240 = vld [vmem:[#allocation5 + $0x30] sm:$0xf]
    %v241 = vld [vmem:[#allocation5 + $0x34] sm:$0xf]
    %v242 = vld [vmem:[#allocation5 + $0x38] sm:$0xf]
    %v243 = vld [vmem:[#allocation5 + $0x3c] sm:$0xf]
    %v244 = vld [vmem:[#allocation5 + $0x40] sm:$0xf]
    %v245 = vld [vmem:[#allocation5 + $0x44] sm:$0xf]
    %v246 = vld [vmem:[#allocation5 + $0x48] sm:$0xf]
    %v247 = vld [vmem:[#allocation5 + $0x4c] sm:$0xf]
    %v248 = vld [vmem:[#allocation5 + $0x50] sm:$0xf]
    %v249 = vld [vmem:[#allocation5 + $0x54] sm:$0xf]
    %v250 = vld [vmem:[#allocation5 + $0x58] sm:$0xf]
    %v251 = vld [vmem:[#allocation5 + $0x5c] sm:$0xf]
    %v252 = vld [vmem:[#allocation5 + $0x60] sm:$0xf]
    %v253 = vld [vmem:[#allocation5 + $0x64] sm:$0xf]
    %v254 = vld [vmem:[#allocation5 + $0x68] sm:$0xf]
    %v255 = vld [vmem:[#allocation5 + $0x6c] sm:$0xf]
    %v256 = vld [vmem:[#allocation5 + $0x70] sm:$0xf]
    %v257 = vld [vmem:[#allocation5 + $0x74] sm:$0xf]
    %v258 = vld [vmem:[#allocation5 + $0x78] sm:$0xf]
    %v259 = vld [vmem:[#allocation5 + $0x7c] sm:$0xf]
    %v292 = vunpack.c.l.b16 %v228
    %v293 = vunpack.c.l.b16 %v229
    %v294 = vunpack.c.l.b16 %v230
    %v295 = vunpack.c.l.b16 %v231
    %v296 = vunpack.c.l.b16 %v232
    %v297 = vunpack.c.l.b16 %v233
    %v298 = vunpack.c.l.b16 %v234
    %v299 = vunpack.c.l.b16 %v235
    %v300 = vunpack.c.l.b16 %v236
    %v301 = vunpack.c.l.b16 %v237
    %v302 = vunpack.c.l.b16 %v238
    %v303 = vunpack.c.l.b16 %v239
    %v304 = vunpack.c.l.b16 %v240
    %v305 = vunpack.c.l.b16 %v241
    %v306 = vunpack.c.l.b16 %v242
    %v307 = vunpack.c.l.b16 %v243
    %v308 = vunpack.c.l.b16 %v244
    %v309 = vunpack.c.l.b16 %v245
    %v310 = vunpack.c.l.b16 %v246
    %v311 = vunpack.c.l.b16 %v247
    %v312 = vunpack.c.l.b16 %v248
    %v313 = vunpack.c.l.b16 %v249
    %v314 = vunpack.c.l.b16 %v250
    %v315 = vunpack.c.l.b16 %v251
    %v316 = vunpack.c.l.b16 %v252
    %v317 = vunpack.c.l.b16 %v253
    %v318 = vunpack.c.l.b16 %v254
    %v319 = vunpack.c.l.b16 %v255
    %v320 = vunpack.c.l.b16 %v256
    %v321 = vunpack.c.l.b16 %v257
    %v322 = vunpack.c.l.b16 %v258
    %v323 = vunpack.c.l.b16 %v259
    %v324 = vpack.c.b16 %v293, %v292
    %v325 = vpack.c.b16 %v295, %v294
    %v326 = vpack.c.b16 %v297, %v296
    %v327 = vpack.c.b16 %v299, %v298
    %v328 = vpack.c.b16 %v301, %v300
    %v329 = vpack.c.b16 %v303, %v302
    %v330 = vpack.c.b16 %v305, %v304
    %v331 = vpack.c.b16 %v307, %v306
    %v332 = vpack.c.b16 %v309, %v308
    %v333 = vpack.c.b16 %v311, %v310
    %v334 = vpack.c.b16 %v313, %v312
    %v335 = vpack.c.b16 %v315, %v314
    %v336 = vpack.c.b16 %v317, %v316
    %v337 = vpack.c.b16 %v319, %v318
    %v338 = vpack.c.b16 %v321, %v320
    %v339 = vpack.c.b16 %v323, %v322
    %356 = vmatpush.bf16.msra.mxu0 %v331
    %357 = vmatpush.bf16.msra.mxu0 %v330
    %358 = vmatpush.bf16.msra.mxu0 %v329
    %359 = vmatpush.bf16.msra.mxu0 %v328
    %360 = vmatpush.bf16.msra.mxu0 %v327
    %361 = vmatpush.bf16.msra.mxu0 %v326
    %362 = vmatpush.bf16.msra.mxu0 %v325
    %363 = vmatpush.bf16.msra.mxu0 %v324
    %364 = vmatmul.bf16.gmra.mxu0 %v224
    %v365 = vpop.f32.mrf.mxu0
    %v366 = vadd.f32 0.0, %v365
    %v367 = vpop.f32.mrf.mxu0
    %v368 = vadd.f32 0.0, %v367
    %369 = vmatmul.bf16.gmra.mxu0 %v226
    %v370 = vpop.f32.mrf.mxu0
    %v371 = vadd.f32 0.0, %v370
    %v372 = vpop.f32.mrf.mxu0
    %v373 = vadd.f32 0.0, %v372
    %374 = vdwg.mxu0
    %375 = vmatpush.bf16.msra.mxu0 %v339
    %376 = vmatpush.bf16.msra.mxu0 %v338
    %377 = vmatpush.bf16.msra.mxu0 %v337
    %378 = vmatpush.bf16.msra.mxu0 %v336
    %379 = vmatpush.bf16.msra.mxu0 %v335
    %380 = vmatpush.bf16.msra.mxu0 %v334
    %381 = vmatpush.bf16.msra.mxu0 %v333
    %382 = vmatpush.bf16.msra.mxu0 %v332
    %383 = vmatmul.bf16.gmra.mxu0 %v225
    %v384 = vpop.f32.mrf.mxu0
    %v385 = vadd.f32 %v366, %v384
    %v386 = vpop.f32.mrf.mxu0
    %v387 = vadd.f32 %v368, %v386
    %388 = vmatmul.bf16.gmra.mxu0 %v227
    %v389 = vpop.f32.mrf.mxu0
    %v390 = vadd.f32 %v371, %v389
    %v391 = vpop.f32.mrf.mxu0
    %v392 = vadd.f32 %v373, %v391
    %393 = vdwg.mxu0
    %v394 = vadd.f32 %v220, %v385
    %v395 = vadd.f32 %v221, %v387
    %v396 = vadd.f32 %v222, %v390
    %v397 = vadd.f32 %v223, %v392
    %398 = vst [vmem:[#allocation2] sm:$0xff] %v394
    %399 = vst [vmem:[#allocation2 + $0x8] sm:$0xff] %v395
    %400 = vst [vmem:[#allocation2 + $0x10] sm:$0xff] %v396
    %401 = vst [vmem:[#allocation2 + $0x18] sm:$0xff] %v397
    // Predicated region
    $region42: #{decoder_forward.18} parent=1 // pred_check
      %p402 = pneg %p58
    $region43: #{decoder_forward.18} parent=1 // pred_check_branch
      %404 = sbr.rel (%p402) target = $region45
    $region44: #{decoder_forward.18} parent=1 // pred_region
      %v405 = vld [vmem:[#allocation2] sm:$0xff]
      %v406 = vld [vmem:[#allocation2 + $0x8] sm:$0xff]
      %v407 = vld [vmem:[#allocation2 + $0x10] sm:$0xff]
      %v408 = vld [vmem:[#allocation2 + $0x18] sm:$0xff]
      %v409 = vld [vmem:[%s4] sm:$0x1]
      %v411 = vperm.slane %v409, 0
      %v413 = vadd.f32 %v405, %v411
      %v414 = vadd.f32 %v406, %v411
      %v415 = vadd.f32 %v407, %v411
      %v416 = vadd.f32 %v408, %v411
      %v417 = vld [vmem:[%s0] sm:$0xff]
      %v418 = vld [vmem:[%s0 + $0x8] sm:$0xff]
      %v419 = vld [vmem:[%s0 + $0x10] sm:$0xff]
      %v420 = vld [vmem:[%s0 + $0x18] sm:$0xff]
      %v421 = vadd.f32 %v413, %v417
      %v422 = vadd.f32 %v414, %v418
      %v423 = vadd.f32 %v415, %v419
      %v424 = vadd.f32 %v416, %v420
      %v425 = vld [vmem:[%s5] sm:$0x1]
      %v426 = vld [vmem:[%s6] sm:$0x1]
      %427 = vadd.xlane.f32.xlu0 %v421
      %v428 = vpop.xlane.xlu0 %427
      %429 = vadd.xlane.f32.xlu0 %v422
      %v430 = vpop.xlane.xlu0 %429
      %431 = vadd.xlane.f32.xlu0 %v423
      %v432 = vpop.xlane.xlu0 %431
      %433 = vadd.xlane.f32.xlu0 %v424
      %v434 = vpop.xlane.xlu0 %433
      %v435 = vmul.f32 %v428, 0.0078125
      %v436 = vmul.f32 %v430, 0.0078125
      %v437 = vmul.f32 %v432, 0.0078125
      %v438 = vmul.f32 %v434, 0.0078125
      %v439 = vmul.f32 %v421, %v421
      %v440 = vmul.f32 %v422, %v422
      %v441 = vmul.f32 %v423, %v423
      %v442 = vmul.f32 %v424, %v424
      %443 = vadd.xlane.f32.xlu0 %v439
      %v444 = vpop.xlane.xlu0 %443
      %445 = vadd.xlane.f32.xlu0 %v440
      %v446 = vpop.xlane.xlu0 %445
      %447 = vadd.xlane.f32.xlu0 %v441
      %v448 = vpop.xlane.xlu0 %447
      %449 = vadd.xlane.f32.xlu0 %v442
      %v450 = vpop.xlane.xlu0 %449
      %v451 = vmul.f32 %v444, 0.0078125
      %v452 = vmul.f32 %v446, 0.0078125
      %v453 = vmul.f32 %v448, 0.0078125
      %v454 = vmul.f32 %v450, 0.0078125
      %v455 = vmul.f32 %v435, %v435
      %v456 = vmul.f32 %v436, %v436
      %v457 = vmul.f32 %v437, %v437
      %v458 = vmul.f32 %v438, %v438
      %v459 = vsub.f32 %v451, %v455
      %v460 = vsub.f32 %v452, %v456
      %v461 = vsub.f32 %v453, %v457
      %v462 = vsub.f32 %v454, %v458
      %v463 = vmax.f32 %v459, 0.0
      %v464 = vmax.f32 %v460, 0.0
      %v465 = vmax.f32 %v461, 0.0
      %v466 = vmax.f32 %v462, 0.0
      %v467 = vsub.f32 %v421, %v435
      %v468 = vsub.f32 %v422, %v436
      %v469 = vsub.f32 %v423, %v437
      %v470 = vsub.f32 %v424, %v438
      %v471 = vadd.f32 %v463, 1e-05
      %v472 = vadd.f32 %v464, 1e-05
      %v473 = vadd.f32 %v465, 1e-05
      %v474 = vadd.f32 %v466, 1e-05
      %v475 = vrsqrt.pop %v471
      %v476 = vmul.f32 %v475, %v471
      %v477 = vmul.f32 %v476, %v475
      %v478 = vmul.f32 0.5, %v477
      %v479 = vsub.f32 1.5, %v478
      %v480 = vmul.f32 %v475, %v479
      %vm481 = vweird.f32 %v471
      %vm482 = vweird.f32 %v475
      %vm483 = vmor %vm481, %vm482
      %v484 = vsel %vm483, %v475, %v480
      %v485 = vrsqrt.pop %v472
      %v486 = vmul.f32 %v485, %v472
      %v487 = vmul.f32 %v486, %v485
      %v488 = vmul.f32 0.5, %v487
      %v489 = vsub.f32 1.5, %v488
      %v490 = vmul.f32 %v485, %v489
      %vm491 = vweird.f32 %v472
      %vm492 = vweird.f32 %v485
      %vm493 = vmor %vm491, %vm492
      %v494 = vsel %vm493, %v485, %v490
      %v495 = vrsqrt.pop %v473
      %v496 = vmul.f32 %v495, %v473
      %v497 = vmul.f32 %v496, %v495
      %v498 = vmul.f32 0.5, %v497
      %v499 = vsub.f32 1.5, %v498
      %v500 = vmul.f32 %v495, %v499
      %vm501 = vweird.f32 %v473
      %vm502 = vweird.f32 %v495
      %vm503 = vmor %vm501, %vm502
      %v504 = vsel %vm503, %v495, %v500
      %v505 = vrsqrt.pop %v474
      %v506 = vmul.f32 %v505, %v474
      %v507 = vmul.f32 %v506, %v505
      %v508 = vmul.f32 0.5, %v507
      %v509 = vsub.f32 1.5, %v508
      %v510 = vmul.f32 %v505, %v509
      %vm511 = vweird.f32 %v474
      %vm512 = vweird.f32 %v505
      %vm513 = vmor %vm511, %vm512
      %v514 = vsel %vm513, %v505, %v510
      %v515 = vmul.f32 %v467, %v484
      %v516 = vmul.f32 %v468, %v494
      %v517 = vmul.f32 %v469, %v504
      %v518 = vmul.f32 %v470, %v514
      %v520 = vperm.slane %v425, 0
      %v522 = vmul.f32 %v515, %v520
      %v523 = vmul.f32 %v516, %v520
      %v524 = vmul.f32 %v517, %v520
      %v525 = vmul.f32 %v518, %v520
      %v527 = vperm.slane %v426, 0
      %v529 = vadd.f32 %v522, %v527
      %v530 = vadd.f32 %v523, %v527
      %v531 = vadd.f32 %v524, %v527
      %v532 = vadd.f32 %v525, %v527
      %533 = vst [vmem:[%s7] sm:$0xff] %v529
      %534 = vst [vmem:[%s7 + $0x8] sm:$0xff] %v530
      %535 = vst [vmem:[%s7 + $0x10] sm:$0xff] %v531
      %536 = vst [vmem:[%s7 + $0x18] sm:$0xff] %v532
    $region45: #{decoder_forward.18} parent=1 // pred_fallthru
      _
    // Predicated region
    $region46: #{decoder_forward.18} parent=1 // pred_check
      _
    $region47: #{decoder_forward.18} parent=1 // pred_check_branch
      %538 = sbr.rel (0) target = $region49
    $region48: #{decoder_forward.18} parent=1 // pred_region
      _
    $region49: #{decoder_forward.18} parent=1 // pred_fallthru
      _
    // Predicated region
    $region50: #{decoder_forward.18} parent=1 // pred_check
      _
    $region51: #{decoder_forward.18} parent=1 // pred_check_branch
      %540 = sbr.rel (0) target = $region53
    $region52: #{decoder_forward.18} parent=1 // pred_region
      _
    $region53: #{decoder_forward.18} parent=1 // pred_fallthru
      _
    %541 = vsyncpa [#allocation4], 1
    %542 = vsyncpa [#allocation6], 1

// kernel: decoder_forward.24
$region0: #{decoder_forward.24}
  #allocation0 [shape = 'u32[]', space=smem, size = 0x4, offset = 0x4, fixed_abs, tag = 'smem constant byte address 0x4 - core index']
  #allocation1 [shape = 'u32[72,128]{1,0:T(1,128)}', space=vmem, size = 0x9000, scoped, tag = 'internal scratch']
  #allocation2 [shape = 'f32[32,128]{1,0:T(8,128)}', space=vmem, size = 0x4000, scoped, tag = 'scratch operand']
  %s0 = inlined_call_operand.vmem [shape: f32[32,128], index: 0, kind: input, shape index: {}]
  %s1 = inlined_call_operand.hbm [shape: bf16[128,256], index: 1, kind: input, shape index: {}]
  %s2 = inlined_call_operand.vmem [shape: f32[1,256], index: 2, kind: input, shape index: {}]
  %s3 = inlined_call_operand.hbm [shape: bf16[256,128], index: 3, kind: input, shape index: {}]
  %s4 = inlined_call_operand.hbm [shape: f32[1,128], index: 4, kind: input, shape index: {}]
  %s5 = inlined_call_operand.hbm [shape: f32[1,128], index: 5, kind: input, shape index: {}]
  %s6 = inlined_call_operand.hbm [shape: f32[1,128], index: 6, kind: input, shape index: {}]
  %s7 = inlined_call_operand.vmem [shape: f32[32,128], index: 7, kind: output, shape index: {}]
  %s8 = sld [smem:[#allocation0]]
  $region66: #{decoder_forward.24} parent=0
    _
  %s10 = ssub.s32 1, %s8
  %s11 = scalar_select 0, %s10, %s8
  $region1: #{decoder_forward.24} parent=0
    #allocation3 [shape = 'u8[65536]{0}', space=vmem, size = 0x10000, scoped, tag = 'input window, operand 1, single buffered']
    #allocation4 [shape = 's32[1]{0}', space=sflag, size = 0x4, scoped, tag = 'scoped memory for decoder_forward.24']
    #allocation5 [shape = 'u8[65536]{0}', space=vmem, size = 0x10000, scoped, tag = 'input window, operand 3, single buffered']
    #allocation6 [shape = 's32[1]{0}', space=sflag, size = 0x4, scoped, tag = 'scoped memory for decoder_forward.24']
    #allocation7 [shape = 'u8[512]{0}', space=vmem, size = 0x400, scoped, tag = 'input window, operand 4, single buffered']
    #allocation8 [shape = 'u8[512]{0}', space=vmem, size = 0x400, scoped, tag = 'input window, operand 5, single buffered']
    #allocation9 [shape = 's32[1]{0}', space=sflag, size = 0x4, scoped, tag = 'scoped memory for decoder_forward.24']
    #allocation10 [shape = 'u8[512]{0}', space=vmem, size = 0x400, scoped, tag = 'input window, operand 6, single buffered']
    %12 = vsyncpa [#allocation4], 0
    %13 = vsyncpa [#allocation6], 0
    %14 = vsyncpa [#allocation9], 0
    // Predicated region
    $region2: #{decoder_forward.24} parent=1 // pred_check
      _
    $region3: #{decoder_forward.24} parent=1 // pred_check_branch
      %16 = sbr.rel (0) target = $region5
    $region4: #{decoder_forward.24} parent=1 // pred_region
      _
    $region5: #{decoder_forward.24} parent=1 // pred_fallthru
      _
    // Predicated region
    $region6: #{decoder_forward.24} parent=1 // pred_check
      _
    $region7: #{decoder_forward.24} parent=1 // pred_check_branch
      %18 = sbr.rel (0) target = $region9
    $region8: #{decoder_forward.24} parent=1 // pred_region
      %20 = vsyncadd [#allocation4], 0
      %s21 = sshll.u32 %s1, 4
      %s22 = int_to_ptr.hbm [resolvable:$true] %s21
      %s23 = sshll.u32 [#allocation3], 4
      %s24 = int_to_ptr.vmem [resolvable:$true] %s23
      %29 = dma.hbm_to_vmem [thread:$0]  %s22, 2048, %s24, [#allocation4], 128, 128, 8
    $region9: #{decoder_forward.24} parent=1 // pred_fallthru
      _
    // Predicated region
    $region10: #{decoder_forward.24} parent=1 // pred_check
      _
    $region11: #{decoder_forward.24} parent=1 // pred_check_branch
      %31 = sbr.rel (0) target = $region13
    $region12: #{decoder_forward.24} parent=1 // pred_region
      _
    $region13: #{decoder_forward.24} parent=1 // pred_fallthru
      _
    // Predicated region
    $region14: #{decoder_forward.24} parent=1 // pred_check
      _
    $region15: #{decoder_forward.24} parent=1 // pred_check_branch
      %33 = sbr.rel (0) target = $region17
    $region16: #{decoder_forward.24} parent=1 // pred_region
      %35 = vsyncadd [#allocation6], 0
      %s36 = sshll.u32 %s3, 4
      %s37 = int_to_ptr.hbm [resolvable:$true] %s36
      %s38 = sshll.u32 [#allocation5], 4
      %s39 = int_to_ptr.vmem [resolvable:$true] %s38
      %44 = dma.hbm_to_vmem [thread:$0]  %s37, 2048, %s39, [#allocation6], 64, 64, 4
    $region17: #{decoder_forward.24} parent=1 // pred_fallthru
      _
    // Predicated region
    $region18: #{decoder_forward.24} parent=1 // pred_check
      _
    $region19: #{decoder_forward.24} parent=1 // pred_check_branch
      %46 = sbr.rel (0) target = $region21
    $region20: #{decoder_forward.24} parent=1 // pred_region
      %48 = vsyncadd [#allocation6], 0
      %s50 = sshll.u32 %s4, 4
      %s51 = int_to_ptr.hbm [resolvable:$true] %s50
      %s52 = sshll.u32 [#allocation7], 4
      %s53 = int_to_ptr.vmem [resolvable:$true] %s52
      %55 = dma.hbm_to_vmem [thread:$0]  %s51, 16, %s53, [#allocation6]
    $region21: #{decoder_forward.24} parent=1 // pred_fallthru
      _
    // Predicated region
    $region22: #{decoder_forward.24} parent=1 // pred_check
      _
    $region23: #{decoder_forward.24} parent=1 // pred_check_branch
      %57 = sbr.rel (0) target = $region25
    $region24: #{decoder_forward.24} parent=1 // pred_region
      %59 = vsyncadd [#allocation9], 0
      %s61 = sshll.u32 %s5, 4
      %s62 = int_to_ptr.hbm [resolvable:$true] %s61
      %s63 = sshll.u32 [#allocation8], 4
      %s64 = int_to_ptr.vmem [resolvable:$true] %s63
      %66 = dma.hbm_to_vmem [thread:$0]  %s62, 16, %s64, [#allocation9]
    $region25: #{decoder_forward.24} parent=1 // pred_fallthru
      _
    // Predicated region
    $region26: #{decoder_forward.24} parent=1 // pred_check
      _
    $region27: #{decoder_forward.24} parent=1 // pred_check_branch
      %68 = sbr.rel (0) target = $region29
    $region28: #{decoder_forward.24} parent=1 // pred_region
      %70 = vsyncadd [#allocation9], 0
      %s72 = sshll.u32 %s6, 4
      %s73 = int_to_ptr.hbm [resolvable:$true] %s72
      %s74 = sshll.u32 [#allocation10], 4
      %s75 = int_to_ptr.vmem [resolvable:$true] %s74
      %77 = dma.hbm_to_vmem [thread:$0]  %s73, 16, %s75, [#allocation9]
    $region29: #{decoder_forward.24} parent=1 // pred_fallthru
      _
    // Predicated region
    $region30: #{decoder_forward.24} parent=1 // pred_check
      _
    $region31: #{decoder_forward.24} parent=1 // pred_check_branch
      %79 = sbr.rel (0) target = $region33
    $region32: #{decoder_forward.24} parent=1 // pred_region
      %81 = dma.done [#allocation4], 2048
    $region33: #{decoder_forward.24} parent=1 // pred_fallthru
      _
    // Predicated region
    $region34: #{decoder_forward.24} parent=1 // pred_check
      _
    $region35: #{decoder_forward.24} parent=1 // pred_check_branch
      %83 = sbr.rel (0) target = $region37
    $region36: #{decoder_forward.24} parent=1 // pred_region
      %85 = dma.done [#allocation6], 2048
    $region37: #{decoder_forward.24} parent=1 // pred_fallthru
      _
    // Predicated region
    $region38: #{decoder_forward.24} parent=1 // pred_check
      _
    $region39: #{decoder_forward.24} parent=1 // pred_check_branch
      %87 = sbr.rel (0) target = $region41
    $region40: #{decoder_forward.24} parent=1 // pred_region
      %89 = dma.done [#allocation6], 16
    $region41: #{decoder_forward.24} parent=1 // pred_fallthru
      _
    // Predicated region
    $region42: #{decoder_forward.24} parent=1 // pred_check
      _
    $region43: #{decoder_forward.24} parent=1 // pred_check_branch
      %91 = sbr.rel (0) target = $region45
    $region44: #{decoder_forward.24} parent=1 // pred_region
      %93 = dma.done [#allocation9], 16
    $region45: #{decoder_forward.24} parent=1 // pred_fallthru
      _
    // Predicated region
    $region46: #{decoder_forward.24} parent=1 // pred_check
      _
    $region47: #{decoder_forward.24} parent=1 // pred_check_branch
      %95 = sbr.rel (0) target = $region49
    $region48: #{decoder_forward.24} parent=1 // pred_region
      %97 = dma.done [#allocation9], 16
    $region49: #{decoder_forward.24} parent=1 // pred_fallthru
      _
    %p98 = scmp.eq.s32.totalorder 0, 0
    // Predicated region
    $region50: #{decoder_forward.24} parent=1 // pred_check
      %p99 = pneg %p98
    $region51: #{decoder_forward.24} parent=1 // pred_check_branch
      %101 = sbr.rel (%p99) target = $region53
    $region52: #{decoder_forward.24} parent=1 // pred_region
      %102 = vst [vmem:[#allocation2] sm:$0xff] 0.0
      %103 = vst [vmem:[#allocation2 + $0x8] sm:$0xff] 0.0
      %104 = vst [vmem:[#allocation2 + $0x10] sm:$0xff] 0.0
      %105 = vst [vmem:[#allocation2 + $0x18] sm:$0xff] 0.0
    $region53: #{decoder_forward.24} parent=1 // pred_fallthru
      _
    %v106 = vld [vmem:[%s0] sm:$0xff]
    %v107 = vld [vmem:[%s0 + $0x8] sm:$0xff]
    %v108 = vld [vmem:[%s0 + $0x10] sm:$0xff]
    %v109 = vld [vmem:[%s0 + $0x18] sm:$0xff]
    %v110 = vpack.c.bf16 %v107, %v106
    %v111 = vpack.c.bf16 %v109, %v108
    %v112 = vld [vmem:[#allocation3] sm:$0xff]
    %v113 = vld [vmem:[#allocation3 + $0x8] sm:$0xff]
    %v114 = vld [vmem:[#allocation3 + $0x10] sm:$0xff]
    %v115 = vld [vmem:[#allocation3 + $0x18] sm:$0xff]
    %v116 = vld [vmem:[#allocation3 + $0x20] sm:$0xff]
    %v117 = vld [vmem:[#allocation3 + $0x28] sm:$0xff]
    %v118 = vld [vmem:[#allocation3 + $0x30] sm:$0xff]
    %v119 = vld [vmem:[#allocation3 + $0x38] sm:$0xff]
    %v120 = vld [vmem:[#allocation3 + $0x40] sm:$0xff]
    %v121 = vld [vmem:[#allocation3 + $0x48] sm:$0xff]
    %v122 = vld [vmem:[#allocation3 + $0x50] sm:$0xff]
    %v123 = vld [vmem:[#allocation3 + $0x58] sm:$0xff]
    %v124 = vld [vmem:[#allocation3 + $0x60] sm:$0xff]
    %v125 = vld [vmem:[#allocation3 + $0x68] sm:$0xff]
    %v126 = vld [vmem:[#allocation3 + $0x70] sm:$0xff]
    %v127 = vld [vmem:[#allocation3 + $0x78] sm:$0xff]
    %v128 = vld [vmem:[%s2] sm:$0x3]
    %v130 = vperm.slane %v128, 0
    %v131 = vperm.slane %v128, 1
    %v150 = vunpack.c.l.b16 %v112
    %v151 = vunpack.c.h.b16 %v112
    %v152 = vunpack.c.l.b16 %v113
    %v153 = vunpack.c.h.b16 %v113
    %v154 = vunpack.c.l.b16 %v114
    %v155 = vunpack.c.h.b16 %v114
    %v156 = vunpack.c.l.b16 %v115
    %v157 = vunpack.c.h.b16 %v115
    %v158 = vunpack.c.l.b16 %v116
    %v159 = vunpack.c.h.b16 %v116
    %v160 = vunpack.c.l.b16 %v117
    %v161 = vunpack.c.h.b16 %v117
    %v162 = vunpack.c.l.b16 %v118
    %v163 = vunpack.c.h.b16 %v118
    %v164 = vunpack.c.l.b16 %v119
    %v165 = vunpack.c.h.b16 %v119
    %v166 = vunpack.c.l.b16 %v120
    %v167 = vunpack.c.h.b16 %v120
    %v168 = vunpack.c.l.b16 %v121
    %v169 = vunpack.c.h.b16 %v121
    %v170 = vunpack.c.l.b16 %v122
    %v171 = vunpack.c.h.b16 %v122
    %v172 = vunpack.c.l.b16 %v123
    %v173 = vunpack.c.h.b16 %v123
    %v174 = vunpack.c.l.b16 %v124
    %v175 = vunpack.c.h.b16 %v124
    %v176 = vunpack.c.l.b16 %v125
    %v177 = vunpack.c.h.b16 %v125
    %v178 = vunpack.c.l.b16 %v126
    %v179 = vunpack.c.h.b16 %v126
    %v180 = vunpack.c.l.b16 %v127
    %v181 = vunpack.c.h.b16 %v127
    %v182 = vpack.c.b16 %v152, %v150
    %v183 = vpack.c.b16 %v153, %v151
    %v184 = vpack.c.b16 %v156, %v154
    %v185 = vpack.c.b16 %v157, %v155
    %v186 = vpack.c.b16 %v160, %v158
    %v187 = vpack.c.b16 %v161, %v159
    %v188 = vpack.c.b16 %v164, %v162
    %v189 = vpack.c.b16 %v165, %v163
    %v190 = vpack.c.b16 %v168, %v166
    %v191 = vpack.c.b16 %v169, %v167
    %v192 = vpack.c.b16 %v172, %v170
    %v193 = vpack.c.b16 %v173, %v171
    %v194 = vpack.c.b16 %v176, %v174
    %v195 = vpack.c.b16 %v177, %v175
    %v196 = vpack.c.b16 %v180, %v178
    %v197 = vpack.c.b16 %v181, %v179
    %214 = vmatpush.bf16.msra.mxu0 %v196
    %215 = vmatpush.bf16.msra.mxu0 %v194
    %216 = vmatpush.bf16.msra.mxu0 %v192
    %217 = vmatpush.bf16.msra.mxu0 %v190
    %218 = vmatpush.bf16.msra.mxu0 %v188
    %219 = vmatpush.bf16.msra.mxu0 %v186
    %220 = vmatpush.bf16.msra.mxu0 %v184
    %221 = vmatpush.bf16.msra.mxu0 %v182
    %222 = vmatmul.bf16.gmra.mxu0 %v110
    %v223 = vpop.f32.mrf.mxu0
    %v224 = vadd.f32 %v130, %v223
    %v225 = vpop.f32.mrf.mxu0
    %v226 = vadd.f32 %v130, %v225
    %227 = vmatmul.bf16.gmra.mxu0 %v111
    %v228 = vpop.f32.mrf.mxu0
    %v229 = vadd.f32 %v130, %v228
    %v230 = vpop.f32.mrf.mxu0
    %v231 = vadd.f32 %v130, %v230
    %232 = vdwg.mxu0
    %233 = vmatpush.bf16.msra.mxu0 %v197
    %234 = vmatpush.bf16.msra.mxu0 %v195
    %235 = vmatpush.bf16.msra.mxu0 %v193
    %236 = vmatpush.bf16.msra.mxu0 %v191
    %237 = vmatpush.bf16.msra.mxu0 %v189
    %238 = vmatpush.bf16.msra.mxu0 %v187
    %239 = vmatpush.bf16.msra.mxu0 %v185
    %240 = vmatpush.bf16.msra.mxu0 %v183
    %241 = vmatmul.bf16.gmra.mxu0 %v110
    %v242 = vpop.f32.mrf.mxu0
    %v243 = vadd.f32 %v131, %v242
    %v244 = vpop.f32.mrf.mxu0
    %v245 = vadd.f32 %v131, %v244
    %246 = vmatmul.bf16.gmra.mxu0 %v111
    %v247 = vpop.f32.mrf.mxu0
    %v248 = vadd.f32 %v131, %v247
    %v249 = vpop.f32.mrf.mxu0
    %v250 = vadd.f32 %v131, %v249
    %251 = vdwg.mxu0
    %v252 = vmax.f32 %v224, 0.0
    %v253 = vmax.f32 %v243, 0.0
    %v254 = vmax.f32 %v226, 0.0
    %v255 = vmax.f32 %v245, 0.0
    %v256 = vmax.f32 %v229, 0.0
    %v257 = vmax.f32 %v248, 0.0
    %v258 = vmax.f32 %v231, 0.0
    %v259 = vmax.f32 %v250, 0.0
    %v260 = vld [vmem:[#allocation2] sm:$0xff]
    %v261 = vld [vmem:[#allocation2 + $0x8] sm:$0xff]
    %v262 = vld [vmem:[#allocation2 + $0x10] sm:$0xff]
    %v263 = vld [vmem:[#allocation2 + $0x18] sm:$0xff]
    %v264 = vpack.c.bf16 %v254, %v252
    %v265 = vpack.c.bf16 %v255, %v253
    %v266 = vpack.c.bf16 %v258, %v256
    %v267 = vpack.c.bf16 %v259, %v257
    %v268 = vld [vmem:[#allocation5] sm:$0xf]
    %v269 = vld [vmem:[#allocation5 + $0x4] sm:$0xf]
    %v270 = vld [vmem:[#allocation5 + $0x8] sm:$0xf]
    %v271 = vld [vmem:[#allocation5 + $0xc] sm:$0xf]
    %v272 = vld [vmem:[#allocation5 + $0x10] sm:$0xf]
    %v273 = vld [vmem:[#allocation5 + $0x14] sm:$0xf]
    %v274 = vld [vmem:[#allocation5 + $0x18] sm:$0xf]
    %v275 = vld [vmem:[#allocation5 + $0x1c] sm:$0xf]
    %v276 = vld [vmem:[#allocation5 + $0x20] sm:$0xf]
    %v277 = vld [vmem:[#allocation5 + $0x24] sm:$0xf]
    %v278 = vld [vmem:[#allocation5 + $0x28] sm:$0xf]
    %v279 = vld [vmem:[#allocation5 + $0x2c] sm:$0xf]
    %v280 = vld [vmem:[#allocation5 + $0x30] sm:$0xf]
    %v281 = vld [vmem:[#allocation5 + $0x34] sm:$0xf]
    %v282 = vld [vmem:[#allocation5 + $0x38] sm:$0xf]
    %v283 = vld [vmem:[#allocation5 + $0x3c] sm:$0xf]
    %v284 = vld [vmem:[#allocation5 + $0x40] sm:$0xf]
    %v285 = vld [vmem:[#allocation5 + $0x44] sm:$0xf]
    %v286 = vld [vmem:[#allocation5 + $0x48] sm:$0xf]
    %v287 = vld [vmem:[#allocation5 + $0x4c] sm:$0xf]
    %v288 = vld [vmem:[#allocation5 + $0x50] sm:$0xf]
    %v289 = vld [vmem:[#allocation5 + $0x54] sm:$0xf]
    %v290 = vld [vmem:[#allocation5 + $0x58] sm:$0xf]
    %v291 = vld [vmem:[#allocation5 + $0x5c] sm:$0xf]
    %v292 = vld [vmem:[#allocation5 + $0x60] sm:$0xf]
    %v293 = vld [vmem:[#allocation5 + $0x64] sm:$0xf]
    %v294 = vld [vmem:[#allocation5 + $0x68] sm:$0xf]
    %v295 = vld [vmem:[#allocation5 + $0x6c] sm:$0xf]
    %v296 = vld [vmem:[#allocation5 + $0x70] sm:$0xf]
    %v297 = vld [vmem:[#allocation5 + $0x74] sm:$0xf]
    %v298 = vld [vmem:[#allocation5 + $0x78] sm:$0xf]
    %v299 = vld [vmem:[#allocation5 + $0x7c] sm:$0xf]
    %v332 = vunpack.c.l.b16 %v268
    %v333 = vunpack.c.l.b16 %v269
    %v334 = vunpack.c.l.b16 %v270
    %v335 = vunpack.c.l.b16 %v271
    %v336 = vunpack.c.l.b16 %v272
    %v337 = vunpack.c.l.b16 %v273
    %v338 = vunpack.c.l.b16 %v274
    %v339 = vunpack.c.l.b16 %v275
    %v340 = vunpack.c.l.b16 %v276
    %v341 = vunpack.c.l.b16 %v277
    %v342 = vunpack.c.l.b16 %v278
    %v343 = vunpack.c.l.b16 %v279
    %v344 = vunpack.c.l.b16 %v280
    %v345 = vunpack.c.l.b16 %v281
    %v346 = vunpack.c.l.b16 %v282
    %v347 = vunpack.c.l.b16 %v283
    %v348 = vunpack.c.l.b16 %v284
    %v349 = vunpack.c.l.b16 %v285
    %v350 = vunpack.c.l.b16 %v286
    %v351 = vunpack.c.l.b16 %v287
    %v352 = vunpack.c.l.b16 %v288
    %v353 = vunpack.c.l.b16 %v289
    %v354 = vunpack.c.l.b16 %v290
    %v355 = vunpack.c.l.b16 %v291
    %v356 = vunpack.c.l.b16 %v292
    %v357 = vunpack.c.l.b16 %v293
    %v358 = vunpack.c.l.b16 %v294
    %v359 = vunpack.c.l.b16 %v295
    %v360 = vunpack.c.l.b16 %v296
    %v361 = vunpack.c.l.b16 %v297
    %v362 = vunpack.c.l.b16 %v298
    %v363 = vunpack.c.l.b16 %v299
    %v364 = vpack.c.b16 %v333, %v332
    %v365 = vpack.c.b16 %v335, %v334
    %v366 = vpack.c.b16 %v337, %v336
    %v367 = vpack.c.b16 %v339, %v338
    %v368 = vpack.c.b16 %v341, %v340
    %v369 = vpack.c.b16 %v343, %v342
    %v370 = vpack.c.b16 %v345, %v344
    %v371 = vpack.c.b16 %v347, %v346
    %v372 = vpack.c.b16 %v349, %v348
    %v373 = vpack.c.b16 %v351, %v350
    %v374 = vpack.c.b16 %v353, %v352
    %v375 = vpack.c.b16 %v355, %v354
    %v376 = vpack.c.b16 %v357, %v356
    %v377 = vpack.c.b16 %v359, %v358
    %v378 = vpack.c.b16 %v361, %v360
    %v379 = vpack.c.b16 %v363, %v362
    %396 = vmatpush.bf16.msra.mxu0 %v371
    %397 = vmatpush.bf16.msra.mxu0 %v370
    %398 = vmatpush.bf16.msra.mxu0 %v369
    %399 = vmatpush.bf16.msra.mxu0 %v368
    %400 = vmatpush.bf16.msra.mxu0 %v367
    %401 = vmatpush.bf16.msra.mxu0 %v366
    %402 = vmatpush.bf16.msra.mxu0 %v365
    %403 = vmatpush.bf16.msra.mxu0 %v364
    %404 = vmatmul.bf16.gmra.mxu0 %v264
    %v405 = vpop.f32.mrf.mxu0
    %v406 = vadd.f32 0.0, %v405
    %v407 = vpop.f32.mrf.mxu0
    %v408 = vadd.f32 0.0, %v407
    %409 = vmatmul.bf16.gmra.mxu0 %v266
    %v410 = vpop.f32.mrf.mxu0
    %v411 = vadd.f32 0.0, %v410
    %v412 = vpop.f32.mrf.mxu0
    %v413 = vadd.f32 0.0, %v412
    %414 = vdwg.mxu0
    %415 = vmatpush.bf16.msra.mxu0 %v379
    %416 = vmatpush.bf16.msra.mxu0 %v378
    %417 = vmatpush.bf16.msra.mxu0 %v377
    %418 = vmatpush.bf16.msra.mxu0 %v376
    %419 = vmatpush.bf16.msra.mxu0 %v375
    %420 = vmatpush.bf16.msra.mxu0 %v374
    %421 = vmatpush.bf16.msra.mxu0 %v373
    %422 = vmatpush.bf16.msra.mxu0 %v372
    %423 = vmatmul.bf16.gmra.mxu0 %v265
    %v424 = vpop.f32.mrf.mxu0
    %v425 = vadd.f32 %v406, %v424
    %v426 = vpop.f32.mrf.mxu0
    %v427 = vadd.f32 %v408, %v426
    %428 = vmatmul.bf16.gmra.mxu0 %v267
    %v429 = vpop.f32.mrf.mxu0
    %v430 = vadd.f32 %v411, %v429
    %v431 = vpop.f32.mrf.mxu0
    %v432 = vadd.f32 %v413, %v431
    %433 = vdwg.mxu0
    %v434 = vadd.f32 %v260, %v425
    %v435 = vadd.f32 %v261, %v427
    %v436 = vadd.f32 %v262, %v430
    %v437 = vadd.f32 %v263, %v432
    %438 = vst [vmem:[#allocation2] sm:$0xff] %v434
    %439 = vst [vmem:[#allocation2 + $0x8] sm:$0xff] %v435
    %440 = vst [vmem:[#allocation2 + $0x10] sm:$0xff] %v436
    %441 = vst [vmem:[#allocation2 + $0x18] sm:$0xff] %v437
    // Predicated region
    $region54: #{decoder_forward.24} parent=1 // pred_check
      %p442 = pneg %p98
    $region55: #{decoder_forward.24} parent=1 // pred_check_branch
      %444 = sbr.rel (%p442) target = $region57
    $region56: #{decoder_forward.24} parent=1 // pred_region
      %v445 = vld [vmem:[#allocation2] sm:$0xff]
      %v446 = vld [vmem:[#allocation2 + $0x8] sm:$0xff]
      %v447 = vld [vmem:[#allocation2 + $0x10] sm:$0xff]
      %v448 = vld [vmem:[#allocation2 + $0x18] sm:$0xff]
      %v449 = vld [vmem:[#allocation7] sm:$0x1]
      %v451 = vperm.slane %v449, 0
      %v453 = vadd.f32 %v445, %v451
      %v454 = vadd.f32 %v446, %v451
      %v455 = vadd.f32 %v447, %v451
      %v456 = vadd.f32 %v448, %v451
      %v457 = vld [vmem:[%s0] sm:$0xff]
      %v458 = vld [vmem:[%s0 + $0x8] sm:$0xff]
      %v459 = vld [vmem:[%s0 + $0x10] sm:$0xff]
      %v460 = vld [vmem:[%s0 + $0x18] sm:$0xff]
      %v461 = vadd.f32 %v453, %v457
      %v462 = vadd.f32 %v454, %v458
      %v463 = vadd.f32 %v455, %v459
      %v464 = vadd.f32 %v456, %v460
      %v465 = vld [vmem:[#allocation8] sm:$0x1]
      %v466 = vld [vmem:[#allocation10] sm:$0x1]
      %467 = vadd.xlane.f32.xlu0 %v461
      %v468 = vpop.xlane.xlu0 %467
      %469 = vadd.xlane.f32.xlu0 %v462
      %v470 = vpop.xlane.xlu0 %469
      %471 = vadd.xlane.f32.xlu0 %v463
      %v472 = vpop.xlane.xlu0 %471
      %473 = vadd.xlane.f32.xlu0 %v464
      %v474 = vpop.xlane.xlu0 %473
      %v475 = vmul.f32 %v468, 0.0078125
      %v476 = vmul.f32 %v470, 0.0078125
      %v477 = vmul.f32 %v472, 0.0078125
      %v478 = vmul.f32 %v474, 0.0078125
      %v479 = vmul.f32 %v461, %v461
      %v480 = vmul.f32 %v462, %v462
      %v481 = vmul.f32 %v463, %v463
      %v482 = vmul.f32 %v464, %v464
      %483 = vadd.xlane.f32.xlu0 %v479
      %v484 = vpop.xlane.xlu0 %483
      %485 = vadd.xlane.f32.xlu0 %v480
      %v486 = vpop.xlane.xlu0 %485
      %487 = vadd.xlane.f32.xlu0 %v481
      %v488 = vpop.xlane.xlu0 %487
      %489 = vadd.xlane.f32.xlu0 %v482
      %v490 = vpop.xlane.xlu0 %489
      %v491 = vmul.f32 %v484, 0.0078125
      %v492 = vmul.f32 %v486, 0.0078125
      %v493 = vmul.f32 %v488, 0.0078125
      %v494 = vmul.f32 %v490, 0.0078125
      %v495 = vmul.f32 %v475, %v475
      %v496 = vmul.f32 %v476, %v476
      %v497 = vmul.f32 %v477, %v477
      %v498 = vmul.f32 %v478, %v478
      %v499 = vsub.f32 %v491, %v495
      %v500 = vsub.f32 %v492, %v496
      %v501 = vsub.f32 %v493, %v497
      %v502 = vsub.f32 %v494, %v498
      %v503 = vmax.f32 %v499, 0.0
      %v504 = vmax.f32 %v500, 0.0
      %v505 = vmax.f32 %v501, 0.0
      %v506 = vmax.f32 %v502, 0.0
      %v507 = vsub.f32 %v461, %v475
      %v508 = vsub.f32 %v462, %v476
      %v509 = vsub.f32 %v463, %v477
      %v510 = vsub.f32 %v464, %v478
      %v511 = vadd.f32 %v503, 1e-05
      %v512 = vadd.f32 %v504, 1e-05
      %v513 = vadd.f32 %v505, 1e-05
      %v514 = vadd.f32 %v506, 1e-05
      %v515 = vrsqrt.pop %v511
      %v516 = vmul.f32 %v515, %v511
      %v517 = vmul.f32 %v516, %v515
      %v518 = vmul.f32 0.5, %v517
      %v519 = vsub.f32 1.5, %v518
      %v520 = vmul.f32 %v515, %v519
      %vm521 = vweird.f32 %v511
      %vm522 = vweird.f32 %v515
      %vm523 = vmor %vm521, %vm522
      %v524 = vsel %vm523, %v515, %v520
      %v525 = vrsqrt.pop %v512
      %v526 = vmul.f32 %v525, %v512
      %v527 = vmul.f32 %v526, %v525
      %v528 = vmul.f32 0.5, %v527
      %v529 = vsub.f32 1.5, %v528
      %v530 = vmul.f32 %v525, %v529
      %vm531 = vweird.f32 %v512
      %vm532 = vweird.f32 %v525
      %vm533 = vmor %vm531, %vm532
      %v534 = vsel %vm533, %v525, %v530
      %v535 = vrsqrt.pop %v513
      %v536 = vmul.f32 %v535, %v513
      %v537 = vmul.f32 %v536, %v535
      %v538 = vmul.f32 0.5, %v537
      %v539 = vsub.f32 1.5, %v538
      %v540 = vmul.f32 %v535, %v539
      %vm541 = vweird.f32 %v513
      %vm542 = vweird.f32 %v535
      %vm543 = vmor %vm541, %vm542
      %v544 = vsel %vm543, %v535, %v540
      %v545 = vrsqrt.pop %v514
      %v546 = vmul.f32 %v545, %v514
      %v547 = vmul.f32 %v546, %v545
      %v548 = vmul.f32 0.5, %v547
      %v549 = vsub.f32 1.5, %v548
      %v550 = vmul.f32 %v545, %v549
      %vm551 = vweird.f32 %v514
      %vm552 = vweird.f32 %v545
      %vm553 = vmor %vm551, %vm552
      %v554 = vsel %vm553, %v545, %v550
      %v555 = vmul.f32 %v507, %v524
      %v556 = vmul.f32 %v508, %v534
      %v557 = vmul.f32 %v509, %v544
      %v558 = vmul.f32 %v510, %v554
      %v560 = vperm.slane %v465, 0
      %v562 = vmul.f32 %v555, %v560
      %v563 = vmul.f32 %v556, %v560
      %v564 = vmul.f32 %v557, %v560
      %v565 = vmul.f32 %v558, %v560
      %v567 = vperm.slane %v466, 0
      %v569 = vadd.f32 %v562, %v567
      %v570 = vadd.f32 %v563, %v567
      %v571 = vadd.f32 %v564, %v567
      %v572 = vadd.f32 %v565, %v567
      %573 = vst [vmem:[%s7] sm:$0xff] %v569
      %574 = vst [vmem:[%s7 + $0x8] sm:$0xff] %v570
      %575 = vst [vmem:[%s7 + $0x10] sm:$0xff] %v571
      %576 = vst [vmem:[%s7 + $0x18] sm:$0xff] %v572
    $region57: #{decoder_forward.24} parent=1 // pred_fallthru
      _
    // Predicated region
    $region58: #{decoder_forward.24} parent=1 // pred_check
      _
    $region59: #{decoder_forward.24} parent=1 // pred_check_branch
      %578 = sbr.rel (0) target = $region61
    $region60: #{decoder_forward.24} parent=1 // pred_region
      _
    $region61: #{decoder_forward.24} parent=1 // pred_fallthru
      _
    // Predicated region
    $region62: #{decoder_forward.24} parent=1 // pred_check
      _
    $region63: #{decoder_forward.24} parent=1 // pred_check_branch
      %580 = sbr.rel (0) target = $region65
    $region64: #{decoder_forward.24} parent=1 // pred_region
      _
    $region65: #{decoder_forward.24} parent=1 // pred_fallthru
      _
    %581 = vsyncpa [#allocation4], 1
    %582 = vsyncpa [#allocation6], 1
    %583 = vsyncpa [#allocation9], 1

// kernel: decoder_forward.17
$region0: #{decoder_forward.17}
  #allocation0 [shape = 'u32[]', space=smem, size = 0x4, offset = 0x4, fixed_abs, tag = 'smem constant byte address 0x4 - core index']
  #allocation1 [shape = 'u32[72,128]{1,0:T(1,128)}', space=vmem, size = 0x9000, scoped, tag = 'internal scratch']
  #allocation2 [shape = 'bf16[16,128]{1,0:T(8,128)(2,1)}', space=vmem, size = 0x1000, scoped, tag = 'scratch operand']
  %s0 = inlined_call_operand.vmem [shape: f32[2,16,128], index: 0, kind: input, shape index: {}]
  %s1 = inlined_call_operand.vmem [shape: f32[2,16,256], index: 1, kind: input, shape index: {}, may-alias: {1,2}]
  %s2 = inlined_call_operand.vmem [shape: f32[2,16,256], index: 2, kind: input, shape index: {}, may-alias: {1,2}]
  %s3 = inlined_call_operand.hbm [shape: bf16[128,128], index: 3, kind: input, shape index: {}]
  %s4 = inlined_call_operand.vmem [shape: f32[1,128], index: 4, kind: input, shape index: {}]
  %s5 = inlined_call_operand.vmem [shape: f32[2,16,128], index: 5, kind: input, shape index: {}]
  %s6 = inlined_call_operand.vmem [shape: f32[1,128], index: 6, kind: input, shape index: {}]
  %s7 = inlined_call_operand.vmem [shape: f32[1,128], index: 7, kind: input, shape index: {}]
  %s8 = inlined_call_operand.vmem [shape: f32[2,16,128], index: 8, kind: output, shape index: {}]
  %s9 = sld [smem:[#allocation0]]
  $region145: #{decoder_forward.17} parent=0
    _
  %s11 = ssub.s32 1, %s9
  %s12 = scalar_select 0, %s11, %s9
  $region1: #{decoder_forward.17} parent=0
    #allocation3 [shape = 'u8[16384]{0}', space=vmem, size = 0x4000, scoped, tag = 'input window, operand 1']
    #allocation4 [shape = 'u8[16384]{0}', space=vmem, size = 0x4000, scoped, tag = 'input window, operand 2']
    #allocation5 [shape = 'u8[32768]{0}', space=vmem, size = 0x8000, scoped, tag = 'input window, operand 3, single buffered']
    #allocation6 [shape = 's32[2]{0}', space=sflag, size = 0x8, scoped, tag = 'scoped memory for decoder_forward.17']
    %13 = vsyncpa [#allocation6], 0
    loop: start=0, step=1, limit=4
    $region2: #{decoder_forward.17} parent=1 // loop_pre_header
      _
    $region3: #{decoder_forward.17} parent=1 // loop_header
      %s15 = sphi 0, %s19
      %p16 = scmp.ge.s32.totalorder %s15, 4
      %s25 = sphi 0, %s27
      %s28 = sphi 0, %s25
      %s29 = sphi 0, %s28
      %s45 = sphi 0, %s29
      %s51 = sphi 0, %s53
      %s54 = sphi 0, %s51
      %s55 = sphi 0, %s54
      %s71 = sphi 0, %s55
      %s77 = sphi 0, %s79
      %s80 = sphi 0, %s77
      %s81 = sphi 0, %s80
      %s97 = sphi 0, %s81
      %s101 = sphi 0, %s101
      %s103 = sphi 0, %s101
      %s104 = sphi 0, %s103
      %s118 = sphi 0, %s104
      %s122 = sphi 0, %s122
      %s124 = sphi 0, %s122
      %s125 = sphi 0, %s124
      %s139 = sphi 0, %s125
      %s145 = sphi 0, %s147
      %s148 = sphi 0, %s145
      %s149 = sphi 0, %s148
      %s165 = sphi 0, %s149
      %s169 = sphi 0, %s169
      %s171 = sphi 0, %s169
      %s172 = sphi 0, %s171
      %s186 = sphi 0, %s172
      %s190 = sphi 0, %s190
      %s192 = sphi 0, %s190
      %s193 = sphi 0, %s192
      %s207 = sphi 0, %s193
      %s213 = sphi 0, %s215
      %s216 = sphi 0, %s213
      %s217 = sphi 0, %s216
      %s233 = sphi 0, %s217
    $region4: #{decoder_forward.17} parent=1 // loop_header_branch
      %18 = sbr.rel (%p16) target = $region8
    $region5: #{decoder_forward.17} parent=1 // loop_body
      %s20 = ssub.s32 %s15, 1
      %s21 = ssub.s32 %s15, 2
      %s22 = sadd.s32 %s15, 1
      %s23 = ssub.s32 %s15, %s22
      %p24 = scmp.eq.s32.totalorder %s23, 0
      %s26 = sadd.s32 %s25, 1
      %s27 = scalar_select %p24, %s25, %s26
      %p30 = pneg %p24
      %p31 = scmp.eq.s32.totalorder %s15, 1
      %p32 = por %p30, %p31
      %p33 = scmp.ne.s32.totalorder %s25, %s28
      %p34 = scmp.eq.s32.totalorder %s15, 0
      %p35 = por %p33, %p34
      %p36 = scmp.ne.s32.totalorder %s25, %s28
      %p37 = scmp.eq.s32.totalorder %s20, 1
      %p38 = por %p36, %p37
      %p39 = scmp.ne.s32.totalorder %s28, %s29
      %p40 = scmp.eq.s32.totalorder %s20, 0
      %p41 = por %p39, %p40
      %p42 = scmp.ne.s32.totalorder %s28, %s29
      %p43 = scmp.eq.s32.totalorder %s21, 1
      %p44 = por %p42, %p43
      %p46 = scmp.ne.s32.totalorder %s29, %s45
      %p47 = scmp.eq.s32.totalorder %s21, 0
      %p48 = por %p46, %p47
      %s49 = ssub.s32 %s15, %s22
      %p50 = scmp.eq.s32.totalorder %s49, 0
      %s52 = sadd.s32 %s51, 1
      %s53 = scalar_select %p50, %s51, %s52
      %p56 = pneg %p50
      %p57 = scmp.eq.s32.totalorder %s15, 1
      %p58 = por %p56, %p57
      %p59 = scmp.ne.s32.totalorder %s51, %s54
      %p60 = scmp.eq.s32.totalorder %s15, 0
      %p61 = por %p59, %p60
      %p62 = scmp.ne.s32.totalorder %s51, %s54
      %p63 = scmp.eq.s32.totalorder %s20, 1
      %p64 = por %p62, %p63
      %p65 = scmp.ne.s32.totalorder %s54, %s55
      %p66 = scmp.eq.s32.totalorder %s20, 0
      %p67 = por %p65, %p66
      %p68 = scmp.ne.s32.totalorder %s54, %s55
      %p69 = scmp.eq.s32.totalorder %s21, 1
      %p70 = por %p68, %p69
      %p72 = scmp.ne.s32.totalorder %s55, %s71
      %p73 = scmp.eq.s32.totalorder %s21, 0
      %p74 = por %p72, %p73
      %s75 = ssub.s32 %s15, %s22
      %p76 = scmp.eq.s32.totalorder %s75, 0
      %s78 = sadd.s32 %s77, 1
      %s79 = scalar_select %p76, %s77, %s78
      %p82 = pneg %p76
      %p83 = scmp.eq.s32.totalorder %s15, 1
      %p84 = por %p82, %p83
      %p85 = scmp.ne.s32.totalorder %s77, %s80
      %p86 = scmp.eq.s32.totalorder %s15, 0
      %p87 = por %p85, %p86
      %p88 = scmp.ne.s32.totalorder %s77, %s80
      %p89 = scmp.eq.s32.totalorder %s20, 1
      %p90 = por %p88, %p89
      %p91 = scmp.ne.s32.totalorder %s80, %s81
      %p92 = scmp.eq.s32.totalorder %s20, 0
      %p93 = por %p91, %p92
      %p94 = scmp.ne.s32.totalorder %s80, %s81
      %p95 = scmp.eq.s32.totalorder %s21, 1
      %p96 = por %p94, %p95
      %p98 = scmp.ne.s32.totalorder %s81, %s97
      %p99 = scmp.eq.s32.totalorder %s21, 0
      %p100 = por %p98, %p99
      %s102 = sadd.s32 %s101, 1
      %p105 = scmp.eq.s32.totalorder %s15, 1
      %p106 = scmp.ne.s32.totalorder %s101, %s103
      %p107 = scmp.eq.s32.totalorder %s15, 0
      %p108 = por %p106, %p107
      %p109 = scmp.ne.s32.totalorder %s101, %s103
      %p110 = scmp.eq.s32.totalorder %s20, 1
      %p111 = por %p109, %p110
      %p112 = scmp.ne.s32.totalorder %s103, %s104
      %p113 = scmp.eq.s32.totalorder %s20, 0
      %p114 = por %p112, %p113
      %p115 = scmp.ne.s32.totalorder %s103, %s104
      %p116 = scmp.eq.s32.totalorder %s21, 1
      %p117 = por %p115, %p116
      %p119 = scmp.ne.s32.totalorder %s104, %s118
      %p120 = scmp.eq.s32.totalorder %s21, 0
      %p121 = por %p119, %p120
      %s123 = sadd.s32 %s122, 1
      %p126 = scmp.eq.s32.totalorder %s15, 1
      %p127 = scmp.ne.s32.totalorder %s122, %s124
      %p128 = scmp.eq.s32.totalorder %s15, 0
      %p129 = por %p127, %p128
      %p130 = scmp.ne.s32.totalorder %s122, %s124
      %p131 = scmp.eq.s32.totalorder %s20, 1
      %p132 = por %p130, %p131
      %p133 = scmp.ne.s32.totalorder %s124, %s125
      %p134 = scmp.eq.s32.totalorder %s20, 0
      %p135 = por %p133, %p134
      %p136 = scmp.ne.s32.totalorder %s124, %s125
      %p137 = scmp.eq.s32.totalorder %s21, 1
      %p138 = por %p136, %p137
      %p140 = scmp.ne.s32.totalorder %s125, %s139
      %p141 = scmp.eq.s32.totalorder %s21, 0
      %p142 = por %p140, %p141
      %s143 = ssub.s32 %s15, %s22
      %p144 = scmp.eq.s32.totalorder %s143, 0
      %s146 = sadd.s32 %s145, 1
      %s147 = scalar_select %p144, %s145, %s146
      %p150 = pneg %p144
      %p151 = scmp.eq.s32.totalorder %s15, 1
      %p152 = por %p150, %p151
      %p153 = scmp.ne.s32.totalorder %s145, %s148
      %p154 = scmp.eq.s32.totalorder %s15, 0
      %p155 = por %p153, %p154
      %p156 = scmp.ne.s32.totalorder %s145, %s148
      %p157 = scmp.eq.s32.totalorder %s20, 1
      %p158 = por %p156, %p157
      %p159 = scmp.ne.s32.totalorder %s148, %s149
      %p160 = scmp.eq.s32.totalorder %s20, 0
      %p161 = por %p159, %p160
      %p162 = scmp.ne.s32.totalorder %s148, %s149
      %p163 = scmp.eq.s32.totalorder %s21, 1
      %p164 = por %p162, %p163
      %p166 = scmp.ne.s32.totalorder %s149, %s165
      %p167 = scmp.eq.s32.totalorder %s21, 0
      %p168 = por %p166, %p167
      %s170 = sadd.s32 %s169, 1
      %p173 = scmp.eq.s32.totalorder %s15, 1
      %p174 = scmp.ne.s32.totalorder %s169, %s171
      %p175 = scmp.eq.s32.totalorder %s15, 0
      %p176 = por %p174, %p175
      %p177 = scmp.ne.s32.totalorder %s169, %s171
      %p178 = scmp.eq.s32.totalorder %s20, 1
      %p179 = por %p177, %p178
      %p180 = scmp.ne.s32.totalorder %s171, %s172
      %p181 = scmp.eq.s32.totalorder %s20, 0
      %p182 = por %p180, %p181
      %p183 = scmp.ne.s32.totalorder %s171, %s172
      %p184 = scmp.eq.s32.totalorder %s21, 1
      %p185 = por %p183, %p184
      %p187 = scmp.ne.s32.totalorder %s172, %s186
      %p188 = scmp.eq.s32.totalorder %s21, 0
      %p189 = por %p187, %p188
      %s191 = sadd.s32 %s190, 1
      %p194 = scmp.eq.s32.totalorder %s15, 1
      %p195 = scmp.ne.s32.totalorder %s190, %s192
      %p196 = scmp.eq.s32.totalorder %s15, 0
      %p197 = por %p195, %p196
      %p198 = scmp.ne.s32.totalorder %s190, %s192
      %p199 = scmp.eq.s32.totalorder %s20, 1
      %p200 = por %p198, %p199
      %p201 = scmp.ne.s32.totalorder %s192, %s193
      %p202 = scmp.eq.s32.totalorder %s20, 0
      %p203 = por %p201, %p202
      %p204 = scmp.ne.s32.totalorder %s192, %s193
      %p205 = scmp.eq.s32.totalorder %s21, 1
      %p206 = por %p204, %p205
      %p208 = scmp.ne.s32.totalorder %s193, %s207
      %p209 = scmp.eq.s32.totalorder %s21, 0
      %p210 = por %p208, %p209
      %s211 = ssub.s32 %s15, %s22
      %p212 = scmp.eq.s32.totalorder %s211, 0
      %s214 = sadd.s32 %s213, 1
      %s215 = scalar_select %p212, %s213, %s214
      %p218 = pneg %p212
      %p219 = scmp.eq.s32.totalorder %s15, 1
      %p220 = por %p218, %p219
      %p221 = scmp.ne.s32.totalorder %s213, %s216
      %p222 = scmp.eq.s32.totalorder %s15, 0
      %p223 = por %p221, %p222
      %p224 = scmp.ne.s32.totalorder %s213, %s216
      %p225 = scmp.eq.s32.totalorder %s20, 1
      %p226 = por %p224, %p225
      %p227 = scmp.ne.s32.totalorder %s216, %s217
      %p228 = scmp.eq.s32.totalorder %s20, 0
      %p229 = por %p227, %p228
      %p230 = scmp.ne.s32.totalorder %s216, %s217
      %p231 = scmp.eq.s32.totalorder %s21, 1
      %p232 = por %p230, %p231
      %p234 = scmp.ne.s32.totalorder %s217, %s233
      %p235 = scmp.eq.s32.totalorder %s21, 0
      %p236 = por %p234, %p235
      %p237 = scmp.le.s32.totalorder 1, %s15
      %p238 = scmp.lt.s32.totalorder %s15, 3
      %p239 = pnand %p237, %p238
      %p240 = pneg %p239
      // Predicated region
      $region9: #{decoder_forward.17} parent=5 // pred_check
        _
      $region10: #{decoder_forward.17} parent=5 // pred_check_branch
        %242 = sbr.rel (%p239) target = $region12
      $region11: #{decoder_forward.17} parent=5 // pred_region
        %s243 = ssub.s32 %s15, 1
        // Predicated region
        $region13: #{decoder_forward.17} parent=11 // pred_check
          %p244 = pneg %p114
        $region14: #{decoder_forward.17} parent=11 // pred_check_branch
          %246 = sbr.rel (%p244) target = $region16
        $region15: #{decoder_forward.17} parent=11 // pred_region
          %248 = vsyncadd [#allocation6], 0
          %s249 = sshll.u32 %s3, 4
          %s250 = int_to_ptr.hbm [resolvable:$true] %s249
          %s251 = sshll.u32 [#allocation5], 4
          %s252 = int_to_ptr.vmem [resolvable:$true] %s251
          %257 = dma.hbm_to_vmem [thread:$0]  %s250, 1024, %s252, [#allocation6], 64, 64, 4
        $region16: #{decoder_forward.17} parent=11 // pred_fallthru
          _
        // Predicated region
        $region17: #{decoder_forward.17} parent=11 // pred_check
          %p258 = pneg %p135
        $region18: #{decoder_forward.17} parent=11 // pred_check_branch
          %260 = sbr.rel (%p258) target = $region20
        $region19: #{decoder_forward.17} parent=11 // pred_region
          _
        $region20: #{decoder_forward.17} parent=11 // pred_fallthru
          _
        // Predicated region
        $region21: #{decoder_forward.17} parent=11 // pred_check
          %p261 = pneg %p182
        $region22: #{decoder_forward.17} parent=11 // pred_check_branch
          %263 = sbr.rel (%p261) target = $region24
        $region23: #{decoder_forward.17} parent=11 // pred_region
          _
        $region24: #{decoder_forward.17} parent=11 // pred_fallthru
          _
        // Predicated region
        $region25: #{decoder_forward.17} parent=11 // pred_check
          %p264 = pneg %p203
        $region26: #{decoder_forward.17} parent=11 // pred_check_branch
          %266 = sbr.rel (%p264) target = $region28
        $region27: #{decoder_forward.17} parent=11 // pred_region
          _
        $region28: #{decoder_forward.17} parent=11 // pred_fallthru
          _
      $region12: #{decoder_forward.17} parent=5 // pred_fallthru
        _
      %p267 = scmp.lt.s32.totalorder %s15, 2
      // Predicated region
      $region29: #{decoder_forward.17} parent=5 // pred_check
        %p268 = pneg %p267
      $region30: #{decoder_forward.17} parent=5 // pred_check_branch
        %270 = sbr.rel (%p268) target = $region32
      $region31: #{decoder_forward.17} parent=5 // pred_region
        // Predicated region
        $region33: #{decoder_forward.17} parent=31 // pred_check
          %p271 = pneg %p35
        $region34: #{decoder_forward.17} parent=31 // pred_check_branch
          %273 = sbr.rel (%p271) target = $region36
        $region35: #{decoder_forward.17} parent=31 // pred_region
          %p274 = scmp.lt.s32.totalorder %s15, 1
          %s275 = scalar_select %p274, %s15, 1
          %s276 = smul.addr %s275, 2
          %s277 = smul.addr %s276, 8
          %s278 = scalar_lea.vmem %s0, %s277
        $region36: #{decoder_forward.17} parent=31 // pred_fallthru
          _
        // Predicated region
        $region37: #{decoder_forward.17} parent=31 // pred_check
          %p279 = pneg %p61
        $region38: #{decoder_forward.17} parent=31 // pred_check_branch
          %281 = sbr.rel (%p279) target = $region40
        $region39: #{decoder_forward.17} parent=31 // pred_region
          %s282 = sand.u32 %s51, 1
          %s283 = sand.u32 %s51, 1
          %s284 = smul.addr %s283, 16
          %s285 = scalar_lea.vmem [#allocation3], %s284
          %s286 = smul.addr %s15, 4
          %s287 = smul.addr %s286, 8
          %s288 = scalar_lea.vmem %s1, %s287
          // Predicated region
          $region41: #{decoder_forward.17} parent=39 // pred_check
            _
          $region42: #{decoder_forward.17} parent=39 // pred_check_branch
            %290 = sbr.rel (0) target = $region44
          $region43: #{decoder_forward.17} parent=39 // pred_region
            // Predicated region
            $region45: #{decoder_forward.17} parent=43 // pred_check
              _
            $region46: #{decoder_forward.17} parent=43 // pred_check_branch
              %292 = sbr.rel (0) target = $region48
            $region47: #{decoder_forward.17} parent=43 // pred_region
              // Predicated region
              $region60: #{decoder_forward.17} parent=47 // pred_check
                _
              $region61: #{decoder_forward.17} parent=47 // pred_check_branch
                %310 = sbr.rel (0) target = $region63
              $region62: #{decoder_forward.17} parent=47 // pred_region
                loop: start=0, step=1, limit=1
                $region64: #{decoder_forward.17} parent=62 // loop_pre_header
                  _
                $region65: #{decoder_forward.17} parent=62 // loop_header
                  %s312 = sphi 0, %s316
                  %p313 = scmp.ge.s32.totalorder %s312, 1
                  %s317 = sphi %s288, %s288
                  %s318 = sphi %s285, %s285
                $region66: #{decoder_forward.17} parent=62 // loop_header_branch
                  %315 = sbr.rel (%p313) target = $region70
                $region67: #{decoder_forward.17} parent=62 // loop_body
                  %v319 = vld [vmem:[%s317] sm:$0xff]
                  %320 = vst [vmem:[%s318] sm:$0xff] %v319
                  %v321 = vld [vmem:[%s317 + $0x10] sm:$0xff]
                  %322 = vst [vmem:[%s318 + $0x8] sm:$0xff] %v321
                $region68: #{decoder_forward.17} parent=62 // loop_footer
                  %s316 = sadd.s32 1, %s312
                $region69: #{decoder_forward.17} parent=62 // loop_footer_branch
                  %311 = sbr.rel target = $region65
                $region70: #{decoder_forward.17} parent=62 // loop_exit
                  _
              $region63: #{decoder_forward.17} parent=47 // pred_fallthru
                _
              // Predicated region
              $region71: #{decoder_forward.17} parent=47 // pred_check
                _
              $region72: #{decoder_forward.17} parent=47 // pred_check_branch
                %324 = sbr.rel target = $region74
              $region73: #{decoder_forward.17} parent=47 // pred_region
                _
              $region74: #{decoder_forward.17} parent=47 // pred_fallthru
                _
            $region48: #{decoder_forward.17} parent=43 // pred_fallthru
              _
            // Predicated region
            $region49: #{decoder_forward.17} parent=43 // pred_check
              _
            $region50: #{decoder_forward.17} parent=43 // pred_check_branch
              %294 = sbr.rel target = $region52
            $region51: #{decoder_forward.17} parent=43 // pred_region
              %s296 = ssub.s32 256, 1
              loop: start=0, step=1, limit=1
              $region53: #{decoder_forward.17} parent=51 // loop_pre_header
                _
              $region54: #{decoder_forward.17} parent=51 // loop_header
                %s298 = sphi 0, %s302
                %p299 = scmp.ge.s32.totalorder %s298, 1
                %s303 = sphi %s288, %s288
                %s304 = sphi %s285, %s285
              $region55: #{decoder_forward.17} parent=51 // loop_header_branch
                %301 = sbr.rel (%p299) target = $region59
              $region56: #{decoder_forward.17} parent=51 // loop_body
                %v305 = vld [vmem:[%s303] sm:%s296]
                %306 = vst [vmem:[%s304] sm:%s296] %v305
                %v307 = vld [vmem:[%s303 + $0x10] sm:%s296]
                %308 = vst [vmem:[%s304 + $0x8] sm:%s296] %v307
              $region57: #{decoder_forward.17} parent=51 // loop_footer
                %s302 = sadd.s32 1, %s298
              $region58: #{decoder_forward.17} parent=51 // loop_footer_branch
                %297 = sbr.rel target = $region54
              $region59: #{decoder_forward.17} parent=51 // loop_exit
                _
            $region52: #{decoder_forward.17} parent=43 // pred_fallthru
              _
          $region44: #{decoder_forward.17} parent=39 // pred_fallthru
            _
          %325 = vnop
        $region40: #{decoder_forward.17} parent=31 // pred_fallthru
          _
        // Predicated region
        $region75: #{decoder_forward.17} parent=31 // pred_check
          %p326 = pneg %p87
        $region76: #{decoder_forward.17} parent=31 // pred_check_branch
          %328 = sbr.rel (%p326) target = $region78
        $region77: #{decoder_forward.17} parent=31 // pred_region
          %s329 = sand.u32 %s77, 1
          %s330 = sand.u32 %s77, 1
          %s331 = smul.addr %s330, 16
          %s332 = scalar_lea.vmem [#allocation4], %s331
          %s333 = smul.addr %s15, 4
          %s334 = sadd.s32 1, %s333
          %s335 = smul.addr %s334, 8
          %s336 = scalar_lea.vmem %s2, %s335
          // Predicated region
          $region79: #{decoder_forward.17} parent=77 // pred_check
            _
          $region80: #{decoder_forward.17} parent=77 // pred_check_branch
            %338 = sbr.rel (0) target = $region82
          $region81: #{decoder_forward.17} parent=77 // pred_region
            // Predicated region
            $region83: #{decoder_forward.17} parent=81 // pred_check
              _
            $region84: #{decoder_forward.17} parent=81 // pred_check_branch
              %340 = sbr.rel (0) target = $region86
            $region85: #{decoder_forward.17} parent=81 // pred_region
              // Predicated region
              $region98: #{decoder_forward.17} parent=85 // pred_check
                _
              $region99: #{decoder_forward.17} parent=85 // pred_check_branch
                %358 = sbr.rel (0) target = $region101
              $region100: #{decoder_forward.17} parent=85 // pred_region
                loop: start=0, step=1, limit=1
                $region102: #{decoder_forward.17} parent=100 // loop_pre_header
                  _
                $region103: #{decoder_forward.17} parent=100 // loop_header
                  %s360 = sphi 0, %s364
                  %p361 = scmp.ge.s32.totalorder %s360, 1
                  %s365 = sphi %s336, %s336
                  %s366 = sphi %s332, %s332
                $region104: #{decoder_forward.17} parent=100 // loop_header_branch
                  %363 = sbr.rel (%p361) target = $region108
                $region105: #{decoder_forward.17} parent=100 // loop_body
                  %v367 = vld [vmem:[%s365] sm:$0xff]
                  %368 = vst [vmem:[%s366] sm:$0xff] %v367
                  %v369 = vld [vmem:[%s365 + $0x10] sm:$0xff]
                  %370 = vst [vmem:[%s366 + $0x8] sm:$0xff] %v369
                $region106: #{decoder_forward.17} parent=100 // loop_footer
                  %s364 = sadd.s32 1, %s360
                $region107: #{decoder_forward.17} parent=100 // loop_footer_branch
                  %359 = sbr.rel target = $region103
                $region108: #{decoder_forward.17} parent=100 // loop_exit
                  _
              $region101: #{decoder_forward.17} parent=85 // pred_fallthru
                _
              // Predicated region
              $region109: #{decoder_forward.17} parent=85 // pred_check
                _
              $region110: #{decoder_forward.17} parent=85 // pred_check_branch
                %372 = sbr.rel target = $region112
              $region111: #{decoder_forward.17} parent=85 // pred_region
                _
              $region112: #{decoder_forward.17} parent=85 // pred_fallthru
                _
            $region86: #{decoder_forward.17} parent=81 // pred_fallthru
              _
            // Predicated region
            $region87: #{decoder_forward.17} parent=81 // pred_check
              _
            $region88: #{decoder_forward.17} parent=81 // pred_check_branch
              %342 = sbr.rel target = $region90
            $region89: #{decoder_forward.17} parent=81 // pred_region
              %s344 = ssub.s32 256, 1
              loop: start=0, step=1, limit=1
              $region91: #{decoder_forward.17} parent=89 // loop_pre_header
                _
              $region92: #{decoder_forward.17} parent=89 // loop_header
                %s346 = sphi 0, %s350
                %p347 = scmp.ge.s32.totalorder %s346, 1
                %s351 = sphi %s336, %s336
                %s352 = sphi %s332, %s332
              $region93: #{decoder_forward.17} parent=89 // loop_header_branch
                %349 = sbr.rel (%p347) target = $region97
              $region94: #{decoder_forward.17} parent=89 // loop_body
                %v353 = vld [vmem:[%s351] sm:%s344]
                %354 = vst [vmem:[%s352] sm:%s344] %v353
                %v355 = vld [vmem:[%s351 + $0x10] sm:%s344]
                %356 = vst [vmem:[%s352 + $0x8] sm:%s344] %v355
              $region95: #{decoder_forward.17} parent=89 // loop_footer
                %s350 = sadd.s32 1, %s346
              $region96: #{decoder_forward.17} parent=89 // loop_footer_branch
                %345 = sbr.rel target = $region92
              $region97: #{decoder_forward.17} parent=89 // loop_exit
                _
            $region90: #{decoder_forward.17} parent=81 // pred_fallthru
              _
          $region82: #{decoder_forward.17} parent=77 // pred_fallthru
            _
          %373 = vnop
        $region78: #{decoder_forward.17} parent=31 // pred_fallthru
          _
        // Predicated region
        $region113: #{decoder_forward.17} parent=31 // pred_check
          %p374 = pneg %p155
        $region114: #{decoder_forward.17} parent=31 // pred_check_branch
          %376 = sbr.rel (%p374) target = $region116
        $region115: #{decoder_forward.17} parent=31 // pred_region
          %p377 = scmp.lt.s32.totalorder %s15, 1
          %s378 = scalar_select %p377, %s15, 1
          %s379 = smul.addr %s378, 2
          %s380 = smul.addr %s379, 8
          %s381 = scalar_lea.vmem %s5, %s380
        $region116: #{decoder_forward.17} parent=31 // pred_fallthru
          _
      $region32: #{decoder_forward.17} parent=5 // pred_fallthru
        _
      %p382 = scmp.le.s32.totalorder 1, %s15
      %p383 = scmp.lt.s32.totalorder %s15, 3
      %p384 = pnand %p382, %p383
      %p385 = pneg %p384
      // Predicated region
      $region117: #{decoder_forward.17} parent=5 // pred_check
        _
      $region118: #{decoder_forward.17} parent=5 // pred_check_branch
        %387 = sbr.rel (%p384) target = $region120
      $region119: #{decoder_forward.17} parent=5 // pred_region
        %s388 = ssub.s32 %s15, 1
        %s389 = sand.u32 %s54, 1
        %s390 = sand.u32 %s54, 1
        %s391 = smul.addr %s390, 16
        %s392 = scalar_lea.vmem [#allocation3], %s391
        // Predicated region
        $region121: #{decoder_forward.17} parent=119 // pred_check
          %p393 = pneg %p67
        $region122: #{decoder_forward.17} parent=119 // pred_check_branch
          %395 = sbr.rel (%p393) target = $region124
        $region123: #{decoder_forward.17} parent=119 // pred_region
          _
        $region124: #{decoder_forward.17} parent=119 // pred_fallthru
          _
        %s396 = sand.u32 %s80, 1
        %s397 = sand.u32 %s80, 1
        %s398 = smul.addr %s397, 16
        %s399 = scalar_lea.vmem [#allocation4], %s398
        // Predicated region
        $region125: #{decoder_forward.17} parent=119 // pred_check
          %p400 = pneg %p93
        $region126: #{decoder_forward.17} parent=119 // pred_check_branch
          %402 = sbr.rel (%p400) target = $region128
        $region127: #{decoder_forward.17} parent=119 // pred_region
          _
        $region128: #{decoder_forward.17} parent=119 // pred_fallthru
          _
        // Predicated region
        $region129: #{decoder_forward.17} parent=119 // pred_check
          %p403 = pneg %p114
        $region130: #{decoder_forward.17} parent=119 // pred_check_branch
          %405 = sbr.rel (%p403) target = $region132
        $region131: #{decoder_forward.17} parent=119 // pred_region
          %407 = dma.done [#allocation6], 1024
        $region132: #{decoder_forward.17} parent=119 // pred_fallthru
          _
        %p408 = scmp.lt.s32.totalorder %s20, 1
        %s409 = scalar_select %p408, %s20, 1
        %s410 = smul.addr %s409, 2
        %s411 = smul.addr %s410, 8
        %s412 = scalar_lea.vmem %s0, %s411
        %p413 = pneg %p41
        %p414 = pneg %p38
        %s415 = sand.u32 %s54, 1
        %s416 = sand.u32 %s54, 1
        %s417 = smul.addr %s416, 16
        %s418 = scalar_lea.vmem [#allocation3], %s417
        %p419 = pneg %p67
        %p420 = pneg %p64
        %s421 = sand.u32 %s80, 1
        %s422 = sand.u32 %s80, 1
        %s423 = smul.addr %s422, 16
        %s424 = scalar_lea.vmem [#allocation4], %s423
        %p425 = pneg %p93
        %p426 = pneg %p90
        %p427 = pneg %p114
        %p428 = pneg %p111
        %p429 = pneg %p135
        %p430 = pneg %p132
        %p431 = scmp.lt.s32.totalorder %s20, 1
        %s432 = scalar_select %p431, %s20, 1
        %s433 = smul.addr %s432, 2
        %s434 = smul.addr %s433, 8
        %s435 = scalar_lea.vmem %s5, %s434
        %p436 = pneg %p161
        %p437 = pneg %p158
        %p438 = pneg %p182
        %p439 = pneg %p179
        %p440 = pneg %p203
        %p441 = pneg %p200
        %p442 = pneg %p229
        %p443 = pneg %p226
        %p444 = scmp.lt.s32.totalorder %s20, 1
        %s445 = scalar_select %p444, %s20, 1
        %s446 = smul.addr %s445, 2
        %s447 = smul.addr %s446, 8
        %s448 = scalar_lea.vmem %s8, %s447
        %p449 = scmp.lt.s32.totalorder %s20, 1
        %s450 = scalar_select %p449, %s20, 1
        %s451 = smul.addr %s450, 2
        %s452 = smul.addr %s451, 8
        %s453 = scalar_lea.vmem %s0, %s452
        %p454 = scmp.lt.s32.totalorder %s20, 1
        %s455 = scalar_select %p454, %s20, 1
        %s456 = smul.addr %s455, 2
        %s457 = smul.addr %s456, 8
        %s458 = scalar_lea.vmem %s5, %s457
        %p459 = scmp.lt.s32.totalorder %s20, 1
        %s460 = scalar_select %p459, %s20, 1
        %s461 = smul.addr %s460, 2
        %s462 = smul.addr %s461, 8
        %s463 = scalar_lea.vmem %s8, %s462
        %v465 = vld [vmem:[%s453] sm:$0xff]
        %v466 = vld [vmem:[%s453 + $0x8] sm:$0xff]
        %v467 = vpack.c.bf16 %v466, %v465
        %v468 = vld [vmem:[%s392] sm:$0xff]
        %v469 = vld [vmem:[%s392 + $0x8] sm:$0xff]
        %v470 = vpack.c.bf16 %v469, %v468
        %v471 = vld [vmem:[%s399] sm:$0xff]
        %v472 = vld [vmem:[%s399 + $0x8] sm:$0xff]
        %v473 = vpack.c.bf16 %v472, %v471
        %vm474 = vcmask 261120
        %v476 = vsel %vm474, %v467, 0
        %v479 = vsel %vm474, %v470, 0
        %481 = vmatpush.bf16.xpose.msra.mxu0 0
        %482 = vmatpush.bf16.xpose.msra.mxu0 0
        %483 = vmatpush.bf16.xpose.msra.mxu0 0
        %484 = vmatpush.bf16.xpose.msra.mxu0 0
        %485 = vmatpush.bf16.xpose.msra.mxu0 0
        %486 = vmatpush.bf16.xpose.msra.mxu0 0
        %487 = vmatpush.bf16.xpose.msra.mxu0 0
        %488 = vmatpush.bf16.xpose.msra.mxu0 %v479
        %489 = vmatmul.bf16.gmra.mxu0 %v476
        %v490 = vpop.f32.mrf.mxu0
        %v491 = vadd.f32 0.0, %v490
        %v492 = vpop.f32.mrf.mxu0
        %v493 = vadd.f32 0.0, %v492
        %494 = vdwg.mxu0
        %v495 = vmul.f32 %v491, 0.17677669
        %v496 = vmul.f32 %v493, 0.17677669
        %vm497 = vcmask 130048
        %v498 = vsel %vm497, %v495, -inf
        %499 = vmax.xlane.f32.xlu0 %v498
        %v500 = vpop.xlane.xlu0 %499
        %v501 = vsel %vm497, %v496, -inf
        %502 = vmax.xlane.f32.xlu0 %v501
        %v503 = vpop.xlane.xlu0 %502
        %v504 = vsub.f32 %v495, %v500
        %v505 = vsub.f32 %v496, %v503
        %v506 = vmul.f32 %v504, 1.442695
        %v507 = vpow.pop %v506
        %v508 = vmul.f32 %v505, 1.442695
        %v509 = vpow.pop %v508
        %v510 = vsel %vm497, %v507, 0.0
        %511 = vadd.xlane.f32.xlu0 %v510
        %v512 = vpop.xlane.xlu0 %511
        %v513 = vsel %vm497, %v509, 0.0
        %514 = vadd.xlane.f32.xlu0 %v513
        %v515 = vpop.xlane.xlu0 %514
        %v516 = vrcp.pop %v512
        %v517 = vrcp.pop %v515
        %v518 = vmul.f32 %v507, %v516
        %v519 = vmul.f32 %v509, %v517
        %v520 = vpack.c.bf16 %v519, %v518
        %v522 = vsel %vm497, %v520, 0
        %524 = vmatpush.bf16.msra.mxu0 0
        %525 = vmatpush.bf16.msra.mxu0 0
        %526 = vmatpush.bf16.msra.mxu0 0
        %527 = vmatpush.bf16.msra.mxu0 0
        %528 = vmatpush.bf16.msra.mxu0 0
        %529 = vmatpush.bf16.msra.mxu0 0
        %530 = vmatpush.bf16.msra.mxu0 0
        %531 = vmatpush.bf16.msra.mxu0 %v473
        %532 = vmatmul.bf16.gmra.mxu0 %v522
        %v533 = vpop.f32.mrf.mxu0
        %v534 = vadd.f32 0.0, %v533
        %v535 = vpop.f32.mrf.mxu0
        %v536 = vadd.f32 0.0, %v535
        %537 = vdwg.mxu0
        %v538 = vpack.c.bf16 %v534, %v534
        %v539 = vpack.c.bf16 %v536, %v536
        %vm540 = vcmask 257024
        %541 = vst.msk [vmem:[#allocation2] sm:$0xf] %vm540, %v538
        %542 = vst.msk [vmem:[#allocation2 + $0x4] sm:$0xf] %vm540, %v539
        %v543 = vld [vmem:[%s453] sm:$0xff]
        %v544 = vld [vmem:[%s453 + $0x8] sm:$0xff]
        %v545 = vpack.c.bf16 %v544, %v543
        %v546 = vld [vmem:[%s392] sm:$0xff]
        %v547 = vld [vmem:[%s392 + $0x8] sm:$0xff]
        %v548 = vpack.c.bf16 %v547, %v546
        %v549 = vld [vmem:[%s399] sm:$0xff]
        %v550 = vld [vmem:[%s399 + $0x8] sm:$0xff]
        %v551 = vpack.c.bf16 %v550, %v549
        %553 = vrot.lane.b32.xlu0 %v545, 96
        %v554 = vpop.permute.xlu0 %553
        %556 = vrot.lane.b32.xlu0 %v548, 96
        %v557 = vpop.permute.xlu0 %556
        %v559 = vsel %vm474, %v554, 0
        %v562 = vsel %vm474, %v557, 0
        %564 = vmatpush.bf16.xpose.msra.mxu0 0
        %565 = vmatpush.bf16.xpose.msra.mxu0 0
        %566 = vmatpush.bf16.xpose.msra.mxu0 0
        %567 = vmatpush.bf16.xpose.msra.mxu0 0
        %568 = vmatpush.bf16.xpose.msra.mxu0 0
        %569 = vmatpush.bf16.xpose.msra.mxu0 0
        %570 = vmatpush.bf16.xpose.msra.mxu0 0
        %571 = vmatpush.bf16.xpose.msra.mxu0 %v562
        %572 = vmatmul.bf16.gmra.mxu0 %v559
        %v573 = vpop.f32.mrf.mxu0
        %v574 = vadd.f32 0.0, %v573
        %v575 = vpop.f32.mrf.mxu0
        %v576 = vadd.f32 0.0, %v575
        %577 = vdwg.mxu0
        %v578 = vmul.f32 %v574, 0.17677669
        %v579 = vmul.f32 %v576, 0.17677669
        %v580 = vsel %vm497, %v578, -inf
        %581 = vmax.xlane.f32.xlu0 %v580
        %v582 = vpop.xlane.xlu0 %581
        %v583 = vsel %vm497, %v579, -inf
        %584 = vmax.xlane.f32.xlu0 %v583
        %v585 = vpop.xlane.xlu0 %584
        %v586 = vsub.f32 %v578, %v582
        %v587 = vsub.f32 %v579, %v585
        %v588 = vmul.f32 %v586, 1.442695
        %v589 = vpow.pop %v588
        %v590 = vmul.f32 %v587, 1.442695
        %v591 = vpow.pop %v590
        %v592 = vsel %vm497, %v589, 0.0
        %593 = vadd.xlane.f32.xlu0 %v592
        %v594 = vpop.xlane.xlu0 %593
        %v595 = vsel %vm497, %v591, 0.0
        %596 = vadd.xlane.f32.xlu0 %v595
        %v597 = vpop.xlane.xlu0 %596
        %v598 = vrcp.pop %v594
        %v599 = vrcp.pop %v597
        %v600 = vmul.f32 %v589, %v598
        %v601 = vmul.f32 %v591, %v599
        %v602 = vpack.c.bf16 %v601, %v600
        %604 = vrot.lane.b32.xlu0 %v551, 96
        %v605 = vpop.permute.xlu0 %604
        %v608 = vsel %vm497, %v602, 0
        %610 = vmatpush.bf16.msra.mxu0 0
        %611 = vmatpush.bf16.msra.mxu0 0
        %612 = vmatpush.bf16.msra.mxu0 0
        %613 = vmatpush.bf16.msra.mxu0 0
        %614 = vmatpush.bf16.msra.mxu0 0
        %615 = vmatpush.bf16.msra.mxu0 0
        %616 = vmatpush.bf16.msra.mxu0 0
        %617 = vmatpush.bf16.msra.mxu0 %v605
        %618 = vmatmul.bf16.gmra.mxu0 %v608
        %v619 = vpop.f32.mrf.mxu0
        %v620 = vadd.f32 0.0, %v619
        %v621 = vpop.f32.mrf.mxu0
        %v622 = vadd.f32 0.0, %v621
        %623 = vdwg.mxu0
        %v624 = vpack.c.bf16 %v620, %v620
        %v625 = vpack.c.bf16 %v622, %v622
        %628 = vrot.lane.b32.xlu0 %v624, 32
        %v629 = vpop.permute.xlu0 %628
        %630 = vrot.lane.b32.xlu0 %v625, 32
        %v631 = vpop.permute.xlu0 %630
        %vm634 = vcmask 519424
        %635 = vst.msk [vmem:[#allocation2] sm:$0xf] %vm634, %v629
        %636 = vst.msk [vmem:[#allocation2 + $0x4] sm:$0xf] %vm634, %v631
        %v637 = vld [vmem:[%s453] sm:$0xff]
        %v638 = vld [vmem:[%s453 + $0x8] sm:$0xff]
        %v639 = vpack.c.bf16 %v638, %v637
        %v640 = vld [vmem:[%s392] sm:$0xff]
        %v641 = vld [vmem:[%s392 + $0x8] sm:$0xff]
        %v642 = vpack.c.bf16 %v641, %v640
        %v643 = vld [vmem:[%s399] sm:$0xff]
        %v644 = vld [vmem:[%s399 + $0x8] sm:$0xff]
        %v645 = vpack.c.bf16 %v644, %v643
        %647 = vrot.lane.b32.xlu0 %v639, 64
        %v648 = vpop.permute.xlu0 %647
        %650 = vrot.lane.b32.xlu0 %v642, 64
        %v651 = vpop.permute.xlu0 %650
        %v653 = vsel %vm474, %v648, 0
        %v656 = vsel %vm474, %v651, 0
        %658 = vmatpush.bf16.xpose.msra.mxu0 0
        %659 = vmatpush.bf16.xpose.msra.mxu0 0
        %660 = vmatpush.bf16.xpose.msra.mxu0 0
        %661 = vmatpush.bf16.xpose.msra.mxu0 0
        %662 = vmatpush.bf16.xpose.msra.mxu0 0
        %663 = vmatpush.bf16.xpose.msra.mxu0 0
        %664 = vmatpush.bf16.xpose.msra.mxu0 0
        %665 = vmatpush.bf16.xpose.msra.mxu0 %v656
        %666 = vmatmul.bf16.gmra.mxu0 %v653
        %v667 = vpop.f32.mrf.mxu0
        %v668 = vadd.f32 0.0, %v667
        %v669 = vpop.f32.mrf.mxu0
        %v670 = vadd.f32 0.0, %v669
        %671 = vdwg.mxu0
        %v672 = vmul.f32 %v668, 0.17677669
        %v673 = vmul.f32 %v670, 0.17677669
        %v674 = vsel %vm497, %v672, -inf
        %675 = vmax.xlane.f32.xlu0 %v674
        %v676 = vpop.xlane.xlu0 %675
        %v677 = vsel %vm497, %v673, -inf
        %678 = vmax.xlane.f32.xlu0 %v677
        %v679 = vpop.xlane.xlu0 %678
        %v680 = vsub.f32 %v672, %v676
        %v681 = vsub.f32 %v673, %v679
        %v682 = vmul.f32 %v680, 1.442695
        %v683 = vpow.pop %v682
        %v684 = vmul.f32 %v681, 1.442695
        %v685 = vpow.pop %v684
        %v686 = vsel %vm497, %v683, 0.0
        %687 = vadd.xlane.f32.xlu0 %v686
        %v688 = vpop.xlane.xlu0 %687
        %v689 = vsel %vm497, %v685, 0.0
        %690 = vadd.xlane.f32.xlu0 %v689
        %v691 = vpop.xlane.xlu0 %690
        %v692 = vrcp.pop %v688
        %v693 = vrcp.pop %v691
        %v694 = vmul.f32 %v683, %v692
        %v695 = vmul.f32 %v685, %v693
        %v696 = vpack.c.bf16 %v695, %v694
        %698 = vrot.lane.b32.xlu0 %v645, 64
        %v699 = vpop.permute.xlu0 %698
        %v702 = vsel %vm497, %v696, 0
        %704 = vmatpush.bf16.msra.mxu0 0
        %705 = vmatpush.bf16.msra.mxu0 0
        %706 = vmatpush.bf16.msra.mxu0 0
        %707 = vmatpush.bf16.msra.mxu0 0
        %708 = vmatpush.bf16.msra.mxu0 0
        %709 = vmatpush.bf16.msra.mxu0 0
        %710 = vmatpush.bf16.msra.mxu0 0
        %711 = vmatpush.bf16.msra.mxu0 %v699
        %712 = vmatmul.bf16.gmra.mxu0 %v702
        %v713 = vpop.f32.mrf.mxu0
        %v714 = vadd.f32 0.0, %v713
        %v715 = vpop.f32.mrf.mxu0
        %v716 = vadd.f32 0.0, %v715
        %717 = vdwg.mxu0
        %v718 = vpack.c.bf16 %v714, %v714
        %v719 = vpack.c.bf16 %v716, %v716
        %722 = vrot.lane.b32.xlu0 %v718, 64
        %v723 = vpop.permute.xlu0 %722
        %724 = vrot.lane.b32.xlu0 %v719, 64
        %v725 = vpop.permute.xlu0 %724
        %vm728 = vcmask 781824
        %729 = vst.msk [vmem:[#allocation2] sm:$0xf] %vm728, %v723
        %730 = vst.msk [vmem:[#allocation2 + $0x4] sm:$0xf] %vm728, %v725
        %v731 = vld [vmem:[%s453] sm:$0xff]
        %v732 = vld [vmem:[%s453 + $0x8] sm:$0xff]
        %v733 = vpack.c.bf16 %v732, %v731
        %v734 = vld [vmem:[%s392] sm:$0xff]
        %v735 = vld [vmem:[%s392 + $0x8] sm:$0xff]
        %v736 = vpack.c.bf16 %v735, %v734
        %v737 = vld [vmem:[%s399] sm:$0xff]
        %v738 = vld [vmem:[%s399 + $0x8] sm:$0xff]
        %v739 = vpack.c.bf16 %v738, %v737
        %741 = vrot.lane.b32.xlu0 %v733, 32
        %v742 = vpop.permute.xlu0 %741
        %744 = vrot.lane.b32.xlu0 %v736, 32
        %v745 = vpop.permute.xlu0 %744
        %v747 = vsel %vm474, %v742, 0
        %v750 = vsel %vm474, %v745, 0
        %752 = vmatpush.bf16.xpose.msra.mxu0 0
        %753 = vmatpush.bf16.xpose.msra.mxu0 0
        %754 = vmatpush.bf16.xpose.msra.mxu0 0
        %755 = vmatpush.bf16.xpose.msra.mxu0 0
        %756 = vmatpush.bf16.xpose.msra.mxu0 0
        %757 = vmatpush.bf16.xpose.msra.mxu0 0
        %758 = vmatpush.bf16.xpose.msra.mxu0 0
        %759 = vmatpush.bf16.xpose.msra.mxu0 %v750
        %760 = vmatmul.bf16.gmra.mxu0 %v747
        %v761 = vpop.f32.mrf.mxu0
        %v762 = vadd.f32 0.0, %v761
        %v763 = vpop.f32.mrf.mxu0
        %v764 = vadd.f32 0.0, %v763
        %765 = vdwg.mxu0
        %v766 = vmul.f32 %v762, 0.17677669
        %v767 = vmul.f32 %v764, 0.17677669
        %v768 = vsel %vm497, %v766, -inf
        %769 = vmax.xlane.f32.xlu0 %v768
        %v770 = vpop.xlane.xlu0 %769
        %v771 = vsel %vm497, %v767, -inf
        %772 = vmax.xlane.f32.xlu0 %v771
        %v773 = vpop.xlane.xlu0 %772
        %v774 = vsub.f32 %v766, %v770
        %v775 = vsub.f32 %v767, %v773
        %v776 = vmul.f32 %v774, 1.442695
        %v777 = vpow.pop %v776
        %v778 = vmul.f32 %v775, 1.442695
        %v779 = vpow.pop %v778
        %v780 = vsel %vm497, %v777, 0.0
        %781 = vadd.xlane.f32.xlu0 %v780
        %v782 = vpop.xlane.xlu0 %781
        %v783 = vsel %vm497, %v779, 0.0
        %784 = vadd.xlane.f32.xlu0 %v783
        %v785 = vpop.xlane.xlu0 %784
        %v786 = vrcp.pop %v782
        %v787 = vrcp.pop %v785
        %v788 = vmul.f32 %v777, %v786
        %v789 = vmul.f32 %v779, %v787
        %v790 = vpack.c.bf16 %v789, %v788
        %792 = vrot.lane.b32.xlu0 %v739, 32
        %v793 = vpop.permute.xlu0 %792
        %v796 = vsel %vm497, %v790, 0
        %798 = vmatpush.bf16.msra.mxu0 0
        %799 = vmatpush.bf16.msra.mxu0 0
        %800 = vmatpush.bf16.msra.mxu0 0
        %801 = vmatpush.bf16.msra.mxu0 0
        %802 = vmatpush.bf16.msra.mxu0 0
        %803 = vmatpush.bf16.msra.mxu0 0
        %804 = vmatpush.bf16.msra.mxu0 0
        %805 = vmatpush.bf16.msra.mxu0 %v793
        %806 = vmatmul.bf16.gmra.mxu0 %v796
        %v807 = vpop.f32.mrf.mxu0
        %v808 = vadd.f32 0.0, %v807
        %v809 = vpop.f32.mrf.mxu0
        %v810 = vadd.f32 0.0, %v809
        %811 = vdwg.mxu0
        %v812 = vpack.c.bf16 %v808, %v808
        %v813 = vpack.c.bf16 %v810, %v810
        %816 = vrot.lane.b32.xlu0 %v812, 96
        %v817 = vpop.permute.xlu0 %816
        %818 = vrot.lane.b32.xlu0 %v813, 96
        %v819 = vpop.permute.xlu0 %818
        %vm822 = vcmask 1044224
        %823 = vst.msk [vmem:[#allocation2] sm:$0xf] %vm822, %v817
        %824 = vst.msk [vmem:[#allocation2 + $0x4] sm:$0xf] %vm822, %v819
        %v825 = vld [vmem:[#allocation2] sm:$0xf]
        %v826 = vld [vmem:[#allocation2 + $0x4] sm:$0xf]
        %v827 = vld [vmem:[#allocation5] sm:$0xf]
        %v828 = vld [vmem:[#allocation5 + $0x4] sm:$0xf]
        %v829 = vld [vmem:[#allocation5 + $0x8] sm:$0xf]
        %v830 = vld [vmem:[#allocation5 + $0xc] sm:$0xf]
        %v831 = vld [vmem:[#allocation5 + $0x10] sm:$0xf]
        %v832 = vld [vmem:[#allocation5 + $0x14] sm:$0xf]
        %v833 = vld [vmem:[#allocation5 + $0x18] sm:$0xf]
        %v834 = vld [vmem:[#allocation5 + $0x1c] sm:$0xf]
        %v835 = vld [vmem:[#allocation5 + $0x20] sm:$0xf]
        %v836 = vld [vmem:[#allocation5 + $0x24] sm:$0xf]
        %v837 = vld [vmem:[#allocation5 + $0x28] sm:$0xf]
        %v838 = vld [vmem:[#allocation5 + $0x2c] sm:$0xf]
        %v839 = vld [vmem:[#allocation5 + $0x30] sm:$0xf]
        %v840 = vld [vmem:[#allocation5 + $0x34] sm:$0xf]
        %v841 = vld [vmem:[#allocation5 + $0x38] sm:$0xf]
        %v842 = vld [vmem:[#allocation5 + $0x3c] sm:$0xf]
        %v843 = vld [vmem:[%s4] sm:$0x1]
        %v845 = vperm.slane %v843, 0
        %v849 = vunpack.c.l.b16 %v825
        %v850 = vunpack.c.l.b16 %v826
        %v851 = vpack.c.b16 %v850, %v849
        %v869 = vunpack.c.l.b16 %v827
        %v870 = vunpack.c.l.b16 %v828
        %v871 = vunpack.c.l.b16 %v829
        %v872 = vunpack.c.l.b16 %v830
        %v873 = vunpack.c.l.b16 %v831
        %v874 = vunpack.c.l.b16 %v832
        %v875 = vunpack.c.l.b16 %v833
        %v876 = vunpack.c.l.b16 %v834
        %v877 = vunpack.c.l.b16 %v835
        %v878 = vunpack.c.l.b16 %v836
        %v879 = vunpack.c.l.b16 %v837
        %v880 = vunpack.c.l.b16 %v838
        %v881 = vunpack.c.l.b16 %v839
        %v882 = vunpack.c.l.b16 %v840
        %v883 = vunpack.c.l.b16 %v841
        %v884 = vunpack.c.l.b16 %v842
        %v885 = vpack.c.b16 %v870, %v869
        %v886 = vpack.c.b16 %v872, %v871
        %v887 = vpack.c.b16 %v874, %v873
        %v888 = vpack.c.b16 %v876, %v875
        %v889 = vpack.c.b16 %v878, %v877
        %v890 = vpack.c.b16 %v880, %v879
        %v891 = vpack.c.b16 %v882, %v881
        %v892 = vpack.c.b16 %v884, %v883
        %901 = vmatpush.bf16.msra.mxu0 %v892
        %902 = vmatpush.bf16.msra.mxu0 %v891
        %903 = vmatpush.bf16.msra.mxu0 %v890
        %904 = vmatpush.bf16.msra.mxu0 %v889
        %905 = vmatpush.bf16.msra.mxu0 %v888
        %906 = vmatpush.bf16.msra.mxu0 %v887
        %907 = vmatpush.bf16.msra.mxu0 %v886
        %908 = vmatpush.bf16.msra.mxu0 %v885
        %909 = vmatmul.bf16.gmra.mxu0 %v851
        %v910 = vpop.f32.mrf.mxu0
        %v911 = vadd.f32 %v845, %v910
        %v912 = vpop.f32.mrf.mxu0
        %v913 = vadd.f32 %v845, %v912
        %914 = vdwg.mxu0
        %v915 = vld [vmem:[%s458] sm:$0xff]
        %v916 = vld [vmem:[%s458 + $0x8] sm:$0xff]
        %v917 = vadd.f32 %v911, %v915
        %v918 = vadd.f32 %v913, %v916
        %v919 = vld [vmem:[%s6] sm:$0x1]
        %v920 = vld [vmem:[%s7] sm:$0x1]
        %921 = vadd.xlane.f32.xlu0 %v917
        %v922 = vpop.xlane.xlu0 %921
        %923 = vadd.xlane.f32.xlu0 %v918
        %v924 = vpop.xlane.xlu0 %923
        %v925 = vmul.f32 %v922, 0.0078125
        %v926 = vmul.f32 %v924, 0.0078125
        %v927 = vmul.f32 %v917, %v917
        %v928 = vmul.f32 %v918, %v918
        %929 = vadd.xlane.f32.xlu0 %v927
        %v930 = vpop.xlane.xlu0 %929
        %931 = vadd.xlane.f32.xlu0 %v928
        %v932 = vpop.xlane.xlu0 %931
        %v933 = vmul.f32 %v930, 0.0078125
        %v934 = vmul.f32 %v932, 0.0078125
        %v935 = vmul.f32 %v925, %v925
        %v936 = vmul.f32 %v926, %v926
        %v937 = vsub.f32 %v933, %v935
        %v938 = vsub.f32 %v934, %v936
        %v939 = vmax.f32 %v937, 0.0
        %v940 = vmax.f32 %v938, 0.0
        %v941 = vsub.f32 %v917, %v925
        %v942 = vsub.f32 %v918, %v926
        %v943 = vadd.f32 %v939, 1e-05
        %v944 = vadd.f32 %v940, 1e-05
        %v945 = vrsqrt.pop %v943
        %v946 = vmul.f32 %v945, %v943
        %v947 = vmul.f32 %v946, %v945
        %v948 = vmul.f32 0.5, %v947
        %v949 = vsub.f32 1.5, %v948
        %v950 = vmul.f32 %v945, %v949
        %vm951 = vweird.f32 %v943
        %vm952 = vweird.f32 %v945
        %vm953 = vmor %vm951, %vm952
        %v954 = vsel %vm953, %v945, %v950
        %v955 = vrsqrt.pop %v944
        %v956 = vmul.f32 %v955, %v944
        %v957 = vmul.f32 %v956, %v955
        %v958 = vmul.f32 0.5, %v957
        %v959 = vsub.f32 1.5, %v958
        %v960 = vmul.f32 %v955, %v959
        %vm961 = vweird.f32 %v944
        %vm962 = vweird.f32 %v955
        %vm963 = vmor %vm961, %vm962
        %v964 = vsel %vm963, %v955, %v960
        %v965 = vmul.f32 %v941, %v954
        %v966 = vmul.f32 %v942, %v964
        %v968 = vperm.slane %v919, 0
        %v970 = vmul.f32 %v965, %v968
        %v971 = vmul.f32 %v966, %v968
        %v973 = vperm.slane %v920, 0
        %v975 = vadd.f32 %v970, %v973
        %v976 = vadd.f32 %v971, %v973
        %977 = vst [vmem:[%s463] sm:$0xff] %v975
        %978 = vst [vmem:[%s463 + $0x8] sm:$0xff] %v976
        %p979 = scmp.lt.s32.totalorder %s20, 1
        %s980 = scalar_select %p979, %s20, 1
        %s981 = smul.addr %s980, 2
        %s982 = smul.addr %s981, 8
        %s983 = scalar_lea.vmem %s8, %s982
        // Predicated region
        $region133: #{decoder_forward.17} parent=119 // pred_check
          %p984 = pneg %p226
        $region134: #{decoder_forward.17} parent=119 // pred_check_branch
          %986 = sbr.rel (%p984) target = $region136
        $region135: #{decoder_forward.17} parent=119 // pred_region
          _
        $region136: #{decoder_forward.17} parent=119 // pred_fallthru
          _
      $region120: #{decoder_forward.17} parent=5 // pred_fallthru
        _
      %p987 = scmp.le.s32.totalorder 2, %s15
      // Predicated region
      $region137: #{decoder_forward.17} parent=5 // pred_check
        %p988 = pneg %p987
      $region138: #{decoder_forward.17} parent=5 // pred_check_branch
        %990 = sbr.rel (%p988) target = $region140
      $region139: #{decoder_forward.17} parent=5 // pred_region
        %s991 = ssub.s32 %s15, 2
        // Predicated region
        $region141: #{decoder_forward.17} parent=139 // pred_check
          %p992 = pneg %p232
        $region142: #{decoder_forward.17} parent=139 // pred_check_branch
          %994 = sbr.rel (%p992) target = $region144
        $region143: #{decoder_forward.17} parent=139 // pred_region
          %p995 = scmp.lt.s32.totalorder %s21, 1
          %s996 = scalar_select %p995, %s21, 1
          %s997 = smul.addr %s996, 2
          %s998 = smul.addr %s997, 8
          %s999 = scalar_lea.vmem %s8, %s998
        $region144: #{decoder_forward.17} parent=139 // pred_fallthru
          _
      $region140: #{decoder_forward.17} parent=5 // pred_fallthru
        _
    $region6: #{decoder_forward.17} parent=1 // loop_footer
      %s19 = sadd.s32 1, %s15
    $region7: #{decoder_forward.17} parent=1 // loop_footer_branch
      %14 = sbr.rel target = $region3
    $region8: #{decoder_forward.17} parent=1 // loop_exit
      _
    %1000 = vsyncpa [#allocation6], 1
    %s1001 = scalar_lea.sflag [#allocation6], 1
    %1002 = vsyncpa %s1001, 1

// kernel: decoder_forward.25
$region0: #{decoder_forward.25}
  #allocation0 [shape = 'u32[]', space=smem, size = 0x4, offset = 0x4, fixed_abs, tag = 'smem constant byte address 0x4 - core index']
  #allocation1 [shape = 'u32[72,128]{1,0:T(1,128)}', space=vmem, size = 0x9000, scoped, tag = 'internal scratch']
  %s0 = inlined_call_operand.vmem [shape: f32[32,128], index: 0, kind: input, shape index: {}]
  %s1 = inlined_call_operand.vmem [shape: f32[1,128], index: 1, kind: input, shape index: {}]
  %s2 = inlined_call_operand.hbm [shape: f32[1,128], index: 2, kind: input, shape index: {}]
  %s3 = inlined_call_operand.hbm [shape: f32[32,128], index: 3, kind: output, shape index: {}]
  %s4 = sld [smem:[#allocation0]]
  $region26: #{decoder_forward.25} parent=0
    _
  %s6 = ssub.s32 1, %s4
  %s7 = scalar_select 0, %s6, %s4
  $region1: #{decoder_forward.25} parent=0
    #allocation2 [shape = 'u8[512]{0}', space=vmem, size = 0x400, scoped, tag = 'input window, operand 2, single buffered']
    #allocation3 [shape = 's32[1]{0}', space=sflag, size = 0x4, scoped, tag = 'scoped memory for decoder_forward.25']
    #allocation4 [shape = 's32[1]{0}', space=sflag, size = 0x4, scoped, tag = 'scoped memory for decoder_forward.25']
    #allocation5 [shape = 'u8[16384]{0}', space=vmem, size = 0x4000, scoped, tag = 'output window, operand 0, single buffered']
    %8 = vsyncpa [#allocation3], 0
    %9 = vsyncpa [#allocation4], 0
    // Predicated region
    $region2: #{decoder_forward.25} parent=1 // pred_check
      _
    $region3: #{decoder_forward.25} parent=1 // pred_check_branch
      %11 = sbr.rel (0) target = $region5
    $region4: #{decoder_forward.25} parent=1 // pred_region
      _
    $region5: #{decoder_forward.25} parent=1 // pred_fallthru
      _
    // Predicated region
    $region6: #{decoder_forward.25} parent=1 // pred_check
      _
    $region7: #{decoder_forward.25} parent=1 // pred_check_branch
      %13 = sbr.rel (0) target = $region9
    $region8: #{decoder_forward.25} parent=1 // pred_region
      _
    $region9: #{decoder_forward.25} parent=1 // pred_fallthru
      _
    // Predicated region
    $region10: #{decoder_forward.25} parent=1 // pred_check
      _
    $region11: #{decoder_forward.25} parent=1 // pred_check_branch
      %15 = sbr.rel (0) target = $region13
    $region12: #{decoder_forward.25} parent=1 // pred_region
      %17 = vsyncadd [#allocation3], 0
      %s19 = sshll.u32 %s2, 4
      %s20 = int_to_ptr.hbm [resolvable:$true] %s19
      %s21 = sshll.u32 [#allocation2], 4
      %s22 = int_to_ptr.vmem [resolvable:$true] %s21
      %24 = dma.hbm_to_vmem [thread:$0]  %s20, 16, %s22, [#allocation3]
    $region13: #{decoder_forward.25} parent=1 // pred_fallthru
      _
    // Predicated region
    $region14: #{decoder_forward.25} parent=1 // pred_check
      _
    $region15: #{decoder_forward.25} parent=1 // pred_check_branch
      %26 = sbr.rel (0) target = $region17
    $region16: #{decoder_forward.25} parent=1 // pred_region
      %28 = dma.done [#allocation3], 16
    $region17: #{decoder_forward.25} parent=1 // pred_fallthru
      _
    %v29 = vld [vmem:[%s0] sm:$0xff]
    %v30 = vld [vmem:[%s0 + $0x8] sm:$0xff]
    %v31 = vld [vmem:[%s0 + $0x10] sm:$0xff]
    %v32 = vld [vmem:[%s0 + $0x18] sm:$0xff]
    %v33 = vld [vmem:[%s1] sm:$0x1]
    %v34 = vld [vmem:[#allocation2] sm:$0x1]
    %35 = vadd.xlane.f32.xlu0 %v29
    %v36 = vpop.xlane.xlu0 %35
    %37 = vadd.xlane.f32.xlu0 %v30
    %v38 = vpop.xlane.xlu0 %37
    %39 = vadd.xlane.f32.xlu0 %v31
    %v40 = vpop.xlane.xlu0 %39
    %41 = vadd.xlane.f32.xlu0 %v32
    %v42 = vpop.xlane.xlu0 %41
    %v43 = vmul.f32 %v36, 0.0078125
    %v44 = vmul.f32 %v38, 0.0078125
    %v45 = vmul.f32 %v40, 0.0078125
    %v46 = vmul.f32 %v42, 0.0078125
    %v47 = vmul.f32 %v29, %v29
    %v48 = vmul.f32 %v30, %v30
    %v49 = vmul.f32 %v31, %v31
    %v50 = vmul.f32 %v32, %v32
    %51 = vadd.xlane.f32.xlu0 %v47
    %v52 = vpop.xlane.xlu0 %51
    %53 = vadd.xlane.f32.xlu0 %v48
    %v54 = vpop.xlane.xlu0 %53
    %55 = vadd.xlane.f32.xlu0 %v49
    %v56 = vpop.xlane.xlu0 %55
    %57 = vadd.xlane.f32.xlu0 %v50
    %v58 = vpop.xlane.xlu0 %57
    %v59 = vmul.f32 %v52, 0.0078125
    %v60 = vmul.f32 %v54, 0.0078125
    %v61 = vmul.f32 %v56, 0.0078125
    %v62 = vmul.f32 %v58, 0.0078125
    %v63 = vmul.f32 %v43, %v43
    %v64 = vmul.f32 %v44, %v44
    %v65 = vmul.f32 %v45, %v45
    %v66 = vmul.f32 %v46, %v46
    %v67 = vsub.f32 %v59, %v63
    %v68 = vsub.f32 %v60, %v64
    %v69 = vsub.f32 %v61, %v65
    %v70 = vsub.f32 %v62, %v66
    %v71 = vmax.f32 %v67, 0.0
    %v72 = vmax.f32 %v68, 0.0
    %v73 = vmax.f32 %v69, 0.0
    %v74 = vmax.f32 %v70, 0.0
    %v75 = vsub.f32 %v29, %v43
    %v76 = vsub.f32 %v30, %v44
    %v77 = vsub.f32 %v31, %v45
    %v78 = vsub.f32 %v32, %v46
    %v79 = vadd.f32 %v71, 1e-05
    %v80 = vadd.f32 %v72, 1e-05
    %v81 = vadd.f32 %v73, 1e-05
    %v82 = vadd.f32 %v74, 1e-05
    %v83 = vrsqrt.pop %v79
    %v84 = vmul.f32 %v83, %v79
    %v85 = vmul.f32 %v84, %v83
    %v86 = vmul.f32 0.5, %v85
    %v87 = vsub.f32 1.5, %v86
    %v88 = vmul.f32 %v83, %v87
    %vm89 = vweird.f32 %v79
    %vm90 = vweird.f32 %v83
    %vm91 = vmor %vm89, %vm90
    %v92 = vsel %vm91, %v83, %v88
    %v93 = vrsqrt.pop %v80
    %v94 = vmul.f32 %v93, %v80
    %v95 = vmul.f32 %v94, %v93
    %v96 = vmul.f32 0.5, %v95
    %v97 = vsub.f32 1.5, %v96
    %v98 = vmul.f32 %v93, %v97
    %vm99 = vweird.f32 %v80
    %vm100 = vweird.f32 %v93
    %vm101 = vmor %vm99, %vm100
    %v102 = vsel %vm101, %v93, %v98
    %v103 = vrsqrt.pop %v81
    %v104 = vmul.f32 %v103, %v81
    %v105 = vmul.f32 %v104, %v103
    %v106 = vmul.f32 0.5, %v105
    %v107 = vsub.f32 1.5, %v106
    %v108 = vmul.f32 %v103, %v107
    %vm109 = vweird.f32 %v81
    %vm110 = vweird.f32 %v103
    %vm111 = vmor %vm109, %vm110
    %v112 = vsel %vm111, %v103, %v108
    %v113 = vrsqrt.pop %v82
    %v114 = vmul.f32 %v113, %v82
    %v115 = vmul.f32 %v114, %v113
    %v116 = vmul.f32 0.5, %v115
    %v117 = vsub.f32 1.5, %v116
    %v118 = vmul.f32 %v113, %v117
    %vm119 = vweird.f32 %v82
    %vm120 = vweird.f32 %v113
    %vm121 = vmor %vm119, %vm120
    %v122 = vsel %vm121, %v113, %v118
    %v123 = vmul.f32 %v75, %v92
    %v124 = vmul.f32 %v76, %v102
    %v125 = vmul.f32 %v77, %v112
    %v126 = vmul.f32 %v78, %v122
    %v128 = vperm.slane %v33, 0
    %v130 = vmul.f32 %v123, %v128
    %v131 = vmul.f32 %v124, %v128
    %v132 = vmul.f32 %v125, %v128
    %v133 = vmul.f32 %v126, %v128
    %v135 = vperm.slane %v34, 0
    %v137 = vadd.f32 %v130, %v135
    %v138 = vadd.f32 %v131, %v135
    %v139 = vadd.f32 %v132, %v135
    %v140 = vadd.f32 %v133, %v135
    %141 = vst [vmem:[#allocation5] sm:$0xff] %v137
    %142 = vst [vmem:[#allocation5 + $0x8] sm:$0xff] %v138
    %143 = vst [vmem:[#allocation5 + $0x10] sm:$0xff] %v139
    %144 = vst [vmem:[#allocation5 + $0x18] sm:$0xff] %v140
    // Predicated region
    $region18: #{decoder_forward.25} parent=1 // pred_check
      _
    $region19: #{decoder_forward.25} parent=1 // pred_check_branch
      %146 = sbr.rel (0) target = $region21
    $region20: #{decoder_forward.25} parent=1 // pred_region
      %148 = vsyncadd [#allocation4], 0
      %s149 = sshll.u32 [#allocation5], 4
      %s150 = int_to_ptr.vmem [resolvable:$true] %s149
      %s151 = sshll.u32 %s3, 4
      %s152 = int_to_ptr.hbm [resolvable:$true] %s151
      %157 = dma.vmem_to_hbm [thread:$0]  %s150, 512, %s152, [#allocation4], 128, 128, 8
    $region21: #{decoder_forward.25} parent=1 // pred_fallthru
      _
    // Predicated region
    $region22: #{decoder_forward.25} parent=1 // pred_check
      _
    $region23: #{decoder_forward.25} parent=1 // pred_check_branch
      %159 = sbr.rel (0) target = $region25
    $region24: #{decoder_forward.25} parent=1 // pred_region
      %161 = dma.done [#allocation4], 512
    $region25: #{decoder_forward.25} parent=1 // pred_fallthru
      _
    %162 = vsyncpa [#allocation3], 1
    %163 = vsyncpa [#allocation4], 1

</llo_original>
